<compile_context>
chip_gen: v6e
topology: v6e:2x2x1
jax: 0.10.0
libtpu: 0.0.40
codegen_flags: <defaults>
</compile_context>

<pallas_src>
import functools
import math

import jax
import jax.numpy as jnp
from jax.experimental import pallas as pl
from jax.experimental.pallas import tpu as pltpu

BN_EPS = 1e-5   # PyTorch BatchNorm1d default
LANE = 128
TB = 512        # batch-tile rows (perf review: 512 >> 128 in this shape regime)


def _round_up(x, m):
    return (x + m - 1) // m * m


# --------------------------------------------------------------------------
# Kernel
# --------------------------------------------------------------------------
def _mlp_kernel(*refs, n_hidden, use_output_bias, output_activation,
                tb, batch, n_tiles, rows_padded, hid_pads):
    """refs = x, (W, bgb)*n_hidden, W_out, [b_out],            # inputs
              out, [stash_hbm],                                # outputs
              [stash_buf, sem, sum, sq, a, c]                  # scratch"""
    idx = 0
    x_ref = refs[idx]; idx += 1
    w_refs, bgb_refs = [], []
    for _ in range(n_hidden):
        w_refs.append(refs[idx]); idx += 1
        bgb_refs.append(refs[idx]); idx += 1
    wout_ref = refs[idx]; idx += 1
    bout_ref = None
    if use_output_bias:
        bout_ref = refs[idx]; idx += 1
    out_ref = refs[idx]; idx += 1
    if n_hidden:
        stash_hbm = refs[idx]; idx += 1
        stash_buf = refs[idx]; idx += 1
        sem = refs[idx]; idx += 1
        sum_ref = refs[idx]; idx += 1
        sq_ref = refs[idx]; idx += 1
        a_ref = refs[idx]; idx += 1
        c_ref = refs[idx]; idx += 1

    s = pl.program_id(0)                # stage: hidden layers 0..n_hidden-1, then output
    t = pl.program_id(1)                # batch tile
    row_start = pl.multiple_of(t * tb, tb)
    last_tile = n_tiles - 1

    def fold_bn(layer):
        # Fold global batch stats of hidden `layer` into scale/shift (a, c).
        hw = hid_pads[layer]
        gamma = bgb_refs[layer][1:2, :]
        beta = bgb_refs[layer][2:3, :]
        inv_n = 1.0 / batch
        mean = sum_ref[:, :hw] * inv_n
        var = jnp.maximum(sq_ref[:, :hw] * inv_n - mean * mean, 0.0)
        a = gamma * jax.lax.rsqrt(var + BN_EPS)
        a_ref[:, :hw] = a
        c_ref[:, :hw] = beta - mean * a

    def load_prev_normalized(layer):
        # DMA hidden `layer`'s stashed post-ReLU tile from HBM, apply folded BN.
        hw = hid_pads[layer]
        cp = pltpu.make_async_copy(
            stash_hbm.at[pl.ds(row_start, tb), pl.ds(0, hw)],
            stash_buf.at[:, pl.ds(0, hw)],
            sem.at[0])
        cp.start()
        cp.wait()
        hp = stash_buf[:, :hw].astype(jnp.float32)
        hn = hp * a_ref[:, :hw] + c_ref[:, :hw]
        return hn.astype(jnp.bfloat16)

    def accumulate_stats(layer, h):
        hw = hid_pads[layer]
        if rows_padded:
            @pl.when(t == last_tile)        # only the last tile has padded rows
            def _():
                rows = jax.lax.broadcasted_iota(jnp.int32, (tb, 1), 0) + row_start
                hm = jnp.where(rows < batch, h, 0.0)
                sum_ref[:, :hw] += jnp.sum(hm, axis=0, keepdims=True)
                sq_ref[:, :hw] += jnp.sum(hm * hm, axis=0, keepdims=True)

            @pl.when(t != last_tile)
            def _():
                sum_ref[:, :hw] += jnp.sum(h, axis=0, keepdims=True)
                sq_ref[:, :hw] += jnp.sum(h * h, axis=0, keepdims=True)
        else:
            sum_ref[:, :hw] += jnp.sum(h, axis=0, keepdims=True)
            sq_ref[:, :hw] += jnp.sum(h * h, axis=0, keepdims=True)

    def store_stash(layer, h):
        hw = hid_pads[layer]
        stash_buf[:, :hw] = h.astype(jnp.bfloat16)
        cp = pltpu.make_async_copy(
            stash_buf.at[:, pl.ds(0, hw)],
            stash_hbm.at[pl.ds(row_start, tb), pl.ds(0, hw)],
            sem.at[1])
        cp.start()
        cp.wait()

    # ---- hidden-layer stages (Linear -> ReLU; accumulate stats; stash) -----
    for layer in range(n_hidden):
        @pl.when(s == layer)
        def _(layer=layer):
            @pl.when(t == 0)
            def _():
                if layer > 0:
                    fold_bn(layer - 1)          # consume previous layer's stats
                hw = hid_pads[layer]
                sum_ref[:, :hw] = jnp.zeros((1, hw), jnp.float32)
                sq_ref[:, :hw] = jnp.zeros((1, hw), jnp.float32)

            if layer == 0:
                h_in = x_ref[...]               # bf16
            else:
                h_in = load_prev_normalized(layer - 1)
            w = w_refs[layer][...]              # bf16 (in_pad, out_pad)
            b = bgb_refs[layer][0:1, :]         # f32  (1, out_pad)
            h = jnp.dot(h_in, w, preferred_element_type=jnp.float32) + b
            h = jnp.maximum(h, 0.0)             # ReLU in f32
            accumulate_stats(layer, h)
            store_stash(layer, h)

    # ---- output stage (BN of last hidden layer -> Linear -> activation) ----
    @pl.when(s == n_hidden)
    def _():
        if n_hidden == 0:
            h_in = x_ref[...]
        else:
            @pl.when(t == 0)
            def _():
                fold_bn(n_hidden - 1)
            h_in = load_prev_normalized(n_hidden - 1)
        y = jnp.dot(h_in, wout_ref[...], preferred_element_type=jnp.float32)
        if use_output_bias:
            y = y + bout_ref[...]
        if output_activation == "ReLU":
            y = jnp.maximum(y, 0.0)
        elif output_activation == "Tanh":
            y = jnp.tanh(y)
        elif output_activation == "Sigmoid":
            y = jax.nn.sigmoid(y)
        # else: Identity
        out_ref[...] = y.astype(out_ref.dtype)


# --------------------------------------------------------------------------
# Parameter construction (mimics PyTorch default Linear init) and padding
# --------------------------------------------------------------------------
def init_mlp_params(key, input_shape, output_shape, out_chans_per_layer,
                    use_output_bias=True):
    out_chans = [c for c in out_chans_per_layer if c]
    params = []
    in_features = input_shape[-1]
    for out_features in out_chans:
        key, kw, kb = jax.random.split(key, 3)
        k = 1.0 / math.sqrt(in_features)
        params.append(jax.random.uniform(kw, (in_features, out_features),
                                         jnp.float32, -k, k))     # W (in, out)
        params.append(jax.random.uniform(kb, (1, out_features),
                                         jnp.float32, -k, k))     # bias
        params.append(jnp.ones((1, out_features), jnp.float32))   # BN gamma
        params.append(jnp.zeros((1, out_features), jnp.float32))  # BN beta
        in_features = out_features
    flat_out = int(math.prod(int(d) for d in output_shape))
    key, kw, kb = jax.random.split(key, 3)
    k = 1.0 / math.sqrt(in_features)
    params.append(jax.random.uniform(kw, (in_features, flat_out),
                                     jnp.float32, -k, k))
    if use_output_bias:
        params.append(jax.random.uniform(kb, (1, flat_out), jnp.float32, -k, k))
    return params


def _pad_params(params, input_dim, out_chans, flat_out, use_output_bias):
    """Zero-pad feature dims to 128 lanes; cast weights to bf16 (MXU operands);
    pack bias/gamma/beta into one (3, out_pad) f32 array per hidden layer."""
    padded = []
    in_pad = _round_up(input_dim, LANE)
    hid_pads = []
    prev_pad, prev_dim = in_pad, input_dim
    p = 0
    for out_dim in out_chans:
        w, b, g, bt = params[p:p + 4]; p += 4
        out_p = _round_up(out_dim, LANE)
        w_pad = jnp.zeros((prev_pad, out_p), jnp.float32)
        padded.append(w_pad.at[:prev_dim, :out_dim].set(w).astype(jnp.bfloat16))
        bgb = jnp.zeros((3, out_p), jnp.float32)
        bgb = bgb.at[0, :out_dim].set(b[0])
        bgb = bgb.at[1, :out_dim].set(g[0])
        bgb = bgb.at[2, :out_dim].set(bt[0])
        padded.append(bgb)
        hid_pads.append(out_p)
        prev_pad, prev_dim = out_p, out_dim
    w_out = params[p]; p += 1
    out_p = _round_up(flat_out, LANE)
    w_pad = jnp.zeros((prev_pad, out_p), jnp.float32)
    padded.append(w_pad.at[:prev_dim, :flat_out].set(w_out).astype(jnp.bfloat16))
    if use_output_bias:
        padded.append(jnp.zeros((1, out_p), jnp.float32)
                      .at[:, :flat_out].set(params[p]))
    return padded, in_pad, hid_pads, out_p


def _vmem_budget(tb, in_pad, out_pad, h_max, padded_params, n_hidden):
    byt = 0
    byt += 2 * tb * in_pad * 2            # x tiles, bf16, double-buffered
    byt += 2 * tb * out_pad * 4           # out tiles, f32, double-buffered
    for arr in padded_params:             # whole-array params (x2 buffers)
        rows = max(arr.shape[0], 8)       # sublane padding
        byt += 2 * rows * arr.shape[1] * arr.dtype.itemsize
    if n_hidden:
        byt += tb * h_max * 2             # stash staging tile (bf16)
        byt += 4 * 8 * h_max * 4          # sum / sq / a / c (sublane-padded)
    budget = 2 * byt + (4 << 20)          # 2x margin + 4 MiB headroom
    return max(16 << 20, min(budget, 48 << 20))


# --------------------------------------------------------------------------
# Forward wrapper
# --------------------------------------------------------------------------
def mlp_block_forward(x, params, out_chans_per_layer, output_shape,
                      use_output_bias=True, output_activation=None):
    out_chans = [c for c in out_chans_per_layer if c]
    n_hidden = len(out_chans)
    batch, in_dim = x.shape
    flat_out = int(math.prod(int(d) for d in output_shape))

    padded_params, in_pad, hid_pads, out_pad = _pad_params(
        params, in_dim, out_chans, flat_out, use_output_bias)

    if batch <= TB:
        tb = _round_up(batch, 8)
        b_pad = tb
    else:
        tb = TB
        b_pad = _round_up(batch, tb)
    n_tiles = b_pad // tb
    rows_padded = (b_pad != batch)
    last_tile = n_tiles - 1

    x_pad = jnp.zeros((b_pad, in_pad), jnp.bfloat16)
    x_pad = x_pad.at[:batch, :in_dim].set(x.astype(jnp.bfloat16))

    h_max = max(hid_pads) if n_hidden else in_pad

    kernel = functools.partial(
        _mlp_kernel, n_hidden=n_hidden, use_output_bias=use_output_bias,
        output_activation=output_activation, tb=tb, batch=batch,
        n_tiles=n_tiles, rows_padded=rows_padded, hid_pads=tuple(hid_pads))

    # x is only read at stage 0: collapse its block index for later stages so
    # the pipeline skips the redundant HBM refetches.
    in_specs = [pl.BlockSpec((tb, in_pad),
                             lambda s, t: (jnp.where(s == 0, t, last_tile), 0))]
    for arr in padded_params:              # tiny params: whole-array VMEM-resident
        in_specs.append(pl.BlockSpec(arr.shape, lambda s, t: (0, 0)))

    # Output tile only advances at the final stage (no per-stage garbage writebacks).
    out_shapes = [jax.ShapeDtypeStruct((b_pad, out_pad), jnp.float32)]
    out_specs = [pl.BlockSpec((tb, out_pad),
                              lambda s, t: (jnp.where(s == n_hidden, t, 0), 0))]
    scratch_shapes = []
    if n_hidden:
        # HBM-resident activation stash, streamed with manual DMA per tile.
        out_shapes.append(jax.ShapeDtypeStruct((b_pad, h_max), jnp.bfloat16))
        out_specs.append(pl.BlockSpec(memory_space=pl.ANY))
        scratch_shapes = [
            pltpu.VMEM((tb, h_max), jnp.bfloat16),   # stash staging tile
            pltpu.SemaphoreType.DMA((2,)),           # in / out copy semaphores
            pltpu.VMEM((1, h_max), jnp.float32),     # BN sum
            pltpu.VMEM((1, h_max), jnp.float32),     # BN sum of squares
            pltpu.VMEM((1, h_max), jnp.float32),     # folded BN scale a
            pltpu.VMEM((1, h_max), jnp.float32),     # folded BN shift c
        ]

    vmem_budget = _vmem_budget(tb, in_pad, out_pad, h_max, padded_params, n_hidden)

    results = pl.pallas_call(
        kernel,
        out_shape=tuple(out_shapes),
        grid_spec=pltpu.PrefetchScalarGridSpec(
            num_scalar_prefetch=0,
            grid=(n_hidden + 1, n_tiles),
            in_specs=in_specs,
            out_specs=tuple(out_specs),
            scratch_shapes=scratch_shapes),
        compiler_params=pltpu.CompilerParams(
            # Batch axis carries the cross-tile BN reduction -> "arbitrary".
            dimension_semantics=("arbitrary", "arbitrary"),
            vmem_limit_bytes=vmem_budget),
    )(x_pad, *padded_params)

    out = results[0][:batch, :flat_out]
    return out.reshape((batch,) + tuple(int(d) for d in output_shape))


# --------------------------------------------------------------------------
# Pure-JAX reference (same bf16-operand / bf16-stash / f32-stats dtype policy)
# --------------------------------------------------------------------------
def mlp_reference(x, params, out_chans_per_layer, output_shape,
                  use_output_bias=True, output_activation=None):
    out_chans = [c for c in out_chans_per_layer if c]
    h_in = x.astype(jnp.bfloat16)
    p = 0
    for _ in out_chans:
        w, b, g, bt = params[p:p + 4]; p += 4
        h = jnp.dot(h_in, w.astype(jnp.bfloat16),
                    preferred_element_type=jnp.float32) + b
        h = jnp.maximum(h, 0.0)
        mean = jnp.mean(h, axis=0, keepdims=True)
        var = jnp.maximum(jnp.mean(h * h, axis=0, keepdims=True) - mean * mean, 0.0)
        a = g * jax.lax.rsqrt(var + BN_EPS)
        c = bt - mean * a
        h_stored = h.astype(jnp.bfloat16).astype(jnp.float32)   # stash round-trip
        h_in = (h_stored * a + c).astype(jnp.bfloat16)
    w_out = params[p]; p += 1
    y = jnp.dot(h_in, w_out.astype(jnp.bfloat16),
                preferred_element_type=jnp.float32)
    if use_output_bias:
        y = y + params[p]
    if output_activation == "ReLU":
        y = jnp.maximum(y, 0.0)
    elif output_activation == "Tanh":
        y = jnp.tanh(y)
    elif output_activation == "Sigmoid":
        y = jax.nn.sigmoid(y)
    return y.reshape((x.shape[0],) + tuple(int(d) for d in output_shape))


# --------------------------------------------------------------------------
if __name__ == "__main__":
    # MLPBlock(input_shape=[16], output_shape=[4, 8], out_chans_per_layer=[64, 32],
    #          use_batch_norm=True, output_activation=None, use_output_bias=True)
    input_shape = [16]
    output_shape = [4, 8]
    out_chans_per_layer = [64, 32]
    batch = 600                  # > TB=512: exercises batch tiling + padded-row BN masking
    use_output_bias = True
    output_activation = None

    key = jax.random.PRNGKey(0)
    key, kx = jax.random.split(key)
    x = jax.random.normal(kx, (batch, input_shape[-1]), jnp.float32)

    params = init_mlp_params(key, input_shape, output_shape,
                             out_chans_per_layer, use_output_bias)

    y = mlp_block_forward(x, params, out_chans_per_layer, output_shape,
                          use_output_bias, output_activation)
    y = jax.block_until_ready(y)
    assert y.shape == (batch,) + tuple(output_shape), y.shape

    y_ref = mlp_reference(x, params, out_chans_per_layer, output_shape,
                          use_output_bias, output_activation)
    err = float(jnp.max(jnp.abs(y - y_ref)))
    assert err < 2e-2, f"max abs error vs reference: {err}"
    print("KERNEL_OK")
</pallas_src>

<mosaic_0001>
module attributes {stable_mosaic.version = 11 : i64} {
  func.func @_mlp_kernel(%arg0: i32, %arg1: i32, %arg2: memref<512x128xbf16, #tpu.memory_space<vmem>>, %arg3: memref<128x128xbf16, #tpu.memory_space<vmem>>, %arg4: memref<3x128xf32, #tpu.memory_space<vmem>>, %arg5: memref<128x128xbf16, #tpu.memory_space<vmem>>, %arg6: memref<3x128xf32, #tpu.memory_space<vmem>>, %arg7: memref<128x128xbf16, #tpu.memory_space<vmem>>, %arg8: memref<1x128xf32, #tpu.memory_space<vmem>>, %arg9: memref<512x128xf32, #tpu.memory_space<vmem>>, %arg10: memref<1024x128xbf16, #tpu.memory_space<any>>, %arg11: memref<512x128xbf16, #tpu.memory_space<vmem>>, %arg12: memref<2x!tpu.dma_semaphore, #tpu.memory_space<semaphore_mem>>, %arg13: memref<1x128xf32, #tpu.memory_space<vmem>>, %arg14: memref<1x128xf32, #tpu.memory_space<vmem>>, %arg15: memref<1x128xf32, #tpu.memory_space<vmem>>, %arg16: memref<1x128xf32, #tpu.memory_space<vmem>>) attributes {dimension_semantics = [#tpu.dimension_semantics<arbitrary>, #tpu.dimension_semantics<arbitrary>], iteration_bounds = array<i64: 3, 2>, scalar_prefetch = 0 : i64, scratch_operands = 6 : i64, tpu.core_type = #tpu.core_type<tc>, window_params = [{transform_indices = @transform_0, window_bounds = array<i64: 512, 128>}, {pipeline_mode = #tpu.pipeline_mode<synchronous>, transform_indices = @transform_1, window_bounds = array<i64: 128, 128>}, {pipeline_mode = #tpu.pipeline_mode<synchronous>, transform_indices = @transform_2, window_bounds = array<i64: 3, 128>}, {pipeline_mode = #tpu.pipeline_mode<synchronous>, transform_indices = @transform_3, window_bounds = array<i64: 128, 128>}, {pipeline_mode = #tpu.pipeline_mode<synchronous>, transform_indices = @transform_4, window_bounds = array<i64: 3, 128>}, {pipeline_mode = #tpu.pipeline_mode<synchronous>, transform_indices = @transform_5, window_bounds = array<i64: 128, 128>}, {pipeline_mode = #tpu.pipeline_mode<synchronous>, transform_indices = @transform_6, window_bounds = array<i64: 1, 128>}, {transform_indices = @transform_7, window_bounds = array<i64: 512, 128>}, {}]} {
    %c512_i32 = arith.constant 512 : i32
    %0 = arith.muli %arg1, %c512_i32 : i32
    %1 = tpu.assume_multiple %0, 512 : i32
    %c0_i32 = arith.constant 0 : i32
    %2 = arith.cmpi eq, %arg0, %c0_i32 : i32
    %3 = arith.extui %2 : i1 to i32
    %c0_i32_0 = arith.constant 0 : i32
    %4 = arith.cmpi ne, %3, %c0_i32_0 : i32
    scf.if %4 {
      %c0_i32_3 = arith.constant 0 : i32
      %11 = arith.cmpi eq, %arg1, %c0_i32_3 : i32
      %12 = arith.extui %11 : i1 to i32
      %c0_i32_4 = arith.constant 0 : i32
      %13 = arith.cmpi ne, %12, %c0_i32_4 : i32
      scf.if %13 {
        %cst_25 = arith.constant 0.000000e+00 : f32
        %38 = vector.broadcast %cst_25 : f32 to vector<1x128xf32>
        %c0_26 = arith.constant 0 : index
        %c0_27 = arith.constant 0 : index
        %39 = vector.load %arg13[%c0_26, %c0_27] : memref<1x128xf32, #tpu.memory_space<vmem>>, vector<1x128xf32>
        tpu.vector_store %arg13[%c0_26, %c0_27], %38 {strides = array<i32>} : memref<1x128xf32, #tpu.memory_space<vmem>>, vector<1x128xf32>,
        %cst_28 = arith.constant 0.000000e+00 : f32
        %40 = vector.broadcast %cst_28 : f32 to vector<1x128xf32>
        %c0_29 = arith.constant 0 : index
        %c0_30 = arith.constant 0 : index
        %41 = vector.load %arg14[%c0_29, %c0_30] : memref<1x128xf32, #tpu.memory_space<vmem>>, vector<1x128xf32>
        tpu.vector_store %arg14[%c0_29, %c0_30], %40 {strides = array<i32>} : memref<1x128xf32, #tpu.memory_space<vmem>>, vector<1x128xf32>,
      } else {
      }
      %c0 = arith.constant 0 : index
      %c0_5 = arith.constant 0 : index
      %14 = vector.load %arg2[%c0, %c0_5] : memref<512x128xbf16, #tpu.memory_space<vmem>>, vector<512x128xbf16>
      %c0_6 = arith.constant 0 : index
      %c0_7 = arith.constant 0 : index
      %15 = vector.load %arg3[%c0_6, %c0_7] : memref<128x128xbf16, #tpu.memory_space<vmem>>, vector<128x128xbf16>
      %c0_8 = arith.constant 0 : index
      %c0_9 = arith.constant 0 : index
      %16 = vector.load %arg4[%c0_8, %c0_9] : memref<3x128xf32, #tpu.memory_space<vmem>>, vector<1x128xf32>
      %cst = arith.constant dense<0.000000e+00> : vector<512x128xf32>
      %17 = tpu.matmul %14, %15, %cst {dimension_numbers = #tpu.dot_dimension_numbers<[1], [0], [0], [1], [0, 0, 1, 1], [], []>} : vector<512x128xbf16>, vector<128x128xbf16>, vector<512x128xf32> -> vector<512x128xf32>
      %18 = vector.broadcast %16 : vector<1x128xf32> to vector<512x128xf32>
      %19 = arith.addf %17, %18 : vector<512x128xf32>
      %cst_10 = arith.constant 0.000000e+00 : f32
      %20 = vector.broadcast %cst_10 : f32 to vector<512x128xf32>
      %21 = arith.maximumf %19, %20 : vector<512x128xf32>
      %c1_i32_11 = arith.constant 1 : i32
      %22 = arith.cmpi eq, %arg1, %c1_i32_11 : i32
      %23 = arith.extui %22 : i1 to i32
      %c0_i32_12 = arith.constant 0 : i32
      %24 = arith.cmpi ne, %23, %c0_i32_12 : i32
      scf.if %24 {
        %38 = tpu.iota {dimensions = array<i32: 0>} : vector<512x1xi32>
        %39 = vector.broadcast %1 : i32 to vector<512x1xi32>
        %40 = arith.addi %38, %39 : vector<512x1xi32>
        %c600_i32 = arith.constant 600 : i32
        %41 = vector.broadcast %c600_i32 : i32 to vector<512x1xi32>
        %42 = arith.cmpi slt, %40, %41 : vector<512x1xi32>
        %cst_25 = arith.constant 0.000000e+00 : f32
        %43 = vector.shape_cast %42 : vector<512x1xi1> to vector<512x1xi1>
        %44 = vector.broadcast %43 : vector<512x1xi1> to vector<512x128xi1>
        %45 = vector.broadcast %cst_25 : f32 to vector<512x128xf32>
        %46 = arith.select %44, %21, %45 : vector<512x128xi1>, vector<512x128xf32>
        %c0_26 = arith.constant 0 : index
        %c0_27 = arith.constant 0 : index
        %47 = vector.load %arg13[%c0_26, %c0_27] : memref<1x128xf32, #tpu.memory_space<vmem>>, vector<1x128xf32>
        %cst_28 = arith.constant dense<0.000000e+00> : vector<128xf32>
        %48 = vector.multi_reduction <add>, %46, %cst_28 [0] : vector<512x128xf32> to vector<128xf32>
        %49 = vector.shape_cast %48 : vector<128xf32> to vector<1x128xf32>
        %50 = arith.addf %47, %49 : vector<1x128xf32>
        %c0_29 = arith.constant 0 : index
        %c0_30 = arith.constant 0 : index
        %51 = vector.load %arg13[%c0_29, %c0_30] : memref<1x128xf32, #tpu.memory_space<vmem>>, vector<1x128xf32>
        tpu.vector_store %arg13[%c0_29, %c0_30], %50 {strides = array<i32>} : memref<1x128xf32, #tpu.memory_space<vmem>>, vector<1x128xf32>,
        %c0_31 = arith.constant 0 : index
        %c0_32 = arith.constant 0 : index
        %52 = vector.load %arg14[%c0_31, %c0_32] : memref<1x128xf32, #tpu.memory_space<vmem>>, vector<1x128xf32>
        %53 = arith.mulf %46, %46 : vector<512x128xf32>
        %cst_33 = arith.constant dense<0.000000e+00> : vector<128xf32>
        %54 = vector.multi_reduction <add>, %53, %cst_33 [0] : vector<512x128xf32> to vector<128xf32>
        %55 = vector.shape_cast %54 : vector<128xf32> to vector<1x128xf32>
        %56 = arith.addf %52, %55 : vector<1x128xf32>
        %c0_34 = arith.constant 0 : index
        %c0_35 = arith.constant 0 : index
        %57 = vector.load %arg14[%c0_34, %c0_35] : memref<1x128xf32, #tpu.memory_space<vmem>>, vector<1x128xf32>
        tpu.vector_store %arg14[%c0_34, %c0_35], %56 {strides = array<i32>} : memref<1x128xf32, #tpu.memory_space<vmem>>, vector<1x128xf32>,
      } else {
      }
      %c1_i32_13 = arith.constant 1 : i32
      %25 = arith.cmpi ne, %arg1, %c1_i32_13 : i32
      %26 = arith.extui %25 : i1 to i32
      %c0_i32_14 = arith.constant 0 : i32
      %27 = arith.cmpi ne, %26, %c0_i32_14 : i32
      scf.if %27 {
        %c0_25 = arith.constant 0 : index
        %c0_26 = arith.constant 0 : index
        %38 = vector.load %arg13[%c0_25, %c0_26] : memref<1x128xf32, #tpu.memory_space<vmem>>, vector<1x128xf32>
        %cst_27 = arith.constant dense<0.000000e+00> : vector<128xf32>
        %39 = vector.multi_reduction <add>, %21, %cst_27 [0] : vector<512x128xf32> to vector<128xf32>
        %40 = vector.shape_cast %39 : vector<128xf32> to vector<1x128xf32>
        %41 = arith.addf %38, %40 : vector<1x128xf32>
        %c0_28 = arith.constant 0 : index
        %c0_29 = arith.constant 0 : index
        %42 = vector.load %arg13[%c0_28, %c0_29] : memref<1x128xf32, #tpu.memory_space<vmem>>, vector<1x128xf32>
        tpu.vector_store %arg13[%c0_28, %c0_29], %41 {strides = array<i32>} : memref<1x128xf32, #tpu.memory_space<vmem>>, vector<1x128xf32>,
        %c0_30 = arith.constant 0 : index
        %c0_31 = arith.constant 0 : index
        %43 = vector.load %arg14[%c0_30, %c0_31] : memref<1x128xf32, #tpu.memory_space<vmem>>, vector<1x128xf32>
        %44 = arith.mulf %21, %21 : vector<512x128xf32>
        %cst_32 = arith.constant dense<0.000000e+00> : vector<128xf32>
        %45 = vector.multi_reduction <add>, %44, %cst_32 [0] : vector<512x128xf32> to vector<128xf32>
        %46 = vector.shape_cast %45 : vector<128xf32> to vector<1x128xf32>
        %47 = arith.addf %43, %46 : vector<1x128xf32>
        %c0_33 = arith.constant 0 : index
        %c0_34 = arith.constant 0 : index
        %48 = vector.load %arg14[%c0_33, %c0_34] : memref<1x128xf32, #tpu.memory_space<vmem>>, vector<1x128xf32>
        tpu.vector_store %arg14[%c0_33, %c0_34], %47 {strides = array<i32>} : memref<1x128xf32, #tpu.memory_space<vmem>>, vector<1x128xf32>,
      } else {
      }
      %28 = arith.truncf %21 : vector<512x128xf32> to vector<512x128xbf16>
      %c0_15 = arith.constant 0 : index
      %c0_16 = arith.constant 0 : index
      %29 = vector.load %arg11[%c0_15, %c0_16] : memref<512x128xbf16, #tpu.memory_space<vmem>>, vector<512x128xbf16>
      tpu.vector_store %arg11[%c0_15, %c0_16], %28 {strides = array<i32>} : memref<512x128xbf16, #tpu.memory_space<vmem>>, vector<512x128xbf16>,
      %c1_i32_17 = arith.constant 1 : i32
      %c0_i32_18 = arith.constant 0 : i32
      %c0_i32_19 = arith.constant 0 : i32
      %30 = tpu.memref_slice %arg11[%c0_i32_18, %c0_i32_19] : memref<512x128xbf16, #tpu.memory_space<vmem>> -> memref<512x128xbf16, #tpu.memory_space<vmem>>
      %c0_i32_20 = arith.constant 0 : i32
      %31 = tpu.memref_slice %arg10[%1, %c0_i32_20] : memref<1024x128xbf16, #tpu.memory_space<any>> -> memref<512x128xbf16, #tpu.memory_space<any>>
      %32 = tpu.memref_slice %arg12[%c1_i32_17] : memref<2x!tpu.dma_semaphore, #tpu.memory_space<semaphore_mem>> -> memref<1x!tpu.dma_semaphore, #tpu.memory_space<semaphore_mem>>
      %33 = tpu.memref_squeeze %32 : memref<1x!tpu.dma_semaphore, #tpu.memory_space<semaphore_mem>> -> memref<!tpu.dma_semaphore, #tpu.memory_space<semaphore_mem>>
      tpu.enqueue_dma source(%30 : memref<512x128xbf16, #tpu.memory_space<vmem>>) target(%31 : memref<512x128xbf16, #tpu.memory_space<any>>) target_semaphore(%33 : memref<!tpu.dma_semaphore, #tpu.memory_space<semaphore_mem>>)
      %c1_i32_21 = arith.constant 1 : i32
      %c0_i32_22 = arith.constant 0 : i32
      %c0_i32_23 = arith.constant 0 : i32
      %34 = tpu.memref_slice %arg11[%c0_i32_22, %c0_i32_23] : memref<512x128xbf16, #tpu.memory_space<vmem>> -> memref<512x128xbf16, #tpu.memory_space<vmem>>
      %c0_i32_24 = arith.constant 0 : i32
      %35 = tpu.memref_slice %arg10[%1, %c0_i32_24] : memref<1024x128xbf16, #tpu.memory_space<any>> -> memref<512x128xbf16, #tpu.memory_space<any>>
      %36 = tpu.memref_slice %arg12[%c1_i32_21] : memref<2x!tpu.dma_semaphore, #tpu.memory_space<semaphore_mem>> -> memref<1x!tpu.dma_semaphore, #tpu.memory_space<semaphore_mem>>
      %37 = tpu.memref_squeeze %36 : memref<1x!tpu.dma_semaphore, #tpu.memory_space<semaphore_mem>> -> memref<!tpu.dma_semaphore, #tpu.memory_space<semaphore_mem>>
      tpu.wait_dma2 semaphore(%37 : memref<!tpu.dma_semaphore, #tpu.memory_space<semaphore_mem>>) src(%34 : memref<512x128xbf16, #tpu.memory_space<vmem>>) dst(%35 : memref<512x128xbf16, #tpu.memory_space<any>>)
    } else {
    }
    %c1_i32 = arith.constant 1 : i32
    %5 = arith.cmpi eq, %arg0, %c1_i32 : i32
    %6 = arith.extui %5 : i1 to i32
    %c0_i32_1 = arith.constant 0 : i32
    %7 = arith.cmpi ne, %6, %c0_i32_1 : i32
    scf.if %7 {
      %c0_i32_3 = arith.constant 0 : i32
      %11 = arith.cmpi eq, %arg1, %c0_i32_3 : i32
      %12 = arith.extui %11 : i1 to i32
      %c0_i32_4 = arith.constant 0 : i32
      %13 = arith.cmpi ne, %12, %c0_i32_4 : i32
      scf.if %13 {
        %c1 = arith.constant 1 : index
        %c0_37 = arith.constant 0 : index
        %54 = vector.load %arg4[%c1, %c0_37] : memref<3x128xf32, #tpu.memory_space<vmem>>, vector<1x128xf32>
        %c2 = arith.constant 2 : index
        %c0_38 = arith.constant 0 : index
        %55 = vector.load %arg4[%c2, %c0_38] : memref<3x128xf32, #tpu.memory_space<vmem>>, vector<1x128xf32>
        %c0_39 = arith.constant 0 : index
        %c0_40 = arith.constant 0 : index
        %56 = vector.load %arg13[%c0_39, %c0_40] : memref<1x128xf32, #tpu.memory_space<vmem>>, vector<1x128xf32>
        %cst_41 = arith.constant 0.00166666671 : f32
        %57 = vector.broadcast %cst_41 : f32 to vector<1x128xf32>
        %58 = arith.mulf %56, %57 : vector<1x128xf32>
        %c0_42 = arith.constant 0 : index
        %c0_43 = arith.constant 0 : index
        %59 = vector.load %arg14[%c0_42, %c0_43] : memref<1x128xf32, #tpu.memory_space<vmem>>, vector<1x128xf32>
        %cst_44 = arith.constant 0.00166666671 : f32
        %60 = vector.broadcast %cst_44 : f32 to vector<1x128xf32>
        %61 = arith.mulf %59, %60 : vector<1x128xf32>
        %62 = arith.mulf %58, %58 : vector<1x128xf32>
        %63 = arith.subf %61, %62 : vector<1x128xf32>
        %cst_45 = arith.constant 0.000000e+00 : f32
        %64 = vector.broadcast %cst_45 : f32 to vector<1x128xf32>
        %65 = arith.maximumf %63, %64 : vector<1x128xf32>
        %cst_46 = arith.constant 9.99999974E-6 : f32
        %66 = vector.broadcast %cst_46 : f32 to vector<1x128xf32>
        %67 = arith.addf %65, %66 : vector<1x128xf32>
        %68 = math.rsqrt %67 : vector<1x128xf32>
        %69 = arith.mulf %54, %68 : vector<1x128xf32>
        %c0_47 = arith.constant 0 : index
        %c0_48 = arith.constant 0 : index
        %70 = vector.load %arg15[%c0_47, %c0_48] : memref<1x128xf32, #tpu.memory_space<vmem>>, vector<1x128xf32>
        tpu.vector_store %arg15[%c0_47, %c0_48], %69 {strides = array<i32>} : memref<1x128xf32, #tpu.memory_space<vmem>>, vector<1x128xf32>,
        %71 = arith.mulf %58, %69 : vector<1x128xf32>
        %72 = arith.subf %55, %71 : vector<1x128xf32>
        %c0_49 = arith.constant 0 : index
        %c0_50 = arith.constant 0 : index
        %73 = vector.load %arg16[%c0_49, %c0_50] : memref<1x128xf32, #tpu.memory_space<vmem>>, vector<1x128xf32>
        tpu.vector_store %arg16[%c0_49, %c0_50], %72 {strides = array<i32>} : memref<1x128xf32, #tpu.memory_space<vmem>>, vector<1x128xf32>,
        %cst_51 = arith.constant 0.000000e+00 : f32
        %74 = vector.broadcast %cst_51 : f32 to vector<1x128xf32>
        %c0_52 = arith.constant 0 : index
        %c0_53 = arith.constant 0 : index
        %75 = vector.load %arg13[%c0_52, %c0_53] : memref<1x128xf32, #tpu.memory_space<vmem>>, vector<1x128xf32>
        tpu.vector_store %arg13[%c0_52, %c0_53], %74 {strides = array<i32>} : memref<1x128xf32, #tpu.memory_space<vmem>>, vector<1x128xf32>,
        %cst_54 = arith.constant 0.000000e+00 : f32
        %76 = vector.broadcast %cst_54 : f32 to vector<1x128xf32>
        %c0_55 = arith.constant 0 : index
        %c0_56 = arith.constant 0 : index
        %77 = vector.load %arg14[%c0_55, %c0_56] : memref<1x128xf32, #tpu.memory_space<vmem>>, vector<1x128xf32>
        tpu.vector_store %arg14[%c0_55, %c0_56], %76 {strides = array<i32>} : memref<1x128xf32, #tpu.memory_space<vmem>>, vector<1x128xf32>,
      } else {
      }
      %c0_i32_5 = arith.constant 0 : i32
      %c0_i32_6 = arith.constant 0 : i32
      %14 = tpu.memref_slice %arg10[%1, %c0_i32_6] : memref<1024x128xbf16, #tpu.memory_space<any>> -> memref<512x128xbf16, #tpu.memory_space<any>>
      %c0_i32_7 = arith.constant 0 : i32
      %c0_i32_8 = arith.constant 0 : i32
      %15 = tpu.memref_slice %arg11[%c0_i32_7, %c0_i32_8] : memref<512x128xbf16, #tpu.memory_space<vmem>> -> memref<512x128xbf16, #tpu.memory_space<vmem>>
      %16 = tpu.memref_slice %arg12[%c0_i32_5] : memref<2x!tpu.dma_semaphore, #tpu.memory_space<semaphore_mem>> -> memref<1x!tpu.dma_semaphore, #tpu.memory_space<semaphore_mem>>
      %17 = tpu.memref_squeeze %16 : memref<1x!tpu.dma_semaphore, #tpu.memory_space<semaphore_mem>> -> memref<!tpu.dma_semaphore, #tpu.memory_space<semaphore_mem>>
      tpu.enqueue_dma source(%14 : memref<512x128xbf16, #tpu.memory_space<any>>) target(%15 : memref<512x128xbf16, #tpu.memory_space<vmem>>) target_semaphore(%17 : memref<!tpu.dma_semaphore, #tpu.memory_space<semaphore_mem>>)
      %c0_i32_9 = arith.constant 0 : i32
      %c0_i32_10 = arith.constant 0 : i32
      %18 = tpu.memref_slice %arg10[%1, %c0_i32_10] : memref<1024x128xbf16, #tpu.memory_space<any>> -> memref<512x128xbf16, #tpu.memory_space<any>>
      %c0_i32_11 = arith.constant 0 : i32
      %c0_i32_12 = arith.constant 0 : i32
      %19 = tpu.memref_slice %arg11[%c0_i32_11, %c0_i32_12] : memref<512x128xbf16, #tpu.memory_space<vmem>> -> memref<512x128xbf16, #tpu.memory_space<vmem>>
      %20 = tpu.memref_slice %arg12[%c0_i32_9] : memref<2x!tpu.dma_semaphore, #tpu.memory_space<semaphore_mem>> -> memref<1x!tpu.dma_semaphore, #tpu.memory_space<semaphore_mem>>
      %21 = tpu.memref_squeeze %20 : memref<1x!tpu.dma_semaphore, #tpu.memory_space<semaphore_mem>> -> memref<!tpu.dma_semaphore, #tpu.memory_space<semaphore_mem>>
      tpu.wait_dma2 semaphore(%21 : memref<!tpu.dma_semaphore, #tpu.memory_space<semaphore_mem>>) src(%18 : memref<512x128xbf16, #tpu.memory_space<any>>) dst(%19 : memref<512x128xbf16, #tpu.memory_space<vmem>>)
      %c0 = arith.constant 0 : index
      %c0_13 = arith.constant 0 : index
      %22 = vector.load %arg11[%c0, %c0_13] : memref<512x128xbf16, #tpu.memory_space<vmem>>, vector<512x128xbf16>
      %23 = arith.extf %22 : vector<512x128xbf16> to vector<512x128xf32>
      %c0_14 = arith.constant 0 : index
      %c0_15 = arith.constant 0 : index
      %24 = vector.load %arg15[%c0_14, %c0_15] : memref<1x128xf32, #tpu.memory_space<vmem>>, vector<1x128xf32>
      %25 = vector.broadcast %24 : vector<1x128xf32> to vector<512x128xf32>
      %26 = arith.mulf %23, %25 : vector<512x128xf32>
      %c0_16 = arith.constant 0 : index
      %c0_17 = arith.constant 0 : index
      %27 = vector.load %arg16[%c0_16, %c0_17] : memref<1x128xf32, #tpu.memory_space<vmem>>, vector<1x128xf32>
      %28 = vector.broadcast %27 : vector<1x128xf32> to vector<512x128xf32>
      %29 = arith.addf %26, %28 : vector<512x128xf32>
      %30 = arith.truncf %29 : vector<512x128xf32> to vector<512x128xbf16>
      %c0_18 = arith.constant 0 : index
      %c0_19 = arith.constant 0 : index
      %31 = vector.load %arg5[%c0_18, %c0_19] : memref<128x128xbf16, #tpu.memory_space<vmem>>, vector<128x128xbf16>
      %c0_20 = arith.constant 0 : index
      %c0_21 = arith.constant 0 : index
      %32 = vector.load %arg6[%c0_20, %c0_21] : memref<3x128xf32, #tpu.memory_space<vmem>>, vector<1x128xf32>
      %cst = arith.constant dense<0.000000e+00> : vector<512x128xf32>
      %33 = tpu.matmul %30, %31, %cst {dimension_numbers = #tpu.dot_dimension_numbers<[1], [0], [0], [1], [0, 0, 1, 1], [], []>} : vector<512x128xbf16>, vector<128x128xbf16>, vector<512x128xf32> -> vector<512x128xf32>
      %34 = vector.broadcast %32 : vector<1x128xf32> to vector<512x128xf32>
      %35 = arith.addf %33, %34 : vector<512x128xf32>
      %cst_22 = arith.constant 0.000000e+00 : f32
      %36 = vector.broadcast %cst_22 : f32 to vector<512x128xf32>
      %37 = arith.maximumf %35, %36 : vector<512x128xf32>
      %c1_i32_23 = arith.constant 1 : i32
      %38 = arith.cmpi eq, %arg1, %c1_i32_23 : i32
      %39 = arith.extui %38 : i1 to i32
      %c0_i32_24 = arith.constant 0 : i32
      %40 = arith.cmpi ne, %39, %c0_i32_24 : i32
      scf.if %40 {
        %54 = tpu.iota {dimensions = array<i32: 0>} : vector<512x1xi32>
        %55 = vector.broadcast %1 : i32 to vector<512x1xi32>
        %56 = arith.addi %54, %55 : vector<512x1xi32>
        %c600_i32 = arith.constant 600 : i32
        %57 = vector.broadcast %c600_i32 : i32 to vector<512x1xi32>
        %58 = arith.cmpi slt, %56, %57 : vector<512x1xi32>
        %cst_37 = arith.constant 0.000000e+00 : f32
        %59 = vector.shape_cast %58 : vector<512x1xi1> to vector<512x1xi1>
        %60 = vector.broadcast %59 : vector<512x1xi1> to vector<512x128xi1>
        %61 = vector.broadcast %cst_37 : f32 to vector<512x128xf32>
        %62 = arith.select %60, %37, %61 : vector<512x128xi1>, vector<512x128xf32>
        %c0_38 = arith.constant 0 : index
        %c0_39 = arith.constant 0 : index
        %63 = vector.load %arg13[%c0_38, %c0_39] : memref<1x128xf32, #tpu.memory_space<vmem>>, vector<1x128xf32>
        %cst_40 = arith.constant dense<0.000000e+00> : vector<128xf32>
        %64 = vector.multi_reduction <add>, %62, %cst_40 [0] : vector<512x128xf32> to vector<128xf32>
        %65 = vector.shape_cast %64 : vector<128xf32> to vector<1x128xf32>
        %66 = arith.addf %63, %65 : vector<1x128xf32>
        %c0_41 = arith.constant 0 : index
        %c0_42 = arith.constant 0 : index
        %67 = vector.load %arg13[%c0_41, %c0_42] : memref<1x128xf32, #tpu.memory_space<vmem>>, vector<1x128xf32>
        tpu.vector_store %arg13[%c0_41, %c0_42], %66 {strides = array<i32>} : memref<1x128xf32, #tpu.memory_space<vmem>>, vector<1x128xf32>,
        %c0_43 = arith.constant 0 : index
        %c0_44 = arith.constant 0 : index
        %68 = vector.load %arg14[%c0_43, %c0_44] : memref<1x128xf32, #tpu.memory_space<vmem>>, vector<1x128xf32>
        %69 = arith.mulf %62, %62 : vector<512x128xf32>
        %cst_45 = arith.constant dense<0.000000e+00> : vector<128xf32>
        %70 = vector.multi_reduction <add>, %69, %cst_45 [0] : vector<512x128xf32> to vector<128xf32>
        %71 = vector.shape_cast %70 : vector<128xf32> to vector<1x128xf32>
        %72 = arith.addf %68, %71 : vector<1x128xf32>
        %c0_46 = arith.constant 0 : index
        %c0_47 = arith.constant 0 : index
        %73 = vector.load %arg14[%c0_46, %c0_47] : memref<1x128xf32, #tpu.memory_space<vmem>>, vector<1x128xf32>
        tpu.vector_store %arg14[%c0_46, %c0_47], %72 {strides = array<i32>} : memref<1x128xf32, #tpu.memory_space<vmem>>, vector<1x128xf32>,
      } else {
      }
      %c1_i32_25 = arith.constant 1 : i32
      %41 = arith.cmpi ne, %arg1, %c1_i32_25 : i32
      %42 = arith.extui %41 : i1 to i32
      %c0_i32_26 = arith.constant 0 : i32
      %43 = arith.cmpi ne, %42, %c0_i32_26 : i32
      scf.if %43 {
        %c0_37 = arith.constant 0 : index
        %c0_38 = arith.constant 0 : index
        %54 = vector.load %arg13[%c0_37, %c0_38] : memref<1x128xf32, #tpu.memory_space<vmem>>, vector<1x128xf32>
        %cst_39 = arith.constant dense<0.000000e+00> : vector<128xf32>
        %55 = vector.multi_reduction <add>, %37, %cst_39 [0] : vector<512x128xf32> to vector<128xf32>
        %56 = vector.shape_cast %55 : vector<128xf32> to vector<1x128xf32>
        %57 = arith.addf %54, %56 : vector<1x128xf32>
        %c0_40 = arith.constant 0 : index
        %c0_41 = arith.constant 0 : index
        %58 = vector.load %arg13[%c0_40, %c0_41] : memref<1x128xf32, #tpu.memory_space<vmem>>, vector<1x128xf32>
        tpu.vector_store %arg13[%c0_40, %c0_41], %57 {strides = array<i32>} : memref<1x128xf32, #tpu.memory_space<vmem>>, vector<1x128xf32>,
        %c0_42 = arith.constant 0 : index
        %c0_43 = arith.constant 0 : index
        %59 = vector.load %arg14[%c0_42, %c0_43] : memref<1x128xf32, #tpu.memory_space<vmem>>, vector<1x128xf32>
        %60 = arith.mulf %37, %37 : vector<512x128xf32>
        %cst_44 = arith.constant dense<0.000000e+00> : vector<128xf32>
        %61 = vector.multi_reduction <add>, %60, %cst_44 [0] : vector<512x128xf32> to vector<128xf32>
        %62 = vector.shape_cast %61 : vector<128xf32> to vector<1x128xf32>
        %63 = arith.addf %59, %62 : vector<1x128xf32>
        %c0_45 = arith.constant 0 : index
        %c0_46 = arith.constant 0 : index
        %64 = vector.load %arg14[%c0_45, %c0_46] : memref<1x128xf32, #tpu.memory_space<vmem>>, vector<1x128xf32>
        tpu.vector_store %arg14[%c0_45, %c0_46], %63 {strides = array<i32>} : memref<1x128xf32, #tpu.memory_space<vmem>>, vector<1x128xf32>,
      } else {
      }
      %44 = arith.truncf %37 : vector<512x128xf32> to vector<512x128xbf16>
      %c0_27 = arith.constant 0 : index
      %c0_28 = arith.constant 0 : index
      %45 = vector.load %arg11[%c0_27, %c0_28] : memref<512x128xbf16, #tpu.memory_space<vmem>>, vector<512x128xbf16>
      tpu.vector_store %arg11[%c0_27, %c0_28], %44 {strides = array<i32>} : memref<512x128xbf16, #tpu.memory_space<vmem>>, vector<512x128xbf16>,
      %c1_i32_29 = arith.constant 1 : i32
      %c0_i32_30 = arith.constant 0 : i32
      %c0_i32_31 = arith.constant 0 : i32
      %46 = tpu.memref_slice %arg11[%c0_i32_30, %c0_i32_31] : memref<512x128xbf16, #tpu.memory_space<vmem>> -> memref<512x128xbf16, #tpu.memory_space<vmem>>
      %c0_i32_32 = arith.constant 0 : i32
      %47 = tpu.memref_slice %arg10[%1, %c0_i32_32] : memref<1024x128xbf16, #tpu.memory_space<any>> -> memref<512x128xbf16, #tpu.memory_space<any>>
      %48 = tpu.memref_slice %arg12[%c1_i32_29] : memref<2x!tpu.dma_semaphore, #tpu.memory_space<semaphore_mem>> -> memref<1x!tpu.dma_semaphore, #tpu.memory_space<semaphore_mem>>
      %49 = tpu.memref_squeeze %48 : memref<1x!tpu.dma_semaphore, #tpu.memory_space<semaphore_mem>> -> memref<!tpu.dma_semaphore, #tpu.memory_space<semaphore_mem>>
      tpu.enqueue_dma source(%46 : memref<512x128xbf16, #tpu.memory_space<vmem>>) target(%47 : memref<512x128xbf16, #tpu.memory_space<any>>) target_semaphore(%49 : memref<!tpu.dma_semaphore, #tpu.memory_space<semaphore_mem>>)
      %c1_i32_33 = arith.constant 1 : i32
      %c0_i32_34 = arith.constant 0 : i32
      %c0_i32_35 = arith.constant 0 : i32
      %50 = tpu.memref_slice %arg11[%c0_i32_34, %c0_i32_35] : memref<512x128xbf16, #tpu.memory_space<vmem>> -> memref<512x128xbf16, #tpu.memory_space<vmem>>
      %c0_i32_36 = arith.constant 0 : i32
      %51 = tpu.memref_slice %arg10[%1, %c0_i32_36] : memref<1024x128xbf16, #tpu.memory_space<any>> -> memref<512x128xbf16, #tpu.memory_space<any>>
      %52 = tpu.memref_slice %arg12[%c1_i32_33] : memref<2x!tpu.dma_semaphore, #tpu.memory_space<semaphore_mem>> -> memref<1x!tpu.dma_semaphore, #tpu.memory_space<semaphore_mem>>
      %53 = tpu.memref_squeeze %52 : memref<1x!tpu.dma_semaphore, #tpu.memory_space<semaphore_mem>> -> memref<!tpu.dma_semaphore, #tpu.memory_space<semaphore_mem>>
      tpu.wait_dma2 semaphore(%53 : memref<!tpu.dma_semaphore, #tpu.memory_space<semaphore_mem>>) src(%50 : memref<512x128xbf16, #tpu.memory_space<vmem>>) dst(%51 : memref<512x128xbf16, #tpu.memory_space<any>>)
    } else {
    }
    %c2_i32 = arith.constant 2 : i32
    %8 = arith.cmpi eq, %arg0, %c2_i32 : i32
    %9 = arith.extui %8 : i1 to i32
    %c0_i32_2 = arith.constant 0 : i32
    %10 = arith.cmpi ne, %9, %c0_i32_2 : i32
    scf.if %10 {
      %c0_i32_3 = arith.constant 0 : i32
      %11 = arith.cmpi eq, %arg1, %c0_i32_3 : i32
      %12 = arith.extui %11 : i1 to i32
      %c0_i32_4 = arith.constant 0 : i32
      %13 = arith.cmpi ne, %12, %c0_i32_4 : i32
      scf.if %13 {
        %c1 = arith.constant 1 : index
        %c0_24 = arith.constant 0 : index
        %37 = vector.load %arg6[%c1, %c0_24] : memref<3x128xf32, #tpu.memory_space<vmem>>, vector<1x128xf32>
        %c2 = arith.constant 2 : index
        %c0_25 = arith.constant 0 : index
        %38 = vector.load %arg6[%c2, %c0_25] : memref<3x128xf32, #tpu.memory_space<vmem>>, vector<1x128xf32>
        %c0_26 = arith.constant 0 : index
        %c0_27 = arith.constant 0 : index
        %39 = vector.load %arg13[%c0_26, %c0_27] : memref<1x128xf32, #tpu.memory_space<vmem>>, vector<1x128xf32>
        %cst_28 = arith.constant 0.00166666671 : f32
        %40 = vector.broadcast %cst_28 : f32 to vector<1x128xf32>
        %41 = arith.mulf %39, %40 : vector<1x128xf32>
        %c0_29 = arith.constant 0 : index
        %c0_30 = arith.constant 0 : index
        %42 = vector.load %arg14[%c0_29, %c0_30] : memref<1x128xf32, #tpu.memory_space<vmem>>, vector<1x128xf32>
        %cst_31 = arith.constant 0.00166666671 : f32
        %43 = vector.broadcast %cst_31 : f32 to vector<1x128xf32>
        %44 = arith.mulf %42, %43 : vector<1x128xf32>
        %45 = arith.mulf %41, %41 : vector<1x128xf32>
        %46 = arith.subf %44, %45 : vector<1x128xf32>
        %cst_32 = arith.constant 0.000000e+00 : f32
        %47 = vector.broadcast %cst_32 : f32 to vector<1x128xf32>
        %48 = arith.maximumf %46, %47 : vector<1x128xf32>
        %cst_33 = arith.constant 9.99999974E-6 : f32
        %49 = vector.broadcast %cst_33 : f32 to vector<1x128xf32>
        %50 = arith.addf %48, %49 : vector<1x128xf32>
        %51 = math.rsqrt %50 : vector<1x128xf32>
        %52 = arith.mulf %37, %51 : vector<1x128xf32>
        %c0_34 = arith.constant 0 : index
        %c0_35 = arith.constant 0 : index
        %53 = vector.load %arg15[%c0_34, %c0_35] : memref<1x128xf32, #tpu.memory_space<vmem>>, vector<1x128xf32>
        tpu.vector_store %arg15[%c0_34, %c0_35], %52 {strides = array<i32>} : memref<1x128xf32, #tpu.memory_space<vmem>>, vector<1x128xf32>,
        %54 = arith.mulf %41, %52 : vector<1x128xf32>
        %55 = arith.subf %38, %54 : vector<1x128xf32>
        %c0_36 = arith.constant 0 : index
        %c0_37 = arith.constant 0 : index
        %56 = vector.load %arg16[%c0_36, %c0_37] : memref<1x128xf32, #tpu.memory_space<vmem>>, vector<1x128xf32>
        tpu.vector_store %arg16[%c0_36, %c0_37], %55 {strides = array<i32>} : memref<1x128xf32, #tpu.memory_space<vmem>>, vector<1x128xf32>,
      } else {
      }
      %c0_i32_5 = arith.constant 0 : i32
      %c0_i32_6 = arith.constant 0 : i32
      %14 = tpu.memref_slice %arg10[%1, %c0_i32_6] : memref<1024x128xbf16, #tpu.memory_space<any>> -> memref<512x128xbf16, #tpu.memory_space<any>>
      %c0_i32_7 = arith.constant 0 : i32
      %c0_i32_8 = arith.constant 0 : i32
      %15 = tpu.memref_slice %arg11[%c0_i32_7, %c0_i32_8] : memref<512x128xbf16, #tpu.memory_space<vmem>> -> memref<512x128xbf16, #tpu.memory_space<vmem>>
      %16 = tpu.memref_slice %arg12[%c0_i32_5] : memref<2x!tpu.dma_semaphore, #tpu.memory_space<semaphore_mem>> -> memref<1x!tpu.dma_semaphore, #tpu.memory_space<semaphore_mem>>
      %17 = tpu.memref_squeeze %16 : memref<1x!tpu.dma_semaphore, #tpu.memory_space<semaphore_mem>> -> memref<!tpu.dma_semaphore, #tpu.memory_space<semaphore_mem>>
      tpu.enqueue_dma source(%14 : memref<512x128xbf16, #tpu.memory_space<any>>) target(%15 : memref<512x128xbf16, #tpu.memory_space<vmem>>) target_semaphore(%17 : memref<!tpu.dma_semaphore, #tpu.memory_space<semaphore_mem>>)
      %c0_i32_9 = arith.constant 0 : i32
      %c0_i32_10 = arith.constant 0 : i32
      %18 = tpu.memref_slice %arg10[%1, %c0_i32_10] : memref<1024x128xbf16, #tpu.memory_space<any>> -> memref<512x128xbf16, #tpu.memory_space<any>>
      %c0_i32_11 = arith.constant 0 : i32
      %c0_i32_12 = arith.constant 0 : i32
      %19 = tpu.memref_slice %arg11[%c0_i32_11, %c0_i32_12] : memref<512x128xbf16, #tpu.memory_space<vmem>> -> memref<512x128xbf16, #tpu.memory_space<vmem>>
      %20 = tpu.memref_slice %arg12[%c0_i32_9] : memref<2x!tpu.dma_semaphore, #tpu.memory_space<semaphore_mem>> -> memref<1x!tpu.dma_semaphore, #tpu.memory_space<semaphore_mem>>
      %21 = tpu.memref_squeeze %20 : memref<1x!tpu.dma_semaphore, #tpu.memory_space<semaphore_mem>> -> memref<!tpu.dma_semaphore, #tpu.memory_space<semaphore_mem>>
      tpu.wait_dma2 semaphore(%21 : memref<!tpu.dma_semaphore, #tpu.memory_space<semaphore_mem>>) src(%18 : memref<512x128xbf16, #tpu.memory_space<any>>) dst(%19 : memref<512x128xbf16, #tpu.memory_space<vmem>>)
      %c0 = arith.constant 0 : index
      %c0_13 = arith.constant 0 : index
      %22 = vector.load %arg11[%c0, %c0_13] : memref<512x128xbf16, #tpu.memory_space<vmem>>, vector<512x128xbf16>
      %23 = arith.extf %22 : vector<512x128xbf16> to vector<512x128xf32>
      %c0_14 = arith.constant 0 : index
      %c0_15 = arith.constant 0 : index
      %24 = vector.load %arg15[%c0_14, %c0_15] : memref<1x128xf32, #tpu.memory_space<vmem>>, vector<1x128xf32>
      %25 = vector.broadcast %24 : vector<1x128xf32> to vector<512x128xf32>
      %26 = arith.mulf %23, %25 : vector<512x128xf32>
      %c0_16 = arith.constant 0 : index
      %c0_17 = arith.constant 0 : index
      %27 = vector.load %arg16[%c0_16, %c0_17] : memref<1x128xf32, #tpu.memory_space<vmem>>, vector<1x128xf32>
      %28 = vector.broadcast %27 : vector<1x128xf32> to vector<512x128xf32>
      %29 = arith.addf %26, %28 : vector<512x128xf32>
      %30 = arith.truncf %29 : vector<512x128xf32> to vector<512x128xbf16>
      %c0_18 = arith.constant 0 : index
      %c0_19 = arith.constant 0 : index
      %31 = vector.load %arg7[%c0_18, %c0_19] : memref<128x128xbf16, #tpu.memory_space<vmem>>, vector<128x128xbf16>
      %cst = arith.constant dense<0.000000e+00> : vector<512x128xf32>
      %32 = tpu.matmul %30, %31, %cst {dimension_numbers = #tpu.dot_dimension_numbers<[1], [0], [0], [1], [0, 0, 1, 1], [], []>} : vector<512x128xbf16>, vector<128x128xbf16>, vector<512x128xf32> -> vector<512x128xf32>
      %c0_20 = arith.constant 0 : index
      %c0_21 = arith.constant 0 : index
      %33 = vector.load %arg8[%c0_20, %c0_21] : memref<1x128xf32, #tpu.memory_space<vmem>>, vector<1x128xf32>
      %34 = vector.broadcast %33 : vector<1x128xf32> to vector<512x128xf32>
      %35 = arith.addf %32, %34 : vector<512x128xf32>
      %c0_22 = arith.constant 0 : index
      %c0_23 = arith.constant 0 : index
      %36 = vector.load %arg9[%c0_22, %c0_23] : memref<512x128xf32, #tpu.memory_space<vmem>>, vector<512x128xf32>
      tpu.vector_store %arg9[%c0_22, %c0_23], %35 {strides = array<i32>} : memref<512x128xf32, #tpu.memory_space<vmem>>, vector<512x128xf32>,
    } else {
    }
    return
  }
  func.func @transform_0(%arg0: i32, %arg1: i32) -> (i32, i32) {
    %c0_i32 = arith.constant 0 : i32
    %0 = arith.cmpi eq, %arg0, %c0_i32 : i32
    %c1_i32 = arith.constant 1 : i32
    %1 = arith.select %0, %arg1, %c1_i32 : i32
    %c0_i32_0 = arith.constant 0 : i32
    %c0_i32_1 = arith.constant 0 : i32
    return %1, %c0_i32_0 : i32, i32
  }
  func.func @transform_1(%arg0: i32, %arg1: i32) -> (i32, i32) {
    %c0_i32 = arith.constant 0 : i32
    %c0_i32_0 = arith.constant 0 : i32
    %c0_i32_1 = arith.constant 0 : i32
    return %c0_i32, %c0_i32_0 : i32, i32
  }
  func.func @transform_2(%arg0: i32, %arg1: i32) -> (i32, i32) {
    %c0_i32 = arith.constant 0 : i32
    %c0_i32_0 = arith.constant 0 : i32
    %c0_i32_1 = arith.constant 0 : i32
    return %c0_i32, %c0_i32_0 : i32, i32
  }
  func.func @transform_3(%arg0: i32, %arg1: i32) -> (i32, i32) {
    %c0_i32 = arith.constant 0 : i32
    %c0_i32_0 = arith.constant 0 : i32
    %c0_i32_1 = arith.constant 0 : i32
    return %c0_i32, %c0_i32_0 : i32, i32
  }
  func.func @transform_4(%arg0: i32, %arg1: i32) -> (i32, i32) {
    %c0_i32 = arith.constant 0 : i32
    %c0_i32_0 = arith.constant 0 : i32
    %c0_i32_1 = arith.constant 0 : i32
    return %c0_i32, %c0_i32_0 : i32, i32
  }
  func.func @transform_5(%arg0: i32, %arg1: i32) -> (i32, i32) {
    %c0_i32 = arith.constant 0 : i32
    %c0_i32_0 = arith.constant 0 : i32
    %c0_i32_1 = arith.constant 0 : i32
    return %c0_i32, %c0_i32_0 : i32, i32
  }
  func.func @transform_6(%arg0: i32, %arg1: i32) -> (i32, i32) {
    %c0_i32 = arith.constant 0 : i32
    %c0_i32_0 = arith.constant 0 : i32
    %c0_i32_1 = arith.constant 0 : i32
    return %c0_i32, %c0_i32_0 : i32, i32
  }
  func.func @transform_7(%arg0: i32, %arg1: i32) -> (i32, i32) {
    %c2_i32 = arith.constant 2 : i32
    %0 = arith.cmpi eq, %arg0, %c2_i32 : i32
    %c0_i32 = arith.constant 0 : i32
    %1 = arith.select %0, %arg1, %c0_i32 : i32
    %c0_i32_0 = arith.constant 0 : i32
    %c0_i32_1 = arith.constant 0 : i32
    return %1, %c0_i32_0 : i32, i32
  }
}

</mosaic_0001>

<llo_original>
// kernel: tpu_custom_call.1
$region0: #{tpu_custom_call.1}
  #allocation0 [shape = 'u32[]', space=smem, size = 0x4, offset = 0x4, fixed_abs, tag = 'smem constant byte address 0x4 - core index']
  #allocation1 [shape = 'u32[144,128]{1,0:T(1,128)}', space=vmem, size = 0x12000, scoped, tag = 'internal scratch']
  #allocation2 [shape = 'bf16[512,128]{1,0:T(8,128)(2,1)}', space=vmem, size = 0x20000, scoped, tag = 'scratch operand']
  #allocation3 [shape = 's32[2]{0}', space=sflag, size = 0x8, scoped, tag = 'scratch operand']
  #allocation4 [shape = 'f32[1,128]{1,0:T(1,128)}', space=vmem, size = 0x200, scoped, tag = 'scratch operand']
  #allocation5 [shape = 'f32[1,128]{1,0:T(1,128)}', space=vmem, size = 0x200, scoped, tag = 'scratch operand']
  #allocation6 [shape = 'f32[1,128]{1,0:T(1,128)}', space=vmem, size = 0x200, scoped, tag = 'scratch operand']
  #allocation7 [shape = 'f32[1,128]{1,0:T(1,128)}', space=vmem, size = 0x200, scoped, tag = 'scratch operand']
  #allocation18 [shape = 's32[]', space=sflag, size = 0x4, offset = 0, fixed_abs, tag = 'sflag constant byte address 0x0 - dummy sync flag']
  #allocation19 [shape = 's32[]', space=sflag, size = 0x4, offset = 0, fixed_abs, tag = 'sflag constant byte address 0x0 - dummy sync flag']
  #allocation20 [shape = 'u32[]', space=smem, size = 0x4, offset = 0x44, fixed_abs, tag = 'smem constant byte address 0x44 - assertion arg 0']
  #allocation21 [shape = 'u32[]', space=smem, size = 0x4, offset = 0x48, fixed_abs, tag = 'smem constant byte address 0x48 - assertion arg 1']
  #allocation22 [shape = 's32[]', space=sflag, size = 0x4, offset = 0, fixed_abs, tag = 'sflag constant byte address 0x0 - dummy sync flag']
  #allocation23 [shape = 's32[]', space=sflag, size = 0x4, offset = 0, fixed_abs, tag = 'sflag constant byte address 0x0 - dummy sync flag']
  #allocation24 [shape = 's32[]', space=sflag, size = 0x4, offset = 0, fixed_abs, tag = 'sflag constant byte address 0x0 - dummy sync flag']
  #allocation25 [shape = 's32[]', space=sflag, size = 0x4, offset = 0, fixed_abs, tag = 'sflag constant byte address 0x0 - dummy sync flag']
  #allocation26 [shape = 's32[]', space=sflag, size = 0x4, offset = 0, fixed_abs, tag = 'sflag constant byte address 0x0 - dummy sync flag']
  #allocation27 [shape = 's32[]', space=sflag, size = 0x4, offset = 0, fixed_abs, tag = 'sflag constant byte address 0x0 - dummy sync flag']
  %s0 = inlined_call_operand.hbm [shape: bf16[1024,128], index: 0, kind: input, shape index: {}]
  %s1 = inlined_call_operand.hbm [shape: bf16[128,128], index: 1, kind: input, shape index: {}]
  %s2 = inlined_call_operand.hbm [shape: f32[3,128], index: 2, kind: input, shape index: {}]
  %s3 = inlined_call_operand.hbm [shape: bf16[128,128], index: 3, kind: input, shape index: {}]
  %s4 = inlined_call_operand.vmem [shape: f32[3,128], index: 4, kind: input, shape index: {}]
  %s5 = inlined_call_operand.hbm [shape: bf16[128,128], index: 5, kind: input, shape index: {}]
  %s6 = inlined_call_operand.vmem [shape: f32[1,128], index: 6, kind: input, shape index: {}]
  %s7 = inlined_call_operand.hbm [shape: f32[1024,128], index: 7, kind: output, shape index: {0}]
  %s8 = inlined_call_operand.hbm [shape: bf16[1024,128], index: 8, kind: output, shape index: {1}]
  %9 = xla_tuple %s7, %s8
  %s10 = sld [smem:[#allocation0]]
  $region137: #{tpu_custom_call.1} parent=0
    _
  %s12 = ssub.s32 1, %s10
  %s13 = scalar_select 0, %s12, %s10
  $region1: #{tpu_custom_call.1} parent=0
    #allocation8 [shape = 'u8[262144]{0}', space=vmem, size = 0x40000, scoped, tag = 'input window, operand 0']
    #allocation9 [shape = 's32[2]{0}', space=sflag, size = 0x8, scoped, tag = 'scoped memory for tpu_custom_call.1']
    #allocation10 [shape = 's32[2]{0}', space=sflag, size = 0x8, scoped, tag = 'scoped memory for tpu_custom_call.1']
    #allocation11 [shape = 'u8[32768]{0}', space=vmem, size = 0x8000, scoped, tag = 'input window, operand 1, single buffered']
    #allocation12 [shape = 's32[1]{0}', space=sflag, size = 0x4, scoped, tag = 'scoped memory for tpu_custom_call.1']
    #allocation13 [shape = 'u8[2048]{0}', space=vmem, size = 0x800, scoped, tag = 'input window, operand 2, single buffered']
    #allocation14 [shape = 'u8[32768]{0}', space=vmem, size = 0x8000, scoped, tag = 'input window, operand 3, single buffered']
    #allocation15 [shape = 's32[1]{0}', space=sflag, size = 0x4, scoped, tag = 'scoped memory for tpu_custom_call.1']
    #allocation16 [shape = 'u8[32768]{0}', space=vmem, size = 0x8000, scoped, tag = 'input window, operand 5, single buffered']
    #allocation17 [shape = 'u8[524288]{0}', space=vmem, size = 0x80000, scoped, tag = 'output window, operand 0']
    %14 = vsyncpa [#allocation9], 0
    %s15 = scalar_lea.sflag [#allocation9], 1
    %16 = vsyncpa %s15, 0
    %17 = vsyncpa [#allocation12], 0
    %18 = vsyncpa [#allocation15], 0
    %19 = vsyncpa [#allocation10], 0
    %s20 = scalar_lea.sflag [#allocation10], 1
    %21 = vsyncpa %s20, 0
    loop: start=0, step=1, limit=8
    $region2: #{tpu_custom_call.1} parent=1 // loop_pre_header
      _
    $region3: #{tpu_custom_call.1} parent=1 // loop_header
      %s23 = sphi 0, %s27
      %p24 = scmp.ge.s32.totalorder %s23, 8
      %s30 = sphi 0, %s42
      %s31 = sphi 0, %s38
      %s32 = sphi 0, %s30
      %s33 = sphi 0, %s31
      %s34 = sphi 0, %s32
      %s35 = sphi 0, %s33
      %s49 = sphi 0, %s51
      %s52 = sphi 0, %s49
      %s53 = sphi 0, %s52
      %s69 = sphi 0, %s53
      %s73 = sphi 0, %s73
      %s75 = sphi 0, %s73
      %s76 = sphi 0, %s75
      %s90 = sphi 0, %s76
      %s94 = sphi 0, %s94
      %s96 = sphi 0, %s94
      %s97 = sphi 0, %s96
      %s111 = sphi 0, %s97
      %s115 = sphi 0, %s115
      %s117 = sphi 0, %s115
      %s118 = sphi 0, %s117
      %s132 = sphi 0, %s118
      %s136 = sphi 0, %s136
      %s138 = sphi 0, %s136
      %s139 = sphi 0, %s138
      %s153 = sphi 0, %s139
      %s157 = sphi 0, %s157
      %s159 = sphi 0, %s157
      %s160 = sphi 0, %s159
      %s174 = sphi 0, %s160
      %s178 = sphi 0, %s178
      %s180 = sphi 0, %s178
      %s181 = sphi 0, %s180
      %s195 = sphi 0, %s181
      %s205 = sphi 0, %s207
      %s208 = sphi 0, %s205
      %s209 = sphi 0, %s208
      %s225 = sphi 0, %s209
    $region4: #{tpu_custom_call.1} parent=1 // loop_header_branch
      %26 = sbr.rel (%p24) target = $region8
    $region5: #{tpu_custom_call.1} parent=1 // loop_body
      %s28 = ssub.s32 %s23, 1
      %s29 = ssub.s32 %s23, 2
      %s36 = sadd.s32 1, %s31
      %p37 = scmp.ge.s32.totalorder %s36, 2
      %s38 = scalar_select %p37, 0, %s36
      %s39 = sadd.s32 1, %s30
      %s40 = scalar_select %p37, %s39, %s30
      %p41 = scmp.ge.s32.totalorder %s40, 3
      %s42 = scalar_select %p41, 0, %s40
      %p43 = scmp.eq.s32.totalorder %s30, 0
      %s44 = scalar_select %p43, %s31, 1
      %p45 = scmp.eq.s32.totalorder %s42, 0
      %s46 = scalar_select %p45, %s38, 1
      %s47 = ssub.s32 %s44, %s46
      %p48 = scmp.eq.s32.totalorder %s47, 0
      %s50 = sadd.s32 %s49, 1
      %s51 = scalar_select %p48, %s49, %s50
      %p54 = pneg %p48
      %p55 = scmp.eq.s32.totalorder %s23, 5
      %p56 = por %p54, %p55
      %p57 = scmp.ne.s32.totalorder %s49, %s52
      %p58 = scmp.eq.s32.totalorder %s23, 0
      %p59 = por %p57, %p58
      %p60 = scmp.ne.s32.totalorder %s49, %s52
      %p61 = scmp.eq.s32.totalorder %s28, 5
      %p62 = por %p60, %p61
      %p63 = scmp.ne.s32.totalorder %s52, %s53
      %p64 = scmp.eq.s32.totalorder %s28, 0
      %p65 = por %p63, %p64
      %p66 = scmp.ne.s32.totalorder %s52, %s53
      %p67 = scmp.eq.s32.totalorder %s29, 5
      %p68 = por %p66, %p67
      %p70 = scmp.ne.s32.totalorder %s53, %s69
      %p71 = scmp.eq.s32.totalorder %s29, 0
      %p72 = por %p70, %p71
      %s74 = sadd.s32 %s73, 1
      %p77 = scmp.eq.s32.totalorder %s23, 5
      %p78 = scmp.ne.s32.totalorder %s73, %s75
      %p79 = scmp.eq.s32.totalorder %s23, 0
      %p80 = por %p78, %p79
      %p81 = scmp.ne.s32.totalorder %s73, %s75
      %p82 = scmp.eq.s32.totalorder %s28, 5
      %p83 = por %p81, %p82
      %p84 = scmp.ne.s32.totalorder %s75, %s76
      %p85 = scmp.eq.s32.totalorder %s28, 0
      %p86 = por %p84, %p85
      %p87 = scmp.ne.s32.totalorder %s75, %s76
      %p88 = scmp.eq.s32.totalorder %s29, 5
      %p89 = por %p87, %p88
      %p91 = scmp.ne.s32.totalorder %s76, %s90
      %p92 = scmp.eq.s32.totalorder %s29, 0
      %p93 = por %p91, %p92
      %s95 = sadd.s32 %s94, 1
      %p98 = scmp.eq.s32.totalorder %s23, 5
      %p99 = scmp.ne.s32.totalorder %s94, %s96
      %p100 = scmp.eq.s32.totalorder %s23, 0
      %p101 = por %p99, %p100
      %p102 = scmp.ne.s32.totalorder %s94, %s96
      %p103 = scmp.eq.s32.totalorder %s28, 5
      %p104 = por %p102, %p103
      %p105 = scmp.ne.s32.totalorder %s96, %s97
      %p106 = scmp.eq.s32.totalorder %s28, 0
      %p107 = por %p105, %p106
      %p108 = scmp.ne.s32.totalorder %s96, %s97
      %p109 = scmp.eq.s32.totalorder %s29, 5
      %p110 = por %p108, %p109
      %p112 = scmp.ne.s32.totalorder %s97, %s111
      %p113 = scmp.eq.s32.totalorder %s29, 0
      %p114 = por %p112, %p113
      %s116 = sadd.s32 %s115, 1
      %p119 = scmp.eq.s32.totalorder %s23, 5
      %p120 = scmp.ne.s32.totalorder %s115, %s117
      %p121 = scmp.eq.s32.totalorder %s23, 0
      %p122 = por %p120, %p121
      %p123 = scmp.ne.s32.totalorder %s115, %s117
      %p124 = scmp.eq.s32.totalorder %s28, 5
      %p125 = por %p123, %p124
      %p126 = scmp.ne.s32.totalorder %s117, %s118
      %p127 = scmp.eq.s32.totalorder %s28, 0
      %p128 = por %p126, %p127
      %p129 = scmp.ne.s32.totalorder %s117, %s118
      %p130 = scmp.eq.s32.totalorder %s29, 5
      %p131 = por %p129, %p130
      %p133 = scmp.ne.s32.totalorder %s118, %s132
      %p134 = scmp.eq.s32.totalorder %s29, 0
      %p135 = por %p133, %p134
      %s137 = sadd.s32 %s136, 1
      %p140 = scmp.eq.s32.totalorder %s23, 5
      %p141 = scmp.ne.s32.totalorder %s136, %s138
      %p142 = scmp.eq.s32.totalorder %s23, 0
      %p143 = por %p141, %p142
      %p144 = scmp.ne.s32.totalorder %s136, %s138
      %p145 = scmp.eq.s32.totalorder %s28, 5
      %p146 = por %p144, %p145
      %p147 = scmp.ne.s32.totalorder %s138, %s139
      %p148 = scmp.eq.s32.totalorder %s28, 0
      %p149 = por %p147, %p148
      %p150 = scmp.ne.s32.totalorder %s138, %s139
      %p151 = scmp.eq.s32.totalorder %s29, 5
      %p152 = por %p150, %p151
      %p154 = scmp.ne.s32.totalorder %s139, %s153
      %p155 = scmp.eq.s32.totalorder %s29, 0
      %p156 = por %p154, %p155
      %s158 = sadd.s32 %s157, 1
      %p161 = scmp.eq.s32.totalorder %s23, 5
      %p162 = scmp.ne.s32.totalorder %s157, %s159
      %p163 = scmp.eq.s32.totalorder %s23, 0
      %p164 = por %p162, %p163
      %p165 = scmp.ne.s32.totalorder %s157, %s159
      %p166 = scmp.eq.s32.totalorder %s28, 5
      %p167 = por %p165, %p166
      %p168 = scmp.ne.s32.totalorder %s159, %s160
      %p169 = scmp.eq.s32.totalorder %s28, 0
      %p170 = por %p168, %p169
      %p171 = scmp.ne.s32.totalorder %s159, %s160
      %p172 = scmp.eq.s32.totalorder %s29, 5
      %p173 = por %p171, %p172
      %p175 = scmp.ne.s32.totalorder %s160, %s174
      %p176 = scmp.eq.s32.totalorder %s29, 0
      %p177 = por %p175, %p176
      %s179 = sadd.s32 %s178, 1
      %p182 = scmp.eq.s32.totalorder %s23, 5
      %p183 = scmp.ne.s32.totalorder %s178, %s180
      %p184 = scmp.eq.s32.totalorder %s23, 0
      %p185 = por %p183, %p184
      %p186 = scmp.ne.s32.totalorder %s178, %s180
      %p187 = scmp.eq.s32.totalorder %s28, 5
      %p188 = por %p186, %p187
      %p189 = scmp.ne.s32.totalorder %s180, %s181
      %p190 = scmp.eq.s32.totalorder %s28, 0
      %p191 = por %p189, %p190
      %p192 = scmp.ne.s32.totalorder %s180, %s181
      %p193 = scmp.eq.s32.totalorder %s29, 5
      %p194 = por %p192, %p193
      %p196 = scmp.ne.s32.totalorder %s181, %s195
      %p197 = scmp.eq.s32.totalorder %s29, 0
      %p198 = por %p196, %p197
      %p199 = scmp.eq.s32.totalorder %s30, 2
      %s200 = scalar_select %p199, %s31, 0
      %p201 = scmp.eq.s32.totalorder %s42, 2
      %s202 = scalar_select %p201, %s38, 0
      %s203 = ssub.s32 %s200, %s202
      %p204 = scmp.eq.s32.totalorder %s203, 0
      %s206 = sadd.s32 %s205, 1
      %s207 = scalar_select %p204, %s205, %s206
      %p210 = pneg %p204
      %p211 = scmp.eq.s32.totalorder %s23, 5
      %p212 = por %p210, %p211
      %p213 = scmp.ne.s32.totalorder %s205, %s208
      %p214 = scmp.eq.s32.totalorder %s23, 0
      %p215 = por %p213, %p214
      %p216 = scmp.ne.s32.totalorder %s205, %s208
      %p217 = scmp.eq.s32.totalorder %s28, 5
      %p218 = por %p216, %p217
      %p219 = scmp.ne.s32.totalorder %s208, %s209
      %p220 = scmp.eq.s32.totalorder %s28, 0
      %p221 = por %p219, %p220
      %p222 = scmp.ne.s32.totalorder %s208, %s209
      %p223 = scmp.eq.s32.totalorder %s29, 5
      %p224 = por %p222, %p223
      %p226 = scmp.ne.s32.totalorder %s209, %s225
      %p227 = scmp.eq.s32.totalorder %s29, 0
      %p228 = por %p226, %p227
      %p229 = scmp.le.s32.totalorder 1, %s23
      %p230 = scmp.lt.s32.totalorder %s23, 7
      %p231 = pnand %p229, %p230
      %p232 = pneg %p231
      // Predicated region
      $region9: #{tpu_custom_call.1} parent=5 // pred_check
        _
      $region10: #{tpu_custom_call.1} parent=5 // pred_check_branch
        %234 = sbr.rel (%p231) target = $region12
      $region11: #{tpu_custom_call.1} parent=5 // pred_region
        %s235 = ssub.s32 %s23, 1
        // Predicated region
        $region13: #{tpu_custom_call.1} parent=11 // pred_check
          %p236 = pneg %p86
        $region14: #{tpu_custom_call.1} parent=11 // pred_check_branch
          %238 = sbr.rel (%p236) target = $region16
        $region15: #{tpu_custom_call.1} parent=11 // pred_region
          %s240 = ssub.s32 1024, 1024
          %241 = vsyncadd [#allocation12], %s240
          %s242 = sshll.u32 [#allocation11], 4
          %s243 = int_to_ptr.vmem [resolvable:$true] %s242
          %248 = dma.hbm_to_vmem [thread:$0]  %s1, 1024, %s243, [#allocation12], 64, 64, 4
        $region16: #{tpu_custom_call.1} parent=11 // pred_fallthru
          _
        // Predicated region
        $region17: #{tpu_custom_call.1} parent=11 // pred_check
          %p249 = pneg %p107
        $region18: #{tpu_custom_call.1} parent=11 // pred_check_branch
          %251 = sbr.rel (%p249) target = $region20
        $region19: #{tpu_custom_call.1} parent=11 // pred_region
          %s253 = ssub.s32 64, 64
          %254 = vsyncadd [#allocation12], %s253
          %s256 = sshll.u32 [#allocation13], 4
          %s257 = int_to_ptr.vmem [resolvable:$true] %s256
          %259 = dma.hbm_to_vmem [thread:$0]  %s2, 64, %s257, [#allocation12]
        $region20: #{tpu_custom_call.1} parent=11 // pred_fallthru
          _
        // Predicated region
        $region21: #{tpu_custom_call.1} parent=11 // pred_check
          %p260 = pneg %p128
        $region22: #{tpu_custom_call.1} parent=11 // pred_check_branch
          %262 = sbr.rel (%p260) target = $region24
        $region23: #{tpu_custom_call.1} parent=11 // pred_region
          %s264 = ssub.s32 1024, 1024
          %265 = vsyncadd [#allocation15], %s264
          %s266 = sshll.u32 [#allocation14], 4
          %s267 = int_to_ptr.vmem [resolvable:$true] %s266
          %272 = dma.hbm_to_vmem [thread:$0]  %s3, 1024, %s267, [#allocation15], 64, 64, 4
        $region24: #{tpu_custom_call.1} parent=11 // pred_fallthru
          _
        // Predicated region
        $region25: #{tpu_custom_call.1} parent=11 // pred_check
          %p273 = pneg %p149
        $region26: #{tpu_custom_call.1} parent=11 // pred_check_branch
          %275 = sbr.rel (%p273) target = $region28
        $region27: #{tpu_custom_call.1} parent=11 // pred_region
          _
        $region28: #{tpu_custom_call.1} parent=11 // pred_fallthru
          _
        // Predicated region
        $region29: #{tpu_custom_call.1} parent=11 // pred_check
          %p276 = pneg %p170
        $region30: #{tpu_custom_call.1} parent=11 // pred_check_branch
          %278 = sbr.rel (%p276) target = $region32
        $region31: #{tpu_custom_call.1} parent=11 // pred_region
          %s280 = ssub.s32 1024, 1024
          %281 = vsyncadd [#allocation15], %s280
          %s282 = sshll.u32 [#allocation16], 4
          %s283 = int_to_ptr.vmem [resolvable:$true] %s282
          %288 = dma.hbm_to_vmem [thread:$0]  %s5, 1024, %s283, [#allocation15], 64, 64, 4
        $region32: #{tpu_custom_call.1} parent=11 // pred_fallthru
          _
        // Predicated region
        $region33: #{tpu_custom_call.1} parent=11 // pred_check
          %p289 = pneg %p191
        $region34: #{tpu_custom_call.1} parent=11 // pred_check_branch
          %291 = sbr.rel (%p289) target = $region36
        $region35: #{tpu_custom_call.1} parent=11 // pred_region
          _
        $region36: #{tpu_custom_call.1} parent=11 // pred_fallthru
          _
      $region12: #{tpu_custom_call.1} parent=5 // pred_fallthru
        _
      %p292 = scmp.lt.s32.totalorder %s23, 6
      // Predicated region
      $region37: #{tpu_custom_call.1} parent=5 // pred_check
        %p293 = pneg %p292
      $region38: #{tpu_custom_call.1} parent=5 // pred_check_branch
        %295 = sbr.rel (%p293) target = $region40
      $region39: #{tpu_custom_call.1} parent=5 // pred_region
        // Predicated region
        $region41: #{tpu_custom_call.1} parent=39 // pred_check
          %p296 = pneg %p59
        $region42: #{tpu_custom_call.1} parent=39 // pred_check_branch
          %298 = sbr.rel (%p296) target = $region44
        $region43: #{tpu_custom_call.1} parent=39 // pred_region
          %s299 = sand.u32 %s49, 1
          %s300 = scalar_lea.sflag [#allocation9], %s299
          %s301 = sand.u32 %s49, 1
          %s302 = smul.addr %s301, 256
          %s303 = scalar_lea.vmem [#allocation8], %s302
          %p304 = scmp.eq.s32.totalorder %s30, 0
          %s305 = scalar_select %p304, %s31, 1
          %s306 = smul.u32 64, %s305
          %s308 = ssub.s32 4096, 4096
          %309 = vsyncadd %s300, %s308
          %s310 = smul.addr %s306, 64
          %s311 = scalar_lea.hbm %s0, %s310
          %s312 = sshll.u32 %s303, 4
          %s313 = int_to_ptr.vmem [resolvable:$true] %s312
          %318 = dma.hbm_to_vmem [thread:$0]  %s311, 4096, %s313, %s300, 64, 64, 4
        $region44: #{tpu_custom_call.1} parent=39 // pred_fallthru
          _
      $region40: #{tpu_custom_call.1} parent=5 // pred_fallthru
        _
      %p319 = scmp.le.s32.totalorder 1, %s23
      %p320 = scmp.lt.s32.totalorder %s23, 7
      %p321 = pnand %p319, %p320
      %p322 = pneg %p321
      // Predicated region
      $region45: #{tpu_custom_call.1} parent=5 // pred_check
        _
      $region46: #{tpu_custom_call.1} parent=5 // pred_check_branch
        %324 = sbr.rel (%p321) target = $region48
      $region47: #{tpu_custom_call.1} parent=5 // pred_region
        %s325 = ssub.s32 %s23, 1
        %s326 = sand.u32 %s52, 1
        %s327 = scalar_lea.sflag [#allocation9], %s326
        %s328 = sand.u32 %s52, 1
        %s329 = smul.addr %s328, 256
        %s330 = scalar_lea.vmem [#allocation8], %s329
        // Predicated region
        $region49: #{tpu_custom_call.1} parent=47 // pred_check
          %p331 = pneg %p65
        $region50: #{tpu_custom_call.1} parent=47 // pred_check_branch
          %333 = sbr.rel (%p331) target = $region52
        $region51: #{tpu_custom_call.1} parent=47 // pred_region
          %334 = dma.done %s327, 4096
        $region52: #{tpu_custom_call.1} parent=47 // pred_fallthru
          _
        // Predicated region
        $region53: #{tpu_custom_call.1} parent=47 // pred_check
          %p335 = pneg %p86
        $region54: #{tpu_custom_call.1} parent=47 // pred_check_branch
          %337 = sbr.rel (%p335) target = $region56
        $region55: #{tpu_custom_call.1} parent=47 // pred_region
          %338 = dma.done [#allocation12], 1024
        $region56: #{tpu_custom_call.1} parent=47 // pred_fallthru
          _
        // Predicated region
        $region57: #{tpu_custom_call.1} parent=47 // pred_check
          %p339 = pneg %p107
        $region58: #{tpu_custom_call.1} parent=47 // pred_check_branch
          %341 = sbr.rel (%p339) target = $region60
        $region59: #{tpu_custom_call.1} parent=47 // pred_region
          %342 = dma.done [#allocation12], 64
        $region60: #{tpu_custom_call.1} parent=47 // pred_fallthru
          _
        // Predicated region
        $region61: #{tpu_custom_call.1} parent=47 // pred_check
          %p343 = pneg %p128
        $region62: #{tpu_custom_call.1} parent=47 // pred_check_branch
          %345 = sbr.rel (%p343) target = $region64
        $region63: #{tpu_custom_call.1} parent=47 // pred_region
          %346 = dma.done [#allocation15], 1024
        $region64: #{tpu_custom_call.1} parent=47 // pred_fallthru
          _
        // Predicated region
        $region65: #{tpu_custom_call.1} parent=47 // pred_check
          %p347 = pneg %p170
        $region66: #{tpu_custom_call.1} parent=47 // pred_check_branch
          %349 = sbr.rel (%p347) target = $region68
        $region67: #{tpu_custom_call.1} parent=47 // pred_region
          %350 = dma.done [#allocation15], 1024
        $region68: #{tpu_custom_call.1} parent=47 // pred_fallthru
          _
        %s351 = sand.u32 %s52, 1
        %s352 = scalar_lea.sflag [#allocation9], %s351
        %s353 = sand.u32 %s52, 1
        %s354 = smul.addr %s353, 256
        %s355 = scalar_lea.vmem [#allocation8], %s354
        %p356 = pneg %p65
        %p357 = pneg %p62
        %p358 = pneg %p86
        %p359 = pneg %p83
        %p360 = pneg %p107
        %p361 = pneg %p104
        %p362 = pneg %p128
        %p363 = pneg %p125
        %p364 = pneg %p149
        %p365 = pneg %p146
        %p366 = pneg %p170
        %p367 = pneg %p167
        %p368 = pneg %p191
        %p369 = pneg %p188
        %p370 = pneg %p221
        %p371 = pneg %p218
        %s372 = sand.u32 %s208, 1
        %s373 = scalar_lea.sflag [#allocation10], %s372
        %s374 = sand.u32 %s208, 1
        %s375 = smul.addr %s374, 512
        %s376 = scalar_lea.vmem [#allocation17], %s375
        %p377 = scmp.eq.s32.totalorder %s32, 0
        %s378 = scalar_select %p377, %s33, 1
        %s379 = smul.u32 64, %s378
        %p380 = scmp.eq.s32.totalorder %s32, 2
        %s381 = scalar_select %p380, %s33, 0
        %s382 = smul.u32 64, %s381
        %s384 = smul.u32 %s33, 512
        %p385 = scmp.eq.s32.totalorder %s32, 0
        // Predicated region
        $region69: #{tpu_custom_call.1} parent=47 // pred_check
          %p386 = pneg %p385
        $region70: #{tpu_custom_call.1} parent=47 // pred_check_branch
          %388 = sbr.rel (%p386) target = $region72
        $region71: #{tpu_custom_call.1} parent=47 // pred_region
          %p389 = scmp.eq.s32.totalorder %s33, 0
          // Predicated region
          $region73: #{tpu_custom_call.1} parent=71 // pred_check
            %p390 = pneg %p389
          $region74: #{tpu_custom_call.1} parent=71 // pred_check_branch
            %392 = sbr.rel (%p390) target = $region76
          $region75: #{tpu_custom_call.1} parent=71 // pred_region
            %393 = vst [vmem:[#allocation4] sm:$0x1] 0.0
            %394 = vst [vmem:[#allocation5] sm:$0x1] 0.0
          $region76: #{tpu_custom_call.1} parent=71 // pred_fallthru
            _
          %v395 = vld [vmem:[%s330] sm:$0xf]
          %v396 = vld [vmem:[%s330 + $0x4] sm:$0xf]
          %v397 = vld [vmem:[%s330 + $0x8] sm:$0xf]
          %v398 = vld [vmem:[%s330 + $0xc] sm:$0xf]
          %v399 = vld [vmem:[%s330 + $0x10] sm:$0xf]
          %v400 = vld [vmem:[%s330 + $0x14] sm:$0xf]
          %v401 = vld [vmem:[%s330 + $0x18] sm:$0xf]
          %v402 = vld [vmem:[%s330 + $0x1c] sm:$0xf]
          %v403 = vld [vmem:[%s330 + $0x20] sm:$0xf]
          %v404 = vld [vmem:[%s330 + $0x24] sm:$0xf]
          %v405 = vld [vmem:[%s330 + $0x28] sm:$0xf]
          %v406 = vld [vmem:[%s330 + $0x2c] sm:$0xf]
          %v407 = vld [vmem:[%s330 + $0x30] sm:$0xf]
          %v408 = vld [vmem:[%s330 + $0x34] sm:$0xf]
          %v409 = vld [vmem:[%s330 + $0x38] sm:$0xf]
          %v410 = vld [vmem:[%s330 + $0x3c] sm:$0xf]
          %v411 = vld [vmem:[%s330 + $0x40] sm:$0xf]
          %v412 = vld [vmem:[%s330 + $0x44] sm:$0xf]
          %v413 = vld [vmem:[%s330 + $0x48] sm:$0xf]
          %v414 = vld [vmem:[%s330 + $0x4c] sm:$0xf]
          %v415 = vld [vmem:[%s330 + $0x50] sm:$0xf]
          %v416 = vld [vmem:[%s330 + $0x54] sm:$0xf]
          %v417 = vld [vmem:[%s330 + $0x58] sm:$0xf]
          %v418 = vld [vmem:[%s330 + $0x5c] sm:$0xf]
          %v419 = vld [vmem:[%s330 + $0x60] sm:$0xf]
          %v420 = vld [vmem:[%s330 + $0x64] sm:$0xf]
          %v421 = vld [vmem:[%s330 + $0x68] sm:$0xf]
          %v422 = vld [vmem:[%s330 + $0x6c] sm:$0xf]
          %v423 = vld [vmem:[%s330 + $0x70] sm:$0xf]
          %v424 = vld [vmem:[%s330 + $0x74] sm:$0xf]
          %v425 = vld [vmem:[%s330 + $0x78] sm:$0xf]
          %v426 = vld [vmem:[%s330 + $0x7c] sm:$0xf]
          %v427 = vld [vmem:[%s330 + $0x80] sm:$0xf]
          %v428 = vld [vmem:[%s330 + $0x84] sm:$0xf]
          %v429 = vld [vmem:[%s330 + $0x88] sm:$0xf]
          %v430 = vld [vmem:[%s330 + $0x8c] sm:$0xf]
          %v431 = vld [vmem:[%s330 + $0x90] sm:$0xf]
          %v432 = vld [vmem:[%s330 + $0x94] sm:$0xf]
          %v433 = vld [vmem:[%s330 + $0x98] sm:$0xf]
          %v434 = vld [vmem:[%s330 + $0x9c] sm:$0xf]
          %v435 = vld [vmem:[%s330 + $0xa0] sm:$0xf]
          %v436 = vld [vmem:[%s330 + $0xa4] sm:$0xf]
          %v437 = vld [vmem:[%s330 + $0xa8] sm:$0xf]
          %v438 = vld [vmem:[%s330 + $0xac] sm:$0xf]
          %v439 = vld [vmem:[%s330 + $0xb0] sm:$0xf]
          %v440 = vld [vmem:[%s330 + $0xb4] sm:$0xf]
          %v441 = vld [vmem:[%s330 + $0xb8] sm:$0xf]
          %v442 = vld [vmem:[%s330 + $0xbc] sm:$0xf]
          %v443 = vld [vmem:[%s330 + $0xc0] sm:$0xf]
          %v444 = vld [vmem:[%s330 + $0xc4] sm:$0xf]
          %v445 = vld [vmem:[%s330 + $0xc8] sm:$0xf]
          %v446 = vld [vmem:[%s330 + $0xcc] sm:$0xf]
          %v447 = vld [vmem:[%s330 + $0xd0] sm:$0xf]
          %v448 = vld [vmem:[%s330 + $0xd4] sm:$0xf]
          %v449 = vld [vmem:[%s330 + $0xd8] sm:$0xf]
          %v450 = vld [vmem:[%s330 + $0xdc] sm:$0xf]
          %v451 = vld [vmem:[%s330 + $0xe0] sm:$0xf]
          %v452 = vld [vmem:[%s330 + $0xe4] sm:$0xf]
          %v453 = vld [vmem:[%s330 + $0xe8] sm:$0xf]
          %v454 = vld [vmem:[%s330 + $0xec] sm:$0xf]
          %v455 = vld [vmem:[%s330 + $0xf0] sm:$0xf]
          %v456 = vld [vmem:[%s330 + $0xf4] sm:$0xf]
          %v457 = vld [vmem:[%s330 + $0xf8] sm:$0xf]
          %v458 = vld [vmem:[%s330 + $0xfc] sm:$0xf]
          %v459 = vld [vmem:[#allocation11] sm:$0xf]
          %v460 = vld [vmem:[#allocation11 + $0x4] sm:$0xf]
          %v461 = vld [vmem:[#allocation11 + $0x8] sm:$0xf]
          %v462 = vld [vmem:[#allocation11 + $0xc] sm:$0xf]
          %v463 = vld [vmem:[#allocation11 + $0x10] sm:$0xf]
          %v464 = vld [vmem:[#allocation11 + $0x14] sm:$0xf]
          %v465 = vld [vmem:[#allocation11 + $0x18] sm:$0xf]
          %v466 = vld [vmem:[#allocation11 + $0x1c] sm:$0xf]
          %v467 = vld [vmem:[#allocation11 + $0x20] sm:$0xf]
          %v468 = vld [vmem:[#allocation11 + $0x24] sm:$0xf]
          %v469 = vld [vmem:[#allocation11 + $0x28] sm:$0xf]
          %v470 = vld [vmem:[#allocation11 + $0x2c] sm:$0xf]
          %v471 = vld [vmem:[#allocation11 + $0x30] sm:$0xf]
          %v472 = vld [vmem:[#allocation11 + $0x34] sm:$0xf]
          %v473 = vld [vmem:[#allocation11 + $0x38] sm:$0xf]
          %v474 = vld [vmem:[#allocation11 + $0x3c] sm:$0xf]
          %v475 = vld [vmem:[#allocation13] sm:$0x1]
          %v476 = vlaneseq
          %v477 = vshrl.u32 %v476, 7
          %v478 = vsub.s32 0, %v477
          %v479 = vrot.slane %v475, %v478
          %v544 = vunpack.c.l.b16 %v395
          %v545 = vunpack.c.l.b16 %v396
          %v546 = vunpack.c.l.b16 %v397
          %v547 = vunpack.c.l.b16 %v398
          %v548 = vunpack.c.l.b16 %v399
          %v549 = vunpack.c.l.b16 %v400
          %v550 = vunpack.c.l.b16 %v401
          %v551 = vunpack.c.l.b16 %v402
          %v552 = vunpack.c.l.b16 %v403
          %v553 = vunpack.c.l.b16 %v404
          %v554 = vunpack.c.l.b16 %v405
          %v555 = vunpack.c.l.b16 %v406
          %v556 = vunpack.c.l.b16 %v407
          %v557 = vunpack.c.l.b16 %v408
          %v558 = vunpack.c.l.b16 %v409
          %v559 = vunpack.c.l.b16 %v410
          %v560 = vunpack.c.l.b16 %v411
          %v561 = vunpack.c.l.b16 %v412
          %v562 = vunpack.c.l.b16 %v413
          %v563 = vunpack.c.l.b16 %v414
          %v564 = vunpack.c.l.b16 %v415
          %v565 = vunpack.c.l.b16 %v416
          %v566 = vunpack.c.l.b16 %v417
          %v567 = vunpack.c.l.b16 %v418
          %v568 = vunpack.c.l.b16 %v419
          %v569 = vunpack.c.l.b16 %v420
          %v570 = vunpack.c.l.b16 %v421
          %v571 = vunpack.c.l.b16 %v422
          %v572 = vunpack.c.l.b16 %v423
          %v573 = vunpack.c.l.b16 %v424
          %v574 = vunpack.c.l.b16 %v425
          %v575 = vunpack.c.l.b16 %v426
          %v576 = vunpack.c.l.b16 %v427
          %v577 = vunpack.c.l.b16 %v428
          %v578 = vunpack.c.l.b16 %v429
          %v579 = vunpack.c.l.b16 %v430
          %v580 = vunpack.c.l.b16 %v431
          %v581 = vunpack.c.l.b16 %v432
          %v582 = vunpack.c.l.b16 %v433
          %v583 = vunpack.c.l.b16 %v434
          %v584 = vunpack.c.l.b16 %v435
          %v585 = vunpack.c.l.b16 %v436
          %v586 = vunpack.c.l.b16 %v437
          %v587 = vunpack.c.l.b16 %v438
          %v588 = vunpack.c.l.b16 %v439
          %v589 = vunpack.c.l.b16 %v440
          %v590 = vunpack.c.l.b16 %v441
          %v591 = vunpack.c.l.b16 %v442
          %v592 = vunpack.c.l.b16 %v443
          %v593 = vunpack.c.l.b16 %v444
          %v594 = vunpack.c.l.b16 %v445
          %v595 = vunpack.c.l.b16 %v446
          %v596 = vunpack.c.l.b16 %v447
          %v597 = vunpack.c.l.b16 %v448
          %v598 = vunpack.c.l.b16 %v449
          %v599 = vunpack.c.l.b16 %v450
          %v600 = vunpack.c.l.b16 %v451
          %v601 = vunpack.c.l.b16 %v452
          %v602 = vunpack.c.l.b16 %v453
          %v603 = vunpack.c.l.b16 %v454
          %v604 = vunpack.c.l.b16 %v455
          %v605 = vunpack.c.l.b16 %v456
          %v606 = vunpack.c.l.b16 %v457
          %v607 = vunpack.c.l.b16 %v458
          %v608 = vpack.c.b16 %v545, %v544
          %v609 = vpack.c.b16 %v547, %v546
          %v610 = vpack.c.b16 %v549, %v548
          %v611 = vpack.c.b16 %v551, %v550
          %v612 = vpack.c.b16 %v553, %v552
          %v613 = vpack.c.b16 %v555, %v554
          %v614 = vpack.c.b16 %v557, %v556
          %v615 = vpack.c.b16 %v559, %v558
          %v616 = vpack.c.b16 %v561, %v560
          %v617 = vpack.c.b16 %v563, %v562
          %v618 = vpack.c.b16 %v565, %v564
          %v619 = vpack.c.b16 %v567, %v566
          %v620 = vpack.c.b16 %v569, %v568
          %v621 = vpack.c.b16 %v571, %v570
          %v622 = vpack.c.b16 %v573, %v572
          %v623 = vpack.c.b16 %v575, %v574
          %v624 = vpack.c.b16 %v577, %v576
          %v625 = vpack.c.b16 %v579, %v578
          %v626 = vpack.c.b16 %v581, %v580
          %v627 = vpack.c.b16 %v583, %v582
          %v628 = vpack.c.b16 %v585, %v584
          %v629 = vpack.c.b16 %v587, %v586
          %v630 = vpack.c.b16 %v589, %v588
          %v631 = vpack.c.b16 %v591, %v590
          %v632 = vpack.c.b16 %v593, %v592
          %v633 = vpack.c.b16 %v595, %v594
          %v634 = vpack.c.b16 %v597, %v596
          %v635 = vpack.c.b16 %v599, %v598
          %v636 = vpack.c.b16 %v601, %v600
          %v637 = vpack.c.b16 %v603, %v602
          %v638 = vpack.c.b16 %v605, %v604
          %v639 = vpack.c.b16 %v607, %v606
          %v688 = vunpack.c.l.b16 %v459
          %v689 = vunpack.c.l.b16 %v460
          %v690 = vunpack.c.l.b16 %v461
          %v691 = vunpack.c.l.b16 %v462
          %v692 = vunpack.c.l.b16 %v463
          %v693 = vunpack.c.l.b16 %v464
          %v694 = vunpack.c.l.b16 %v465
          %v695 = vunpack.c.l.b16 %v466
          %v696 = vunpack.c.l.b16 %v467
          %v697 = vunpack.c.l.b16 %v468
          %v698 = vunpack.c.l.b16 %v469
          %v699 = vunpack.c.l.b16 %v470
          %v700 = vunpack.c.l.b16 %v471
          %v701 = vunpack.c.l.b16 %v472
          %v702 = vunpack.c.l.b16 %v473
          %v703 = vunpack.c.l.b16 %v474
          %v704 = vpack.c.b16 %v689, %v688
          %v705 = vpack.c.b16 %v691, %v690
          %v706 = vpack.c.b16 %v693, %v692
          %v707 = vpack.c.b16 %v695, %v694
          %v708 = vpack.c.b16 %v697, %v696
          %v709 = vpack.c.b16 %v699, %v698
          %v710 = vpack.c.b16 %v701, %v700
          %v711 = vpack.c.b16 %v703, %v702
          %720 = vmatprep.subr.bf16.mxu0 0
          %721 = vmatpush1.bf16.msra.mxu0 %v711
          %722 = vmatprep.subr.bf16.mxu0 0
          %723 = vmatpush1.bf16.msra.mxu0 %v710
          %724 = vmatprep.subr.bf16.mxu0 0
          %725 = vmatpush1.bf16.msra.mxu0 %v709
          %726 = vmatprep.subr.bf16.mxu0 0
          %727 = vmatpush1.bf16.msra.mxu0 %v708
          %728 = vmatprep.subr.bf16.mxu0 0
          %729 = vmatpush1.bf16.msra.mxu0 %v707
          %730 = vmatprep.subr.bf16.mxu0 0
          %731 = vmatpush1.bf16.msra.mxu0 %v706
          %732 = vmatprep.subr.bf16.mxu0 0
          %733 = vmatpush1.bf16.msra.mxu0 %v705
          %734 = vmatprep.subr.bf16.mxu0 0
          %735 = vmatpush1.bf16.msra.mxu0 %v704
          %736 = vmatprep.subr.bf16.mxu0 0
          %737 = vmatpush2.bf16.msra.mxu0 0
          %738 = vmatprep.subr.bf16.mxu0 0
          %739 = vmatpush2.bf16.msra.mxu0 0
          %740 = vmatprep.subr.bf16.mxu0 0
          %741 = vmatpush2.bf16.msra.mxu0 0
          %742 = vmatprep.subr.bf16.mxu0 0
          %743 = vmatpush2.bf16.msra.mxu0 0
          %744 = vmatprep.subr.bf16.mxu0 0
          %745 = vmatpush2.bf16.msra.mxu0 0
          %746 = vmatprep.subr.bf16.mxu0 0
          %747 = vmatpush2.bf16.msra.mxu0 0
          %748 = vmatprep.subr.bf16.mxu0 0
          %749 = vmatpush2.bf16.msra.mxu0 0
          %750 = vmatprep.subr.bf16.mxu0 0
          %751 = vmatpush2.bf16.msra.mxu0 0
          %752 = vmatprep.mubr.bf16.mxu0 0
          %753 = vmatmul.mubr.bf16.gmra.mxu0 %v608
          %v754 = vpop.f32.mrf.mxu0
          %v755 = vadd.f32 %v479, %v754
          %v756 = vpop.f32.mrf.mxu0
          %v757 = vpop.f32.mrf.mxu0
          %v758 = vadd.f32 %v479, %v757
          %v759 = vpop.f32.mrf.mxu0
          %760 = vmatprep.mubr.bf16.mxu0 0
          %761 = vmatmul.mubr.bf16.gmra.mxu0 %v609
          %v762 = vpop.f32.mrf.mxu0
          %v763 = vadd.f32 %v479, %v762
          %v764 = vpop.f32.mrf.mxu0
          %v765 = vpop.f32.mrf.mxu0
          %v766 = vadd.f32 %v479, %v765
          %v767 = vpop.f32.mrf.mxu0
          %768 = vmatprep.mubr.bf16.mxu0 0
          %769 = vmatmul.mubr.bf16.gmra.mxu0 %v610
          %v770 = vpop.f32.mrf.mxu0
          %v771 = vadd.f32 %v479, %v770
          %v772 = vpop.f32.mrf.mxu0
          %v773 = vpop.f32.mrf.mxu0
          %v774 = vadd.f32 %v479, %v773
          %v775 = vpop.f32.mrf.mxu0
          %776 = vmatprep.mubr.bf16.mxu0 0
          %777 = vmatmul.mubr.bf16.gmra.mxu0 %v611
          %v778 = vpop.f32.mrf.mxu0
          %v779 = vadd.f32 %v479, %v778
          %v780 = vpop.f32.mrf.mxu0
          %v781 = vpop.f32.mrf.mxu0
          %v782 = vadd.f32 %v479, %v781
          %v783 = vpop.f32.mrf.mxu0
          %784 = vmatprep.mubr.bf16.mxu0 0
          %785 = vmatmul.mubr.bf16.gmra.mxu0 %v612
          %v786 = vpop.f32.mrf.mxu0
          %v787 = vadd.f32 %v479, %v786
          %v788 = vpop.f32.mrf.mxu0
          %v789 = vpop.f32.mrf.mxu0
          %v790 = vadd.f32 %v479, %v789
          %v791 = vpop.f32.mrf.mxu0
          %792 = vmatprep.mubr.bf16.mxu0 0
          %793 = vmatmul.mubr.bf16.gmra.mxu0 %v613
          %v794 = vpop.f32.mrf.mxu0
          %v795 = vadd.f32 %v479, %v794
          %v796 = vpop.f32.mrf.mxu0
          %v797 = vpop.f32.mrf.mxu0
          %v798 = vadd.f32 %v479, %v797
          %v799 = vpop.f32.mrf.mxu0
          %800 = vmatprep.mubr.bf16.mxu0 0
          %801 = vmatmul.mubr.bf16.gmra.mxu0 %v614
          %v802 = vpop.f32.mrf.mxu0
          %v803 = vadd.f32 %v479, %v802
          %v804 = vpop.f32.mrf.mxu0
          %v805 = vpop.f32.mrf.mxu0
          %v806 = vadd.f32 %v479, %v805
          %v807 = vpop.f32.mrf.mxu0
          %808 = vmatprep.mubr.bf16.mxu0 0
          %809 = vmatmul.mubr.bf16.gmra.mxu0 %v615
          %v810 = vpop.f32.mrf.mxu0
          %v811 = vadd.f32 %v479, %v810
          %v812 = vpop.f32.mrf.mxu0
          %v813 = vpop.f32.mrf.mxu0
          %v814 = vadd.f32 %v479, %v813
          %v815 = vpop.f32.mrf.mxu0
          %816 = vmatprep.mubr.bf16.mxu0 0
          %817 = vmatmul.mubr.bf16.gmra.mxu0 %v616
          %v818 = vpop.f32.mrf.mxu0
          %v819 = vadd.f32 %v479, %v818
          %v820 = vpop.f32.mrf.mxu0
          %v821 = vpop.f32.mrf.mxu0
          %v822 = vadd.f32 %v479, %v821
          %v823 = vpop.f32.mrf.mxu0
          %824 = vmatprep.mubr.bf16.mxu0 0
          %825 = vmatmul.mubr.bf16.gmra.mxu0 %v617
          %v826 = vpop.f32.mrf.mxu0
          %v827 = vadd.f32 %v479, %v826
          %v828 = vpop.f32.mrf.mxu0
          %v829 = vpop.f32.mrf.mxu0
          %v830 = vadd.f32 %v479, %v829
          %v831 = vpop.f32.mrf.mxu0
          %832 = vmatprep.mubr.bf16.mxu0 0
          %833 = vmatmul.mubr.bf16.gmra.mxu0 %v618
          %v834 = vpop.f32.mrf.mxu0
          %v835 = vadd.f32 %v479, %v834
          %v836 = vpop.f32.mrf.mxu0
          %v837 = vpop.f32.mrf.mxu0
          %v838 = vadd.f32 %v479, %v837
          %v839 = vpop.f32.mrf.mxu0
          %840 = vmatprep.mubr.bf16.mxu0 0
          %841 = vmatmul.mubr.bf16.gmra.mxu0 %v619
          %v842 = vpop.f32.mrf.mxu0
          %v843 = vadd.f32 %v479, %v842
          %v844 = vpop.f32.mrf.mxu0
          %v845 = vpop.f32.mrf.mxu0
          %v846 = vadd.f32 %v479, %v845
          %v847 = vpop.f32.mrf.mxu0
          %848 = vmatprep.mubr.bf16.mxu0 0
          %849 = vmatmul.mubr.bf16.gmra.mxu0 %v620
          %v850 = vpop.f32.mrf.mxu0
          %v851 = vadd.f32 %v479, %v850
          %v852 = vpop.f32.mrf.mxu0
          %v853 = vpop.f32.mrf.mxu0
          %v854 = vadd.f32 %v479, %v853
          %v855 = vpop.f32.mrf.mxu0
          %856 = vmatprep.mubr.bf16.mxu0 0
          %857 = vmatmul.mubr.bf16.gmra.mxu0 %v621
          %v858 = vpop.f32.mrf.mxu0
          %v859 = vadd.f32 %v479, %v858
          %v860 = vpop.f32.mrf.mxu0
          %v861 = vpop.f32.mrf.mxu0
          %v862 = vadd.f32 %v479, %v861
          %v863 = vpop.f32.mrf.mxu0
          %864 = vmatprep.mubr.bf16.mxu0 0
          %865 = vmatmul.mubr.bf16.gmra.mxu0 %v622
          %v866 = vpop.f32.mrf.mxu0
          %v867 = vadd.f32 %v479, %v866
          %v868 = vpop.f32.mrf.mxu0
          %v869 = vpop.f32.mrf.mxu0
          %v870 = vadd.f32 %v479, %v869
          %v871 = vpop.f32.mrf.mxu0
          %872 = vmatprep.mubr.bf16.mxu0 0
          %873 = vmatmul.mubr.bf16.gmra.mxu0 %v623
          %v874 = vpop.f32.mrf.mxu0
          %v875 = vadd.f32 %v479, %v874
          %v876 = vpop.f32.mrf.mxu0
          %v877 = vpop.f32.mrf.mxu0
          %v878 = vadd.f32 %v479, %v877
          %v879 = vpop.f32.mrf.mxu0
          %880 = vmatprep.mubr.bf16.mxu0 0
          %881 = vmatmul.mubr.bf16.gmra.mxu0 %v624
          %v882 = vpop.f32.mrf.mxu0
          %v883 = vadd.f32 %v479, %v882
          %v884 = vpop.f32.mrf.mxu0
          %v885 = vpop.f32.mrf.mxu0
          %v886 = vadd.f32 %v479, %v885
          %v887 = vpop.f32.mrf.mxu0
          %888 = vmatprep.mubr.bf16.mxu0 0
          %889 = vmatmul.mubr.bf16.gmra.mxu0 %v625
          %v890 = vpop.f32.mrf.mxu0
          %v891 = vadd.f32 %v479, %v890
          %v892 = vpop.f32.mrf.mxu0
          %v893 = vpop.f32.mrf.mxu0
          %v894 = vadd.f32 %v479, %v893
          %v895 = vpop.f32.mrf.mxu0
          %896 = vmatprep.mubr.bf16.mxu0 0
          %897 = vmatmul.mubr.bf16.gmra.mxu0 %v626
          %v898 = vpop.f32.mrf.mxu0
          %v899 = vadd.f32 %v479, %v898
          %v900 = vpop.f32.mrf.mxu0
          %v901 = vpop.f32.mrf.mxu0
          %v902 = vadd.f32 %v479, %v901
          %v903 = vpop.f32.mrf.mxu0
          %904 = vmatprep.mubr.bf16.mxu0 0
          %905 = vmatmul.mubr.bf16.gmra.mxu0 %v627
          %v906 = vpop.f32.mrf.mxu0
          %v907 = vadd.f32 %v479, %v906
          %v908 = vpop.f32.mrf.mxu0
          %v909 = vpop.f32.mrf.mxu0
          %v910 = vadd.f32 %v479, %v909
          %v911 = vpop.f32.mrf.mxu0
          %912 = vmatprep.mubr.bf16.mxu0 0
          %913 = vmatmul.mubr.bf16.gmra.mxu0 %v628
          %v914 = vpop.f32.mrf.mxu0
          %v915 = vadd.f32 %v479, %v914
          %v916 = vpop.f32.mrf.mxu0
          %v917 = vpop.f32.mrf.mxu0
          %v918 = vadd.f32 %v479, %v917
          %v919 = vpop.f32.mrf.mxu0
          %920 = vmatprep.mubr.bf16.mxu0 0
          %921 = vmatmul.mubr.bf16.gmra.mxu0 %v629
          %v922 = vpop.f32.mrf.mxu0
          %v923 = vadd.f32 %v479, %v922
          %v924 = vpop.f32.mrf.mxu0
          %v925 = vpop.f32.mrf.mxu0
          %v926 = vadd.f32 %v479, %v925
          %v927 = vpop.f32.mrf.mxu0
          %928 = vmatprep.mubr.bf16.mxu0 0
          %929 = vmatmul.mubr.bf16.gmra.mxu0 %v630
          %v930 = vpop.f32.mrf.mxu0
          %v931 = vadd.f32 %v479, %v930
          %v932 = vpop.f32.mrf.mxu0
          %v933 = vpop.f32.mrf.mxu0
          %v934 = vadd.f32 %v479, %v933
          %v935 = vpop.f32.mrf.mxu0
          %936 = vmatprep.mubr.bf16.mxu0 0
          %937 = vmatmul.mubr.bf16.gmra.mxu0 %v631
          %v938 = vpop.f32.mrf.mxu0
          %v939 = vadd.f32 %v479, %v938
          %v940 = vpop.f32.mrf.mxu0
          %v941 = vpop.f32.mrf.mxu0
          %v942 = vadd.f32 %v479, %v941
          %v943 = vpop.f32.mrf.mxu0
          %944 = vmatprep.mubr.bf16.mxu0 0
          %945 = vmatmul.mubr.bf16.gmra.mxu0 %v632
          %v946 = vpop.f32.mrf.mxu0
          %v947 = vadd.f32 %v479, %v946
          %v948 = vpop.f32.mrf.mxu0
          %v949 = vpop.f32.mrf.mxu0
          %v950 = vadd.f32 %v479, %v949
          %v951 = vpop.f32.mrf.mxu0
          %952 = vmatprep.mubr.bf16.mxu0 0
          %953 = vmatmul.mubr.bf16.gmra.mxu0 %v633
          %v954 = vpop.f32.mrf.mxu0
          %v955 = vadd.f32 %v479, %v954
          %v956 = vpop.f32.mrf.mxu0
          %v957 = vpop.f32.mrf.mxu0
          %v958 = vadd.f32 %v479, %v957
          %v959 = vpop.f32.mrf.mxu0
          %960 = vmatprep.mubr.bf16.mxu0 0
          %961 = vmatmul.mubr.bf16.gmra.mxu0 %v634
          %v962 = vpop.f32.mrf.mxu0
          %v963 = vadd.f32 %v479, %v962
          %v964 = vpop.f32.mrf.mxu0
          %v965 = vpop.f32.mrf.mxu0
          %v966 = vadd.f32 %v479, %v965
          %v967 = vpop.f32.mrf.mxu0
          %968 = vmatprep.mubr.bf16.mxu0 0
          %969 = vmatmul.mubr.bf16.gmra.mxu0 %v635
          %v970 = vpop.f32.mrf.mxu0
          %v971 = vadd.f32 %v479, %v970
          %v972 = vpop.f32.mrf.mxu0
          %v973 = vpop.f32.mrf.mxu0
          %v974 = vadd.f32 %v479, %v973
          %v975 = vpop.f32.mrf.mxu0
          %976 = vmatprep.mubr.bf16.mxu0 0
          %977 = vmatmul.mubr.bf16.gmra.mxu0 %v636
          %v978 = vpop.f32.mrf.mxu0
          %v979 = vadd.f32 %v479, %v978
          %v980 = vpop.f32.mrf.mxu0
          %v981 = vpop.f32.mrf.mxu0
          %v982 = vadd.f32 %v479, %v981
          %v983 = vpop.f32.mrf.mxu0
          %984 = vmatprep.mubr.bf16.mxu0 0
          %985 = vmatmul.mubr.bf16.gmra.mxu0 %v637
          %v986 = vpop.f32.mrf.mxu0
          %v987 = vadd.f32 %v479, %v986
          %v988 = vpop.f32.mrf.mxu0
          %v989 = vpop.f32.mrf.mxu0
          %v990 = vadd.f32 %v479, %v989
          %v991 = vpop.f32.mrf.mxu0
          %992 = vmatprep.mubr.bf16.mxu0 0
          %993 = vmatmul.mubr.bf16.gmra.mxu0 %v638
          %v994 = vpop.f32.mrf.mxu0
          %v995 = vadd.f32 %v479, %v994
          %v996 = vpop.f32.mrf.mxu0
          %v997 = vpop.f32.mrf.mxu0
          %v998 = vadd.f32 %v479, %v997
          %v999 = vpop.f32.mrf.mxu0
          %1000 = vmatprep.mubr.bf16.mxu0 0
          %1001 = vmatmul.mubr.bf16.gmra.mxu0 %v639
          %v1002 = vpop.f32.mrf.mxu0
          %v1003 = vadd.f32 %v479, %v1002
          %v1004 = vpop.f32.mrf.mxu0
          %v1005 = vpop.f32.mrf.mxu0
          %v1006 = vadd.f32 %v479, %v1005
          %v1007 = vpop.f32.mrf.mxu0
          %1008 = vdwg.mxu0
          %v1009 = vmax.f32 %v755, 0.0
          %v1010 = vmax.f32 %v758, 0.0
          %v1011 = vmax.f32 %v763, 0.0
          %v1012 = vmax.f32 %v766, 0.0
          %v1013 = vmax.f32 %v771, 0.0
          %v1014 = vmax.f32 %v774, 0.0
          %v1015 = vmax.f32 %v779, 0.0
          %v1016 = vmax.f32 %v782, 0.0
          %v1017 = vmax.f32 %v787, 0.0
          %v1018 = vmax.f32 %v790, 0.0
          %v1019 = vmax.f32 %v795, 0.0
          %v1020 = vmax.f32 %v798, 0.0
          %v1021 = vmax.f32 %v803, 0.0
          %v1022 = vmax.f32 %v806, 0.0
          %v1023 = vmax.f32 %v811, 0.0
          %v1024 = vmax.f32 %v814, 0.0
          %v1025 = vmax.f32 %v819, 0.0
          %v1026 = vmax.f32 %v822, 0.0
          %v1027 = vmax.f32 %v827, 0.0
          %v1028 = vmax.f32 %v830, 0.0
          %v1029 = vmax.f32 %v835, 0.0
          %v1030 = vmax.f32 %v838, 0.0
          %v1031 = vmax.f32 %v843, 0.0
          %v1032 = vmax.f32 %v846, 0.0
          %v1033 = vmax.f32 %v851, 0.0
          %v1034 = vmax.f32 %v854, 0.0
          %v1035 = vmax.f32 %v859, 0.0
          %v1036 = vmax.f32 %v862, 0.0
          %v1037 = vmax.f32 %v867, 0.0
          %v1038 = vmax.f32 %v870, 0.0
          %v1039 = vmax.f32 %v875, 0.0
          %v1040 = vmax.f32 %v878, 0.0
          %v1041 = vmax.f32 %v883, 0.0
          %v1042 = vmax.f32 %v886, 0.0
          %v1043 = vmax.f32 %v891, 0.0
          %v1044 = vmax.f32 %v894, 0.0
          %v1045 = vmax.f32 %v899, 0.0
          %v1046 = vmax.f32 %v902, 0.0
          %v1047 = vmax.f32 %v907, 0.0
          %v1048 = vmax.f32 %v910, 0.0
          %v1049 = vmax.f32 %v915, 0.0
          %v1050 = vmax.f32 %v918, 0.0
          %v1051 = vmax.f32 %v923, 0.0
          %v1052 = vmax.f32 %v926, 0.0
          %v1053 = vmax.f32 %v931, 0.0
          %v1054 = vmax.f32 %v934, 0.0
          %v1055 = vmax.f32 %v939, 0.0
          %v1056 = vmax.f32 %v942, 0.0
          %v1057 = vmax.f32 %v947, 0.0
          %v1058 = vmax.f32 %v950, 0.0
          %v1059 = vmax.f32 %v955, 0.0
          %v1060 = vmax.f32 %v958, 0.0
          %v1061 = vmax.f32 %v963, 0.0
          %v1062 = vmax.f32 %v966, 0.0
          %v1063 = vmax.f32 %v971, 0.0
          %v1064 = vmax.f32 %v974, 0.0
          %v1065 = vmax.f32 %v979, 0.0
          %v1066 = vmax.f32 %v982, 0.0
          %v1067 = vmax.f32 %v987, 0.0
          %v1068 = vmax.f32 %v990, 0.0
          %v1069 = vmax.f32 %v995, 0.0
          %v1070 = vmax.f32 %v998, 0.0
          %v1071 = vmax.f32 %v1003, 0.0
          %v1072 = vmax.f32 %v1006, 0.0
          %p1073 = scmp.eq.s32.totalorder %s33, 1
          // Predicated region
          $region77: #{tpu_custom_call.1} parent=71 // pred_check
            %p1074 = pneg %p1073
          $region78: #{tpu_custom_call.1} parent=71 // pred_check_branch
            %1076 = sbr.rel (%p1074) target = $region80
          $region79: #{tpu_custom_call.1} parent=71 // pred_region
            %v1077 = vlaneseq
            %v1078 = vshrl.u32 %v1077, 7
            %v1079 = vadd.s32 %v1078, 8
            %v1080 = vadd.s32 %v1078, 16
            %v1081 = vadd.s32 %v1078, 24
            %v1082 = vadd.s32 %v1078, 32
            %v1083 = vadd.s32 %v1078, 40
            %v1084 = vadd.s32 %v1078, 48
            %v1085 = vadd.s32 %v1078, 56
            %v1086 = vadd.s32 %v1078, 64
            %v1087 = vadd.s32 %v1078, 72
            %v1088 = vadd.s32 %v1078, 80
            %v1089 = vadd.s32 %v1078, 88
            %v1090 = vadd.s32 %v1078, 96
            %v1091 = vadd.s32 %v1078, 104
            %v1092 = vadd.s32 %v1078, 112
            %v1093 = vadd.s32 %v1078, 120
            %v1094 = vadd.s32 %v1078, 128
            %v1095 = vadd.s32 %v1078, 136
            %v1096 = vadd.s32 %v1078, 144
            %v1097 = vadd.s32 %v1078, 152
            %v1098 = vadd.s32 %v1078, 160
            %v1099 = vadd.s32 %v1078, 168
            %v1100 = vadd.s32 %v1078, 176
            %v1101 = vadd.s32 %v1078, 184
            %v1102 = vadd.s32 %v1078, 192
            %v1103 = vadd.s32 %v1078, 200
            %v1104 = vadd.s32 %v1078, 208
            %v1105 = vadd.s32 %v1078, 216
            %v1106 = vadd.s32 %v1078, 224
            %v1107 = vadd.s32 %v1078, 232
            %v1108 = vadd.s32 %v1078, 240
            %v1109 = vadd.s32 %v1078, 248
            %v1110 = vadd.s32 %v1078, 256
            %v1111 = vadd.s32 %v1078, 264
            %v1112 = vadd.s32 %v1078, 272
            %v1113 = vadd.s32 %v1078, 280
            %v1114 = vadd.s32 %v1078, 288
            %v1115 = vadd.s32 %v1078, 296
            %v1116 = vadd.s32 %v1078, 304
            %v1117 = vadd.s32 %v1078, 312
            %v1118 = vadd.s32 %v1078, 320
            %v1119 = vadd.s32 %v1078, 328
            %v1120 = vadd.s32 %v1078, 336
            %v1121 = vadd.s32 %v1078, 344
            %v1122 = vadd.s32 %v1078, 352
            %v1123 = vadd.s32 %v1078, 360
            %v1124 = vadd.s32 %v1078, 368
            %v1125 = vadd.s32 %v1078, 376
            %v1126 = vadd.s32 %v1078, 384
            %v1127 = vadd.s32 %v1078, 392
            %v1128 = vadd.s32 %v1078, 400
            %v1129 = vadd.s32 %v1078, 408
            %v1130 = vadd.s32 %v1078, 416
            %v1131 = vadd.s32 %v1078, 424
            %v1132 = vadd.s32 %v1078, 432
            %v1133 = vadd.s32 %v1078, 440
            %v1134 = vadd.s32 %v1078, 448
            %v1135 = vadd.s32 %v1078, 456
            %v1136 = vadd.s32 %v1078, 464
            %v1137 = vadd.s32 %v1078, 472
            %v1138 = vadd.s32 %v1078, 480
            %v1139 = vadd.s32 %v1078, 488
            %v1140 = vadd.s32 %v1078, 496
            %v1141 = vadd.s32 %v1078, 504
            %v1142 = vstv %s384
            %v1143 = vadd.s32 %v1078, %v1142
            %v1144 = vadd.s32 %v1079, %v1142
            %v1145 = vadd.s32 %v1080, %v1142
            %v1146 = vadd.s32 %v1081, %v1142
            %v1147 = vadd.s32 %v1082, %v1142
            %v1148 = vadd.s32 %v1083, %v1142
            %v1149 = vadd.s32 %v1084, %v1142
            %v1150 = vadd.s32 %v1085, %v1142
            %v1151 = vadd.s32 %v1086, %v1142
            %v1152 = vadd.s32 %v1087, %v1142
            %v1153 = vadd.s32 %v1088, %v1142
            %v1154 = vadd.s32 %v1089, %v1142
            %v1155 = vadd.s32 %v1090, %v1142
            %v1156 = vadd.s32 %v1091, %v1142
            %v1157 = vadd.s32 %v1092, %v1142
            %v1158 = vadd.s32 %v1093, %v1142
            %v1159 = vadd.s32 %v1094, %v1142
            %v1160 = vadd.s32 %v1095, %v1142
            %v1161 = vadd.s32 %v1096, %v1142
            %v1162 = vadd.s32 %v1097, %v1142
            %v1163 = vadd.s32 %v1098, %v1142
            %v1164 = vadd.s32 %v1099, %v1142
            %v1165 = vadd.s32 %v1100, %v1142
            %v1166 = vadd.s32 %v1101, %v1142
            %v1167 = vadd.s32 %v1102, %v1142
            %v1168 = vadd.s32 %v1103, %v1142
            %v1169 = vadd.s32 %v1104, %v1142
            %v1170 = vadd.s32 %v1105, %v1142
            %v1171 = vadd.s32 %v1106, %v1142
            %v1172 = vadd.s32 %v1107, %v1142
            %v1173 = vadd.s32 %v1108, %v1142
            %v1174 = vadd.s32 %v1109, %v1142
            %v1175 = vadd.s32 %v1110, %v1142
            %v1176 = vadd.s32 %v1111, %v1142
            %v1177 = vadd.s32 %v1112, %v1142
            %v1178 = vadd.s32 %v1113, %v1142
            %v1179 = vadd.s32 %v1114, %v1142
            %v1180 = vadd.s32 %v1115, %v1142
            %v1181 = vadd.s32 %v1116, %v1142
            %v1182 = vadd.s32 %v1117, %v1142
            %v1183 = vadd.s32 %v1118, %v1142
            %v1184 = vadd.s32 %v1119, %v1142
            %v1185 = vadd.s32 %v1120, %v1142
            %v1186 = vadd.s32 %v1121, %v1142
            %v1187 = vadd.s32 %v1122, %v1142
            %v1188 = vadd.s32 %v1123, %v1142
            %v1189 = vadd.s32 %v1124, %v1142
            %v1190 = vadd.s32 %v1125, %v1142
            %v1191 = vadd.s32 %v1126, %v1142
            %v1192 = vadd.s32 %v1127, %v1142
            %v1193 = vadd.s32 %v1128, %v1142
            %v1194 = vadd.s32 %v1129, %v1142
            %v1195 = vadd.s32 %v1130, %v1142
            %v1196 = vadd.s32 %v1131, %v1142
            %v1197 = vadd.s32 %v1132, %v1142
            %v1198 = vadd.s32 %v1133, %v1142
            %v1199 = vadd.s32 %v1134, %v1142
            %v1200 = vadd.s32 %v1135, %v1142
            %v1201 = vadd.s32 %v1136, %v1142
            %v1202 = vadd.s32 %v1137, %v1142
            %v1203 = vadd.s32 %v1138, %v1142
            %v1204 = vadd.s32 %v1139, %v1142
            %v1205 = vadd.s32 %v1140, %v1142
            %v1206 = vadd.s32 %v1141, %v1142
            %vm1207 = vcmp.lt.s32.totalorder %v1143, 600
            %vm1208 = vcmp.lt.s32.totalorder %v1144, 600
            %vm1209 = vcmp.lt.s32.totalorder %v1145, 600
            %vm1210 = vcmp.lt.s32.totalorder %v1146, 600
            %vm1211 = vcmp.lt.s32.totalorder %v1147, 600
            %vm1212 = vcmp.lt.s32.totalorder %v1148, 600
            %vm1213 = vcmp.lt.s32.totalorder %v1149, 600
            %vm1214 = vcmp.lt.s32.totalorder %v1150, 600
            %vm1215 = vcmp.lt.s32.totalorder %v1151, 600
            %vm1216 = vcmp.lt.s32.totalorder %v1152, 600
            %vm1217 = vcmp.lt.s32.totalorder %v1153, 600
            %vm1218 = vcmp.lt.s32.totalorder %v1154, 600
            %vm1219 = vcmp.lt.s32.totalorder %v1155, 600
            %vm1220 = vcmp.lt.s32.totalorder %v1156, 600
            %vm1221 = vcmp.lt.s32.totalorder %v1157, 600
            %vm1222 = vcmp.lt.s32.totalorder %v1158, 600
            %vm1223 = vcmp.lt.s32.totalorder %v1159, 600
            %vm1224 = vcmp.lt.s32.totalorder %v1160, 600
            %vm1225 = vcmp.lt.s32.totalorder %v1161, 600
            %vm1226 = vcmp.lt.s32.totalorder %v1162, 600
            %vm1227 = vcmp.lt.s32.totalorder %v1163, 600
            %vm1228 = vcmp.lt.s32.totalorder %v1164, 600
            %vm1229 = vcmp.lt.s32.totalorder %v1165, 600
            %vm1230 = vcmp.lt.s32.totalorder %v1166, 600
            %vm1231 = vcmp.lt.s32.totalorder %v1167, 600
            %vm1232 = vcmp.lt.s32.totalorder %v1168, 600
            %vm1233 = vcmp.lt.s32.totalorder %v1169, 600
            %vm1234 = vcmp.lt.s32.totalorder %v1170, 600
            %vm1235 = vcmp.lt.s32.totalorder %v1171, 600
            %vm1236 = vcmp.lt.s32.totalorder %v1172, 600
            %vm1237 = vcmp.lt.s32.totalorder %v1173, 600
            %vm1238 = vcmp.lt.s32.totalorder %v1174, 600
            %vm1239 = vcmp.lt.s32.totalorder %v1175, 600
            %vm1240 = vcmp.lt.s32.totalorder %v1176, 600
            %vm1241 = vcmp.lt.s32.totalorder %v1177, 600
            %vm1242 = vcmp.lt.s32.totalorder %v1178, 600
            %vm1243 = vcmp.lt.s32.totalorder %v1179, 600
            %vm1244 = vcmp.lt.s32.totalorder %v1180, 600
            %vm1245 = vcmp.lt.s32.totalorder %v1181, 600
            %vm1246 = vcmp.lt.s32.totalorder %v1182, 600
            %vm1247 = vcmp.lt.s32.totalorder %v1183, 600
            %vm1248 = vcmp.lt.s32.totalorder %v1184, 600
            %vm1249 = vcmp.lt.s32.totalorder %v1185, 600
            %vm1250 = vcmp.lt.s32.totalorder %v1186, 600
            %vm1251 = vcmp.lt.s32.totalorder %v1187, 600
            %vm1252 = vcmp.lt.s32.totalorder %v1188, 600
            %vm1253 = vcmp.lt.s32.totalorder %v1189, 600
            %vm1254 = vcmp.lt.s32.totalorder %v1190, 600
            %vm1255 = vcmp.lt.s32.totalorder %v1191, 600
            %vm1256 = vcmp.lt.s32.totalorder %v1192, 600
            %vm1257 = vcmp.lt.s32.totalorder %v1193, 600
            %vm1258 = vcmp.lt.s32.totalorder %v1194, 600
            %vm1259 = vcmp.lt.s32.totalorder %v1195, 600
            %vm1260 = vcmp.lt.s32.totalorder %v1196, 600
            %vm1261 = vcmp.lt.s32.totalorder %v1197, 600
            %vm1262 = vcmp.lt.s32.totalorder %v1198, 600
            %vm1263 = vcmp.lt.s32.totalorder %v1199, 600
            %vm1264 = vcmp.lt.s32.totalorder %v1200, 600
            %vm1265 = vcmp.lt.s32.totalorder %v1201, 600
            %vm1266 = vcmp.lt.s32.totalorder %v1202, 600
            %vm1267 = vcmp.lt.s32.totalorder %v1203, 600
            %vm1268 = vcmp.lt.s32.totalorder %v1204, 600
            %vm1269 = vcmp.lt.s32.totalorder %v1205, 600
            %vm1270 = vcmp.lt.s32.totalorder %v1206, 600
            %v1271 = vsel %vm1207, 1, 0
            %v1272 = vsel %vm1208, 1, 0
            %v1273 = vsel %vm1209, 1, 0
            %v1274 = vsel %vm1210, 1, 0
            %v1275 = vsel %vm1211, 1, 0
            %v1276 = vsel %vm1212, 1, 0
            %v1277 = vsel %vm1213, 1, 0
            %v1278 = vsel %vm1214, 1, 0
            %v1279 = vsel %vm1215, 1, 0
            %v1280 = vsel %vm1216, 1, 0
            %v1281 = vsel %vm1217, 1, 0
            %v1282 = vsel %vm1218, 1, 0
            %v1283 = vsel %vm1219, 1, 0
            %v1284 = vsel %vm1220, 1, 0
            %v1285 = vsel %vm1221, 1, 0
            %v1286 = vsel %vm1222, 1, 0
            %v1287 = vsel %vm1223, 1, 0
            %v1288 = vsel %vm1224, 1, 0
            %v1289 = vsel %vm1225, 1, 0
            %v1290 = vsel %vm1226, 1, 0
            %v1291 = vsel %vm1227, 1, 0
            %v1292 = vsel %vm1228, 1, 0
            %v1293 = vsel %vm1229, 1, 0
            %v1294 = vsel %vm1230, 1, 0
            %v1295 = vsel %vm1231, 1, 0
            %v1296 = vsel %vm1232, 1, 0
            %v1297 = vsel %vm1233, 1, 0
            %v1298 = vsel %vm1234, 1, 0
            %v1299 = vsel %vm1235, 1, 0
            %v1300 = vsel %vm1236, 1, 0
            %v1301 = vsel %vm1237, 1, 0
            %v1302 = vsel %vm1238, 1, 0
            %v1303 = vsel %vm1239, 1, 0
            %v1304 = vsel %vm1240, 1, 0
            %v1305 = vsel %vm1241, 1, 0
            %v1306 = vsel %vm1242, 1, 0
            %v1307 = vsel %vm1243, 1, 0
            %v1308 = vsel %vm1244, 1, 0
            %v1309 = vsel %vm1245, 1, 0
            %v1310 = vsel %vm1246, 1, 0
            %v1311 = vsel %vm1247, 1, 0
            %v1312 = vsel %vm1248, 1, 0
            %v1313 = vsel %vm1249, 1, 0
            %v1314 = vsel %vm1250, 1, 0
            %v1315 = vsel %vm1251, 1, 0
            %v1316 = vsel %vm1252, 1, 0
            %v1317 = vsel %vm1253, 1, 0
            %v1318 = vsel %vm1254, 1, 0
            %v1319 = vsel %vm1255, 1, 0
            %v1320 = vsel %vm1256, 1, 0
            %v1321 = vsel %vm1257, 1, 0
            %v1322 = vsel %vm1258, 1, 0
            %v1323 = vsel %vm1259, 1, 0
            %v1324 = vsel %vm1260, 1, 0
            %v1325 = vsel %vm1261, 1, 0
            %v1326 = vsel %vm1262, 1, 0
            %v1327 = vsel %vm1263, 1, 0
            %v1328 = vsel %vm1264, 1, 0
            %v1329 = vsel %vm1265, 1, 0
            %v1330 = vsel %vm1266, 1, 0
            %v1331 = vsel %vm1267, 1, 0
            %v1332 = vsel %vm1268, 1, 0
            %v1333 = vsel %vm1269, 1, 0
            %v1334 = vsel %vm1270, 1, 0
            %vm1335 = vcmp.eq.s32.totalorder %v1271, 1
            %vm1336 = vcmp.eq.s32.totalorder %v1272, 1
            %vm1337 = vcmp.eq.s32.totalorder %v1273, 1
            %vm1338 = vcmp.eq.s32.totalorder %v1274, 1
            %vm1339 = vcmp.eq.s32.totalorder %v1275, 1
            %vm1340 = vcmp.eq.s32.totalorder %v1276, 1
            %vm1341 = vcmp.eq.s32.totalorder %v1277, 1
            %vm1342 = vcmp.eq.s32.totalorder %v1278, 1
            %vm1343 = vcmp.eq.s32.totalorder %v1279, 1
            %vm1344 = vcmp.eq.s32.totalorder %v1280, 1
            %vm1345 = vcmp.eq.s32.totalorder %v1281, 1
            %vm1346 = vcmp.eq.s32.totalorder %v1282, 1
            %vm1347 = vcmp.eq.s32.totalorder %v1283, 1
            %vm1348 = vcmp.eq.s32.totalorder %v1284, 1
            %vm1349 = vcmp.eq.s32.totalorder %v1285, 1
            %vm1350 = vcmp.eq.s32.totalorder %v1286, 1
            %vm1351 = vcmp.eq.s32.totalorder %v1287, 1
            %vm1352 = vcmp.eq.s32.totalorder %v1288, 1
            %vm1353 = vcmp.eq.s32.totalorder %v1289, 1
            %vm1354 = vcmp.eq.s32.totalorder %v1290, 1
            %vm1355 = vcmp.eq.s32.totalorder %v1291, 1
            %vm1356 = vcmp.eq.s32.totalorder %v1292, 1
            %vm1357 = vcmp.eq.s32.totalorder %v1293, 1
            %vm1358 = vcmp.eq.s32.totalorder %v1294, 1
            %vm1359 = vcmp.eq.s32.totalorder %v1295, 1
            %vm1360 = vcmp.eq.s32.totalorder %v1296, 1
            %vm1361 = vcmp.eq.s32.totalorder %v1297, 1
            %vm1362 = vcmp.eq.s32.totalorder %v1298, 1
            %vm1363 = vcmp.eq.s32.totalorder %v1299, 1
            %vm1364 = vcmp.eq.s32.totalorder %v1300, 1
            %vm1365 = vcmp.eq.s32.totalorder %v1301, 1
            %vm1366 = vcmp.eq.s32.totalorder %v1302, 1
            %vm1367 = vcmp.eq.s32.totalorder %v1303, 1
            %vm1368 = vcmp.eq.s32.totalorder %v1304, 1
            %vm1369 = vcmp.eq.s32.totalorder %v1305, 1
            %vm1370 = vcmp.eq.s32.totalorder %v1306, 1
            %vm1371 = vcmp.eq.s32.totalorder %v1307, 1
            %vm1372 = vcmp.eq.s32.totalorder %v1308, 1
            %vm1373 = vcmp.eq.s32.totalorder %v1309, 1
            %vm1374 = vcmp.eq.s32.totalorder %v1310, 1
            %vm1375 = vcmp.eq.s32.totalorder %v1311, 1
            %vm1376 = vcmp.eq.s32.totalorder %v1312, 1
            %vm1377 = vcmp.eq.s32.totalorder %v1313, 1
            %vm1378 = vcmp.eq.s32.totalorder %v1314, 1
            %vm1379 = vcmp.eq.s32.totalorder %v1315, 1
            %vm1380 = vcmp.eq.s32.totalorder %v1316, 1
            %vm1381 = vcmp.eq.s32.totalorder %v1317, 1
            %vm1382 = vcmp.eq.s32.totalorder %v1318, 1
            %vm1383 = vcmp.eq.s32.totalorder %v1319, 1
            %vm1384 = vcmp.eq.s32.totalorder %v1320, 1
            %vm1385 = vcmp.eq.s32.totalorder %v1321, 1
            %vm1386 = vcmp.eq.s32.totalorder %v1322, 1
            %vm1387 = vcmp.eq.s32.totalorder %v1323, 1
            %vm1388 = vcmp.eq.s32.totalorder %v1324, 1
            %vm1389 = vcmp.eq.s32.totalorder %v1325, 1
            %vm1390 = vcmp.eq.s32.totalorder %v1326, 1
            %vm1391 = vcmp.eq.s32.totalorder %v1327, 1
            %vm1392 = vcmp.eq.s32.totalorder %v1328, 1
            %vm1393 = vcmp.eq.s32.totalorder %v1329, 1
            %vm1394 = vcmp.eq.s32.totalorder %v1330, 1
            %vm1395 = vcmp.eq.s32.totalorder %v1331, 1
            %vm1396 = vcmp.eq.s32.totalorder %v1332, 1
            %vm1397 = vcmp.eq.s32.totalorder %v1333, 1
            %vm1398 = vcmp.eq.s32.totalorder %v1334, 1
            %v1399 = vsel %vm1335, %v1009, 0.0
            %v1400 = vsel %vm1336, %v1010, 0.0
            %v1401 = vsel %vm1337, %v1011, 0.0
            %v1402 = vsel %vm1338, %v1012, 0.0
            %v1403 = vsel %vm1339, %v1013, 0.0
            %v1404 = vsel %vm1340, %v1014, 0.0
            %v1405 = vsel %vm1341, %v1015, 0.0
            %v1406 = vsel %vm1342, %v1016, 0.0
            %v1407 = vsel %vm1343, %v1017, 0.0
            %v1408 = vsel %vm1344, %v1018, 0.0
            %v1409 = vsel %vm1345, %v1019, 0.0
            %v1410 = vsel %vm1346, %v1020, 0.0
            %v1411 = vsel %vm1347, %v1021, 0.0
            %v1412 = vsel %vm1348, %v1022, 0.0
            %v1413 = vsel %vm1349, %v1023, 0.0
            %v1414 = vsel %vm1350, %v1024, 0.0
            %v1415 = vsel %vm1351, %v1025, 0.0
            %v1416 = vsel %vm1352, %v1026, 0.0
            %v1417 = vsel %vm1353, %v1027, 0.0
            %v1418 = vsel %vm1354, %v1028, 0.0
            %v1419 = vsel %vm1355, %v1029, 0.0
            %v1420 = vsel %vm1356, %v1030, 0.0
            %v1421 = vsel %vm1357, %v1031, 0.0
            %v1422 = vsel %vm1358, %v1032, 0.0
            %v1423 = vsel %vm1359, %v1033, 0.0
            %v1424 = vsel %vm1360, %v1034, 0.0
            %v1425 = vsel %vm1361, %v1035, 0.0
            %v1426 = vsel %vm1362, %v1036, 0.0
            %v1427 = vsel %vm1363, %v1037, 0.0
            %v1428 = vsel %vm1364, %v1038, 0.0
            %v1429 = vsel %vm1365, %v1039, 0.0
            %v1430 = vsel %vm1366, %v1040, 0.0
            %v1431 = vsel %vm1367, %v1041, 0.0
            %v1432 = vsel %vm1368, %v1042, 0.0
            %v1433 = vsel %vm1369, %v1043, 0.0
            %v1434 = vsel %vm1370, %v1044, 0.0
            %v1435 = vsel %vm1371, %v1045, 0.0
            %v1436 = vsel %vm1372, %v1046, 0.0
            %v1437 = vsel %vm1373, %v1047, 0.0
            %v1438 = vsel %vm1374, %v1048, 0.0
            %v1439 = vsel %vm1375, %v1049, 0.0
            %v1440 = vsel %vm1376, %v1050, 0.0
            %v1441 = vsel %vm1377, %v1051, 0.0
            %v1442 = vsel %vm1378, %v1052, 0.0
            %v1443 = vsel %vm1379, %v1053, 0.0
            %v1444 = vsel %vm1380, %v1054, 0.0
            %v1445 = vsel %vm1381, %v1055, 0.0
            %v1446 = vsel %vm1382, %v1056, 0.0
            %v1447 = vsel %vm1383, %v1057, 0.0
            %v1448 = vsel %vm1384, %v1058, 0.0
            %v1449 = vsel %vm1385, %v1059, 0.0
            %v1450 = vsel %vm1386, %v1060, 0.0
            %v1451 = vsel %vm1387, %v1061, 0.0
            %v1452 = vsel %vm1388, %v1062, 0.0
            %v1453 = vsel %vm1389, %v1063, 0.0
            %v1454 = vsel %vm1390, %v1064, 0.0
            %v1455 = vsel %vm1391, %v1065, 0.0
            %v1456 = vsel %vm1392, %v1066, 0.0
            %v1457 = vsel %vm1393, %v1067, 0.0
            %v1458 = vsel %vm1394, %v1068, 0.0
            %v1459 = vsel %vm1395, %v1069, 0.0
            %v1460 = vsel %vm1396, %v1070, 0.0
            %v1461 = vsel %vm1397, %v1071, 0.0
            %v1462 = vsel %vm1398, %v1072, 0.0
            %v1463 = vld [vmem:[#allocation4] sm:$0x1]
            %v1464 = vadd.f32 %v1399, %v1400
            %v1465 = vadd.f32 %v1464, %v1401
            %v1466 = vadd.f32 %v1465, %v1402
            %v1467 = vadd.f32 %v1466, %v1403
            %v1468 = vadd.f32 %v1467, %v1404
            %v1469 = vadd.f32 %v1468, %v1405
            %v1470 = vadd.f32 %v1469, %v1406
            %v1471 = vadd.f32 %v1470, %v1407
            %v1472 = vadd.f32 %v1471, %v1408
            %v1473 = vadd.f32 %v1472, %v1409
            %v1474 = vadd.f32 %v1473, %v1410
            %v1475 = vadd.f32 %v1474, %v1411
            %v1476 = vadd.f32 %v1475, %v1412
            %v1477 = vadd.f32 %v1476, %v1413
            %v1478 = vadd.f32 %v1477, %v1414
            %v1479 = vadd.f32 %v1478, %v1415
            %v1480 = vadd.f32 %v1479, %v1416
            %v1481 = vadd.f32 %v1480, %v1417
            %v1482 = vadd.f32 %v1481, %v1418
            %v1483 = vadd.f32 %v1482, %v1419
            %v1484 = vadd.f32 %v1483, %v1420
            %v1485 = vadd.f32 %v1484, %v1421
            %v1486 = vadd.f32 %v1485, %v1422
            %v1487 = vadd.f32 %v1486, %v1423
            %v1488 = vadd.f32 %v1487, %v1424
            %v1489 = vadd.f32 %v1488, %v1425
            %v1490 = vadd.f32 %v1489, %v1426
            %v1491 = vadd.f32 %v1490, %v1427
            %v1492 = vadd.f32 %v1491, %v1428
            %v1493 = vadd.f32 %v1492, %v1429
            %v1494 = vadd.f32 %v1493, %v1430
            %v1495 = vadd.f32 %v1494, %v1431
            %v1496 = vadd.f32 %v1495, %v1432
            %v1497 = vadd.f32 %v1496, %v1433
            %v1498 = vadd.f32 %v1497, %v1434
            %v1499 = vadd.f32 %v1498, %v1435
            %v1500 = vadd.f32 %v1499, %v1436
            %v1501 = vadd.f32 %v1500, %v1437
            %v1502 = vadd.f32 %v1501, %v1438
            %v1503 = vadd.f32 %v1502, %v1439
            %v1504 = vadd.f32 %v1503, %v1440
            %v1505 = vadd.f32 %v1504, %v1441
            %v1506 = vadd.f32 %v1505, %v1442
            %v1507 = vadd.f32 %v1506, %v1443
            %v1508 = vadd.f32 %v1507, %v1444
            %v1509 = vadd.f32 %v1508, %v1445
            %v1510 = vadd.f32 %v1509, %v1446
            %v1511 = vadd.f32 %v1510, %v1447
            %v1512 = vadd.f32 %v1511, %v1448
            %v1513 = vadd.f32 %v1512, %v1449
            %v1514 = vadd.f32 %v1513, %v1450
            %v1515 = vadd.f32 %v1514, %v1451
            %v1516 = vadd.f32 %v1515, %v1452
            %v1517 = vadd.f32 %v1516, %v1453
            %v1518 = vadd.f32 %v1517, %v1454
            %v1519 = vadd.f32 %v1518, %v1455
            %v1520 = vadd.f32 %v1519, %v1456
            %v1521 = vadd.f32 %v1520, %v1457
            %v1522 = vadd.f32 %v1521, %v1458
            %v1523 = vadd.f32 %v1522, %v1459
            %v1524 = vadd.f32 %v1523, %v1460
            %v1525 = vadd.f32 %v1524, %v1461
            %v1526 = vadd.f32 %v1525, %v1462
            %v1527 = vrot.slane %v1526, 4
            %v1528 = vadd.f32 %v1526, %v1527
            %v1529 = vrot.slane %v1528, 2
            %v1530 = vadd.f32 %v1528, %v1529
            %v1531 = vrot.slane %v1530, 1
            %v1532 = vadd.f32 %v1530, %v1531
            %v1533 = vadd.f32 %v1463, %v1532
            %1534 = vst [vmem:[#allocation4] sm:$0x1] %v1533
            %v1535 = vld [vmem:[#allocation5] sm:$0x1]
            %v1536 = vmul.f32 %v1399, %v1399
            %v1537 = vmul.f32 %v1400, %v1400
            %v1538 = vmul.f32 %v1401, %v1401
            %v1539 = vmul.f32 %v1402, %v1402
            %v1540 = vmul.f32 %v1403, %v1403
            %v1541 = vmul.f32 %v1404, %v1404
            %v1542 = vmul.f32 %v1405, %v1405
            %v1543 = vmul.f32 %v1406, %v1406
            %v1544 = vmul.f32 %v1407, %v1407
            %v1545 = vmul.f32 %v1408, %v1408
            %v1546 = vmul.f32 %v1409, %v1409
            %v1547 = vmul.f32 %v1410, %v1410
            %v1548 = vmul.f32 %v1411, %v1411
            %v1549 = vmul.f32 %v1412, %v1412
            %v1550 = vmul.f32 %v1413, %v1413
            %v1551 = vmul.f32 %v1414, %v1414
            %v1552 = vmul.f32 %v1415, %v1415
            %v1553 = vmul.f32 %v1416, %v1416
            %v1554 = vmul.f32 %v1417, %v1417
            %v1555 = vmul.f32 %v1418, %v1418
            %v1556 = vmul.f32 %v1419, %v1419
            %v1557 = vmul.f32 %v1420, %v1420
            %v1558 = vmul.f32 %v1421, %v1421
            %v1559 = vmul.f32 %v1422, %v1422
            %v1560 = vmul.f32 %v1423, %v1423
            %v1561 = vmul.f32 %v1424, %v1424
            %v1562 = vmul.f32 %v1425, %v1425
            %v1563 = vmul.f32 %v1426, %v1426
            %v1564 = vmul.f32 %v1427, %v1427
            %v1565 = vmul.f32 %v1428, %v1428
            %v1566 = vmul.f32 %v1429, %v1429
            %v1567 = vmul.f32 %v1430, %v1430
            %v1568 = vmul.f32 %v1431, %v1431
            %v1569 = vmul.f32 %v1432, %v1432
            %v1570 = vmul.f32 %v1433, %v1433
            %v1571 = vmul.f32 %v1434, %v1434
            %v1572 = vmul.f32 %v1435, %v1435
            %v1573 = vmul.f32 %v1436, %v1436
            %v1574 = vmul.f32 %v1437, %v1437
            %v1575 = vmul.f32 %v1438, %v1438
            %v1576 = vmul.f32 %v1439, %v1439
            %v1577 = vmul.f32 %v1440, %v1440
            %v1578 = vmul.f32 %v1441, %v1441
            %v1579 = vmul.f32 %v1442, %v1442
            %v1580 = vmul.f32 %v1443, %v1443
            %v1581 = vmul.f32 %v1444, %v1444
            %v1582 = vmul.f32 %v1445, %v1445
            %v1583 = vmul.f32 %v1446, %v1446
            %v1584 = vmul.f32 %v1447, %v1447
            %v1585 = vmul.f32 %v1448, %v1448
            %v1586 = vmul.f32 %v1449, %v1449
            %v1587 = vmul.f32 %v1450, %v1450
            %v1588 = vmul.f32 %v1451, %v1451
            %v1589 = vmul.f32 %v1452, %v1452
            %v1590 = vmul.f32 %v1453, %v1453
            %v1591 = vmul.f32 %v1454, %v1454
            %v1592 = vmul.f32 %v1455, %v1455
            %v1593 = vmul.f32 %v1456, %v1456
            %v1594 = vmul.f32 %v1457, %v1457
            %v1595 = vmul.f32 %v1458, %v1458
            %v1596 = vmul.f32 %v1459, %v1459
            %v1597 = vmul.f32 %v1460, %v1460
            %v1598 = vmul.f32 %v1461, %v1461
            %v1599 = vmul.f32 %v1462, %v1462
            %v1600 = vadd.f32 %v1536, %v1537
            %v1601 = vadd.f32 %v1600, %v1538
            %v1602 = vadd.f32 %v1601, %v1539
            %v1603 = vadd.f32 %v1602, %v1540
            %v1604 = vadd.f32 %v1603, %v1541
            %v1605 = vadd.f32 %v1604, %v1542
            %v1606 = vadd.f32 %v1605, %v1543
            %v1607 = vadd.f32 %v1606, %v1544
            %v1608 = vadd.f32 %v1607, %v1545
            %v1609 = vadd.f32 %v1608, %v1546
            %v1610 = vadd.f32 %v1609, %v1547
            %v1611 = vadd.f32 %v1610, %v1548
            %v1612 = vadd.f32 %v1611, %v1549
            %v1613 = vadd.f32 %v1612, %v1550
            %v1614 = vadd.f32 %v1613, %v1551
            %v1615 = vadd.f32 %v1614, %v1552
            %v1616 = vadd.f32 %v1615, %v1553
            %v1617 = vadd.f32 %v1616, %v1554
            %v1618 = vadd.f32 %v1617, %v1555
            %v1619 = vadd.f32 %v1618, %v1556
            %v1620 = vadd.f32 %v1619, %v1557
            %v1621 = vadd.f32 %v1620, %v1558
            %v1622 = vadd.f32 %v1621, %v1559
            %v1623 = vadd.f32 %v1622, %v1560
            %v1624 = vadd.f32 %v1623, %v1561
            %v1625 = vadd.f32 %v1624, %v1562
            %v1626 = vadd.f32 %v1625, %v1563
            %v1627 = vadd.f32 %v1626, %v1564
            %v1628 = vadd.f32 %v1627, %v1565
            %v1629 = vadd.f32 %v1628, %v1566
            %v1630 = vadd.f32 %v1629, %v1567
            %v1631 = vadd.f32 %v1630, %v1568
            %v1632 = vadd.f32 %v1631, %v1569
            %v1633 = vadd.f32 %v1632, %v1570
            %v1634 = vadd.f32 %v1633, %v1571
            %v1635 = vadd.f32 %v1634, %v1572
            %v1636 = vadd.f32 %v1635, %v1573
            %v1637 = vadd.f32 %v1636, %v1574
            %v1638 = vadd.f32 %v1637, %v1575
            %v1639 = vadd.f32 %v1638, %v1576
            %v1640 = vadd.f32 %v1639, %v1577
            %v1641 = vadd.f32 %v1640, %v1578
            %v1642 = vadd.f32 %v1641, %v1579
            %v1643 = vadd.f32 %v1642, %v1580
            %v1644 = vadd.f32 %v1643, %v1581
            %v1645 = vadd.f32 %v1644, %v1582
            %v1646 = vadd.f32 %v1645, %v1583
            %v1647 = vadd.f32 %v1646, %v1584
            %v1648 = vadd.f32 %v1647, %v1585
            %v1649 = vadd.f32 %v1648, %v1586
            %v1650 = vadd.f32 %v1649, %v1587
            %v1651 = vadd.f32 %v1650, %v1588
            %v1652 = vadd.f32 %v1651, %v1589
            %v1653 = vadd.f32 %v1652, %v1590
            %v1654 = vadd.f32 %v1653, %v1591
            %v1655 = vadd.f32 %v1654, %v1592
            %v1656 = vadd.f32 %v1655, %v1593
            %v1657 = vadd.f32 %v1656, %v1594
            %v1658 = vadd.f32 %v1657, %v1595
            %v1659 = vadd.f32 %v1658, %v1596
            %v1660 = vadd.f32 %v1659, %v1597
            %v1661 = vadd.f32 %v1660, %v1598
            %v1662 = vadd.f32 %v1661, %v1599
            %v1663 = vrot.slane %v1662, 4
            %v1664 = vadd.f32 %v1662, %v1663
            %v1665 = vrot.slane %v1664, 2
            %v1666 = vadd.f32 %v1664, %v1665
            %v1667 = vrot.slane %v1666, 1
            %v1668 = vadd.f32 %v1666, %v1667
            %v1669 = vadd.f32 %v1535, %v1668
            %1670 = vst [vmem:[#allocation5] sm:$0x1] %v1669
          $region80: #{tpu_custom_call.1} parent=71 // pred_fallthru
            _
          %p1671 = scmp.ne.s32.totalorder %s33, 1
          // Predicated region
          $region81: #{tpu_custom_call.1} parent=71 // pred_check
            %p1672 = pneg %p1671
          $region82: #{tpu_custom_call.1} parent=71 // pred_check_branch
            %1674 = sbr.rel (%p1672) target = $region84
          $region83: #{tpu_custom_call.1} parent=71 // pred_region
            %v1675 = vld [vmem:[#allocation4] sm:$0x1]
            %v1676 = vadd.f32 %v1009, %v1010
            %v1677 = vadd.f32 %v1676, %v1011
            %v1678 = vadd.f32 %v1677, %v1012
            %v1679 = vadd.f32 %v1678, %v1013
            %v1680 = vadd.f32 %v1679, %v1014
            %v1681 = vadd.f32 %v1680, %v1015
            %v1682 = vadd.f32 %v1681, %v1016
            %v1683 = vadd.f32 %v1682, %v1017
            %v1684 = vadd.f32 %v1683, %v1018
            %v1685 = vadd.f32 %v1684, %v1019
            %v1686 = vadd.f32 %v1685, %v1020
            %v1687 = vadd.f32 %v1686, %v1021
            %v1688 = vadd.f32 %v1687, %v1022
            %v1689 = vadd.f32 %v1688, %v1023
            %v1690 = vadd.f32 %v1689, %v1024
            %v1691 = vadd.f32 %v1690, %v1025
            %v1692 = vadd.f32 %v1691, %v1026
            %v1693 = vadd.f32 %v1692, %v1027
            %v1694 = vadd.f32 %v1693, %v1028
            %v1695 = vadd.f32 %v1694, %v1029
            %v1696 = vadd.f32 %v1695, %v1030
            %v1697 = vadd.f32 %v1696, %v1031
            %v1698 = vadd.f32 %v1697, %v1032
            %v1699 = vadd.f32 %v1698, %v1033
            %v1700 = vadd.f32 %v1699, %v1034
            %v1701 = vadd.f32 %v1700, %v1035
            %v1702 = vadd.f32 %v1701, %v1036
            %v1703 = vadd.f32 %v1702, %v1037
            %v1704 = vadd.f32 %v1703, %v1038
            %v1705 = vadd.f32 %v1704, %v1039
            %v1706 = vadd.f32 %v1705, %v1040
            %v1707 = vadd.f32 %v1706, %v1041
            %v1708 = vadd.f32 %v1707, %v1042
            %v1709 = vadd.f32 %v1708, %v1043
            %v1710 = vadd.f32 %v1709, %v1044
            %v1711 = vadd.f32 %v1710, %v1045
            %v1712 = vadd.f32 %v1711, %v1046
            %v1713 = vadd.f32 %v1712, %v1047
            %v1714 = vadd.f32 %v1713, %v1048
            %v1715 = vadd.f32 %v1714, %v1049
            %v1716 = vadd.f32 %v1715, %v1050
            %v1717 = vadd.f32 %v1716, %v1051
            %v1718 = vadd.f32 %v1717, %v1052
            %v1719 = vadd.f32 %v1718, %v1053
            %v1720 = vadd.f32 %v1719, %v1054
            %v1721 = vadd.f32 %v1720, %v1055
            %v1722 = vadd.f32 %v1721, %v1056
            %v1723 = vadd.f32 %v1722, %v1057
            %v1724 = vadd.f32 %v1723, %v1058
            %v1725 = vadd.f32 %v1724, %v1059
            %v1726 = vadd.f32 %v1725, %v1060
            %v1727 = vadd.f32 %v1726, %v1061
            %v1728 = vadd.f32 %v1727, %v1062
            %v1729 = vadd.f32 %v1728, %v1063
            %v1730 = vadd.f32 %v1729, %v1064
            %v1731 = vadd.f32 %v1730, %v1065
            %v1732 = vadd.f32 %v1731, %v1066
            %v1733 = vadd.f32 %v1732, %v1067
            %v1734 = vadd.f32 %v1733, %v1068
            %v1735 = vadd.f32 %v1734, %v1069
            %v1736 = vadd.f32 %v1735, %v1070
            %v1737 = vadd.f32 %v1736, %v1071
            %v1738 = vadd.f32 %v1737, %v1072
            %v1739 = vrot.slane %v1738, 4
            %v1740 = vadd.f32 %v1738, %v1739
            %v1741 = vrot.slane %v1740, 2
            %v1742 = vadd.f32 %v1740, %v1741
            %v1743 = vrot.slane %v1742, 1
            %v1744 = vadd.f32 %v1742, %v1743
            %v1745 = vadd.f32 %v1675, %v1744
            %1746 = vst [vmem:[#allocation4] sm:$0x1] %v1745
            %v1747 = vld [vmem:[#allocation5] sm:$0x1]
            %v1748 = vmul.f32 %v1009, %v1009
            %v1749 = vmul.f32 %v1010, %v1010
            %v1750 = vmul.f32 %v1011, %v1011
            %v1751 = vmul.f32 %v1012, %v1012
            %v1752 = vmul.f32 %v1013, %v1013
            %v1753 = vmul.f32 %v1014, %v1014
            %v1754 = vmul.f32 %v1015, %v1015
            %v1755 = vmul.f32 %v1016, %v1016
            %v1756 = vmul.f32 %v1017, %v1017
            %v1757 = vmul.f32 %v1018, %v1018
            %v1758 = vmul.f32 %v1019, %v1019
            %v1759 = vmul.f32 %v1020, %v1020
            %v1760 = vmul.f32 %v1021, %v1021
            %v1761 = vmul.f32 %v1022, %v1022
            %v1762 = vmul.f32 %v1023, %v1023
            %v1763 = vmul.f32 %v1024, %v1024
            %v1764 = vmul.f32 %v1025, %v1025
            %v1765 = vmul.f32 %v1026, %v1026
            %v1766 = vmul.f32 %v1027, %v1027
            %v1767 = vmul.f32 %v1028, %v1028
            %v1768 = vmul.f32 %v1029, %v1029
            %v1769 = vmul.f32 %v1030, %v1030
            %v1770 = vmul.f32 %v1031, %v1031
            %v1771 = vmul.f32 %v1032, %v1032
            %v1772 = vmul.f32 %v1033, %v1033
            %v1773 = vmul.f32 %v1034, %v1034
            %v1774 = vmul.f32 %v1035, %v1035
            %v1775 = vmul.f32 %v1036, %v1036
            %v1776 = vmul.f32 %v1037, %v1037
            %v1777 = vmul.f32 %v1038, %v1038
            %v1778 = vmul.f32 %v1039, %v1039
            %v1779 = vmul.f32 %v1040, %v1040
            %v1780 = vmul.f32 %v1041, %v1041
            %v1781 = vmul.f32 %v1042, %v1042
            %v1782 = vmul.f32 %v1043, %v1043
            %v1783 = vmul.f32 %v1044, %v1044
            %v1784 = vmul.f32 %v1045, %v1045
            %v1785 = vmul.f32 %v1046, %v1046
            %v1786 = vmul.f32 %v1047, %v1047
            %v1787 = vmul.f32 %v1048, %v1048
            %v1788 = vmul.f32 %v1049, %v1049
            %v1789 = vmul.f32 %v1050, %v1050
            %v1790 = vmul.f32 %v1051, %v1051
            %v1791 = vmul.f32 %v1052, %v1052
            %v1792 = vmul.f32 %v1053, %v1053
            %v1793 = vmul.f32 %v1054, %v1054
            %v1794 = vmul.f32 %v1055, %v1055
            %v1795 = vmul.f32 %v1056, %v1056
            %v1796 = vmul.f32 %v1057, %v1057
            %v1797 = vmul.f32 %v1058, %v1058
            %v1798 = vmul.f32 %v1059, %v1059
            %v1799 = vmul.f32 %v1060, %v1060
            %v1800 = vmul.f32 %v1061, %v1061
            %v1801 = vmul.f32 %v1062, %v1062
            %v1802 = vmul.f32 %v1063, %v1063
            %v1803 = vmul.f32 %v1064, %v1064
            %v1804 = vmul.f32 %v1065, %v1065
            %v1805 = vmul.f32 %v1066, %v1066
            %v1806 = vmul.f32 %v1067, %v1067
            %v1807 = vmul.f32 %v1068, %v1068
            %v1808 = vmul.f32 %v1069, %v1069
            %v1809 = vmul.f32 %v1070, %v1070
            %v1810 = vmul.f32 %v1071, %v1071
            %v1811 = vmul.f32 %v1072, %v1072
            %v1812 = vadd.f32 %v1748, %v1749
            %v1813 = vadd.f32 %v1812, %v1750
            %v1814 = vadd.f32 %v1813, %v1751
            %v1815 = vadd.f32 %v1814, %v1752
            %v1816 = vadd.f32 %v1815, %v1753
            %v1817 = vadd.f32 %v1816, %v1754
            %v1818 = vadd.f32 %v1817, %v1755
            %v1819 = vadd.f32 %v1818, %v1756
            %v1820 = vadd.f32 %v1819, %v1757
            %v1821 = vadd.f32 %v1820, %v1758
            %v1822 = vadd.f32 %v1821, %v1759
            %v1823 = vadd.f32 %v1822, %v1760
            %v1824 = vadd.f32 %v1823, %v1761
            %v1825 = vadd.f32 %v1824, %v1762
            %v1826 = vadd.f32 %v1825, %v1763
            %v1827 = vadd.f32 %v1826, %v1764
            %v1828 = vadd.f32 %v1827, %v1765
            %v1829 = vadd.f32 %v1828, %v1766
            %v1830 = vadd.f32 %v1829, %v1767
            %v1831 = vadd.f32 %v1830, %v1768
            %v1832 = vadd.f32 %v1831, %v1769
            %v1833 = vadd.f32 %v1832, %v1770
            %v1834 = vadd.f32 %v1833, %v1771
            %v1835 = vadd.f32 %v1834, %v1772
            %v1836 = vadd.f32 %v1835, %v1773
            %v1837 = vadd.f32 %v1836, %v1774
            %v1838 = vadd.f32 %v1837, %v1775
            %v1839 = vadd.f32 %v1838, %v1776
            %v1840 = vadd.f32 %v1839, %v1777
            %v1841 = vadd.f32 %v1840, %v1778
            %v1842 = vadd.f32 %v1841, %v1779
            %v1843 = vadd.f32 %v1842, %v1780
            %v1844 = vadd.f32 %v1843, %v1781
            %v1845 = vadd.f32 %v1844, %v1782
            %v1846 = vadd.f32 %v1845, %v1783
            %v1847 = vadd.f32 %v1846, %v1784
            %v1848 = vadd.f32 %v1847, %v1785
            %v1849 = vadd.f32 %v1848, %v1786
            %v1850 = vadd.f32 %v1849, %v1787
            %v1851 = vadd.f32 %v1850, %v1788
            %v1852 = vadd.f32 %v1851, %v1789
            %v1853 = vadd.f32 %v1852, %v1790
            %v1854 = vadd.f32 %v1853, %v1791
            %v1855 = vadd.f32 %v1854, %v1792
            %v1856 = vadd.f32 %v1855, %v1793
            %v1857 = vadd.f32 %v1856, %v1794
            %v1858 = vadd.f32 %v1857, %v1795
            %v1859 = vadd.f32 %v1858, %v1796
            %v1860 = vadd.f32 %v1859, %v1797
            %v1861 = vadd.f32 %v1860, %v1798
            %v1862 = vadd.f32 %v1861, %v1799
            %v1863 = vadd.f32 %v1862, %v1800
            %v1864 = vadd.f32 %v1863, %v1801
            %v1865 = vadd.f32 %v1864, %v1802
            %v1866 = vadd.f32 %v1865, %v1803
            %v1867 = vadd.f32 %v1866, %v1804
            %v1868 = vadd.f32 %v1867, %v1805
            %v1869 = vadd.f32 %v1868, %v1806
            %v1870 = vadd.f32 %v1869, %v1807
            %v1871 = vadd.f32 %v1870, %v1808
            %v1872 = vadd.f32 %v1871, %v1809
            %v1873 = vadd.f32 %v1872, %v1810
            %v1874 = vadd.f32 %v1873, %v1811
            %v1875 = vrot.slane %v1874, 4
            %v1876 = vadd.f32 %v1874, %v1875
            %v1877 = vrot.slane %v1876, 2
            %v1878 = vadd.f32 %v1876, %v1877
            %v1879 = vrot.slane %v1878, 1
            %v1880 = vadd.f32 %v1878, %v1879
            %v1881 = vadd.f32 %v1747, %v1880
            %1882 = vst [vmem:[#allocation5] sm:$0x1] %v1881
          $region84: #{tpu_custom_call.1} parent=71 // pred_fallthru
            _
          %v1883 = vpack.c.bf16 %v1010, %v1009
          %v1884 = vpack.c.bf16 %v1012, %v1011
          %v1885 = vpack.c.bf16 %v1014, %v1013
          %v1886 = vpack.c.bf16 %v1016, %v1015
          %v1887 = vpack.c.bf16 %v1018, %v1017
          %v1888 = vpack.c.bf16 %v1020, %v1019
          %v1889 = vpack.c.bf16 %v1022, %v1021
          %v1890 = vpack.c.bf16 %v1024, %v1023
          %v1891 = vpack.c.bf16 %v1026, %v1025
          %v1892 = vpack.c.bf16 %v1028, %v1027
          %v1893 = vpack.c.bf16 %v1030, %v1029
          %v1894 = vpack.c.bf16 %v1032, %v1031
          %v1895 = vpack.c.bf16 %v1034, %v1033
          %v1896 = vpack.c.bf16 %v1036, %v1035
          %v1897 = vpack.c.bf16 %v1038, %v1037
          %v1898 = vpack.c.bf16 %v1040, %v1039
          %v1899 = vpack.c.bf16 %v1042, %v1041
          %v1900 = vpack.c.bf16 %v1044, %v1043
          %v1901 = vpack.c.bf16 %v1046, %v1045
          %v1902 = vpack.c.bf16 %v1048, %v1047
          %v1903 = vpack.c.bf16 %v1050, %v1049
          %v1904 = vpack.c.bf16 %v1052, %v1051
          %v1905 = vpack.c.bf16 %v1054, %v1053
          %v1906 = vpack.c.bf16 %v1056, %v1055
          %v1907 = vpack.c.bf16 %v1058, %v1057
          %v1908 = vpack.c.bf16 %v1060, %v1059
          %v1909 = vpack.c.bf16 %v1062, %v1061
          %v1910 = vpack.c.bf16 %v1064, %v1063
          %v1911 = vpack.c.bf16 %v1066, %v1065
          %v1912 = vpack.c.bf16 %v1068, %v1067
          %v1913 = vpack.c.bf16 %v1070, %v1069
          %v1914 = vpack.c.bf16 %v1072, %v1071
          %v1947 = vunpack.c.l.b16 %v1883
          %v1948 = vunpack.c.h.b16 %v1883
          %v1949 = vunpack.c.l.b16 %v1884
          %v1950 = vunpack.c.h.b16 %v1884
          %v1951 = vunpack.c.l.b16 %v1885
          %v1952 = vunpack.c.h.b16 %v1885
          %v1953 = vunpack.c.l.b16 %v1886
          %v1954 = vunpack.c.h.b16 %v1886
          %v1955 = vunpack.c.l.b16 %v1887
          %v1956 = vunpack.c.h.b16 %v1887
          %v1957 = vunpack.c.l.b16 %v1888
          %v1958 = vunpack.c.h.b16 %v1888
          %v1959 = vunpack.c.l.b16 %v1889
          %v1960 = vunpack.c.h.b16 %v1889
          %v1961 = vunpack.c.l.b16 %v1890
          %v1962 = vunpack.c.h.b16 %v1890
          %v1963 = vunpack.c.l.b16 %v1891
          %v1964 = vunpack.c.h.b16 %v1891
          %v1965 = vunpack.c.l.b16 %v1892
          %v1966 = vunpack.c.h.b16 %v1892
          %v1967 = vunpack.c.l.b16 %v1893
          %v1968 = vunpack.c.h.b16 %v1893
          %v1969 = vunpack.c.l.b16 %v1894
          %v1970 = vunpack.c.h.b16 %v1894
          %v1971 = vunpack.c.l.b16 %v1895
          %v1972 = vunpack.c.h.b16 %v1895
          %v1973 = vunpack.c.l.b16 %v1896
          %v1974 = vunpack.c.h.b16 %v1896
          %v1975 = vunpack.c.l.b16 %v1897
          %v1976 = vunpack.c.h.b16 %v1897
          %v1977 = vunpack.c.l.b16 %v1898
          %v1978 = vunpack.c.h.b16 %v1898
          %v1979 = vunpack.c.l.b16 %v1899
          %v1980 = vunpack.c.h.b16 %v1899
          %v1981 = vunpack.c.l.b16 %v1900
          %v1982 = vunpack.c.h.b16 %v1900
          %v1983 = vunpack.c.l.b16 %v1901
          %v1984 = vunpack.c.h.b16 %v1901
          %v1985 = vunpack.c.l.b16 %v1902
          %v1986 = vunpack.c.h.b16 %v1902
          %v1987 = vunpack.c.l.b16 %v1903
          %v1988 = vunpack.c.h.b16 %v1903
          %v1989 = vunpack.c.l.b16 %v1904
          %v1990 = vunpack.c.h.b16 %v1904
          %v1991 = vunpack.c.l.b16 %v1905
          %v1992 = vunpack.c.h.b16 %v1905
          %v1993 = vunpack.c.l.b16 %v1906
          %v1994 = vunpack.c.h.b16 %v1906
          %v1995 = vunpack.c.l.b16 %v1907
          %v1996 = vunpack.c.h.b16 %v1907
          %v1997 = vunpack.c.l.b16 %v1908
          %v1998 = vunpack.c.h.b16 %v1908
          %v1999 = vunpack.c.l.b16 %v1909
          %v2000 = vunpack.c.h.b16 %v1909
          %v2001 = vunpack.c.l.b16 %v1910
          %v2002 = vunpack.c.h.b16 %v1910
          %v2003 = vunpack.c.l.b16 %v1911
          %v2004 = vunpack.c.h.b16 %v1911
          %v2005 = vunpack.c.l.b16 %v1912
          %v2006 = vunpack.c.h.b16 %v1912
          %v2007 = vunpack.c.l.b16 %v1913
          %v2008 = vunpack.c.h.b16 %v1913
          %v2009 = vunpack.c.l.b16 %v1914
          %v2010 = vunpack.c.h.b16 %v1914
          %v2011 = vpack.c.b16 %v1947, %v1947
          %v2012 = vpack.c.b16 %v1948, %v1948
          %v2013 = vpack.c.b16 %v1949, %v1949
          %v2014 = vpack.c.b16 %v1950, %v1950
          %v2015 = vpack.c.b16 %v1951, %v1951
          %v2016 = vpack.c.b16 %v1952, %v1952
          %v2017 = vpack.c.b16 %v1953, %v1953
          %v2018 = vpack.c.b16 %v1954, %v1954
          %v2019 = vpack.c.b16 %v1955, %v1955
          %v2020 = vpack.c.b16 %v1956, %v1956
          %v2021 = vpack.c.b16 %v1957, %v1957
          %v2022 = vpack.c.b16 %v1958, %v1958
          %v2023 = vpack.c.b16 %v1959, %v1959
          %v2024 = vpack.c.b16 %v1960, %v1960
          %v2025 = vpack.c.b16 %v1961, %v1961
          %v2026 = vpack.c.b16 %v1962, %v1962
          %v2027 = vpack.c.b16 %v1963, %v1963
          %v2028 = vpack.c.b16 %v1964, %v1964
          %v2029 = vpack.c.b16 %v1965, %v1965
          %v2030 = vpack.c.b16 %v1966, %v1966
          %v2031 = vpack.c.b16 %v1967, %v1967
          %v2032 = vpack.c.b16 %v1968, %v1968
          %v2033 = vpack.c.b16 %v1969, %v1969
          %v2034 = vpack.c.b16 %v1970, %v1970
          %v2035 = vpack.c.b16 %v1971, %v1971
          %v2036 = vpack.c.b16 %v1972, %v1972
          %v2037 = vpack.c.b16 %v1973, %v1973
          %v2038 = vpack.c.b16 %v1974, %v1974
          %v2039 = vpack.c.b16 %v1975, %v1975
          %v2040 = vpack.c.b16 %v1976, %v1976
          %v2041 = vpack.c.b16 %v1977, %v1977
          %v2042 = vpack.c.b16 %v1978, %v1978
          %v2043 = vpack.c.b16 %v1979, %v1979
          %v2044 = vpack.c.b16 %v1980, %v1980
          %v2045 = vpack.c.b16 %v1981, %v1981
          %v2046 = vpack.c.b16 %v1982, %v1982
          %v2047 = vpack.c.b16 %v1983, %v1983
          %v2048 = vpack.c.b16 %v1984, %v1984
          %v2049 = vpack.c.b16 %v1985, %v1985
          %v2050 = vpack.c.b16 %v1986, %v1986
          %v2051 = vpack.c.b16 %v1987, %v1987
          %v2052 = vpack.c.b16 %v1988, %v1988
          %v2053 = vpack.c.b16 %v1989, %v1989
          %v2054 = vpack.c.b16 %v1990, %v1990
          %v2055 = vpack.c.b16 %v1991, %v1991
          %v2056 = vpack.c.b16 %v1992, %v1992
          %v2057 = vpack.c.b16 %v1993, %v1993
          %v2058 = vpack.c.b16 %v1994, %v1994
          %v2059 = vpack.c.b16 %v1995, %v1995
          %v2060 = vpack.c.b16 %v1996, %v1996
          %v2061 = vpack.c.b16 %v1997, %v1997
          %v2062 = vpack.c.b16 %v1998, %v1998
          %v2063 = vpack.c.b16 %v1999, %v1999
          %v2064 = vpack.c.b16 %v2000, %v2000
          %v2065 = vpack.c.b16 %v2001, %v2001
          %v2066 = vpack.c.b16 %v2002, %v2002
          %v2067 = vpack.c.b16 %v2003, %v2003
          %v2068 = vpack.c.b16 %v2004, %v2004
          %v2069 = vpack.c.b16 %v2005, %v2005
          %v2070 = vpack.c.b16 %v2006, %v2006
          %v2071 = vpack.c.b16 %v2007, %v2007
          %v2072 = vpack.c.b16 %v2008, %v2008
          %v2073 = vpack.c.b16 %v2009, %v2009
          %v2074 = vpack.c.b16 %v2010, %v2010
          %2139 = vst [vmem:[#allocation2] sm:$0xf] %v2011
          %2140 = vst [vmem:[#allocation2 + $0x4] sm:$0xf] %v2012
          %2141 = vst [vmem:[#allocation2 + $0x8] sm:$0xf] %v2013
          %2142 = vst [vmem:[#allocation2 + $0xc] sm:$0xf] %v2014
          %2143 = vst [vmem:[#allocation2 + $0x10] sm:$0xf] %v2015
          %2144 = vst [vmem:[#allocation2 + $0x14] sm:$0xf] %v2016
          %2145 = vst [vmem:[#allocation2 + $0x18] sm:$0xf] %v2017
          %2146 = vst [vmem:[#allocation2 + $0x1c] sm:$0xf] %v2018
          %2147 = vst [vmem:[#allocation2 + $0x20] sm:$0xf] %v2019
          %2148 = vst [vmem:[#allocation2 + $0x24] sm:$0xf] %v2020
          %2149 = vst [vmem:[#allocation2 + $0x28] sm:$0xf] %v2021
          %2150 = vst [vmem:[#allocation2 + $0x2c] sm:$0xf] %v2022
          %2151 = vst [vmem:[#allocation2 + $0x30] sm:$0xf] %v2023
          %2152 = vst [vmem:[#allocation2 + $0x34] sm:$0xf] %v2024
          %2153 = vst [vmem:[#allocation2 + $0x38] sm:$0xf] %v2025
          %2154 = vst [vmem:[#allocation2 + $0x3c] sm:$0xf] %v2026
          %2155 = vst [vmem:[#allocation2 + $0x40] sm:$0xf] %v2027
          %2156 = vst [vmem:[#allocation2 + $0x44] sm:$0xf] %v2028
          %2157 = vst [vmem:[#allocation2 + $0x48] sm:$0xf] %v2029
          %2158 = vst [vmem:[#allocation2 + $0x4c] sm:$0xf] %v2030
          %2159 = vst [vmem:[#allocation2 + $0x50] sm:$0xf] %v2031
          %2160 = vst [vmem:[#allocation2 + $0x54] sm:$0xf] %v2032
          %2161 = vst [vmem:[#allocation2 + $0x58] sm:$0xf] %v2033
          %2162 = vst [vmem:[#allocation2 + $0x5c] sm:$0xf] %v2034
          %2163 = vst [vmem:[#allocation2 + $0x60] sm:$0xf] %v2035
          %2164 = vst [vmem:[#allocation2 + $0x64] sm:$0xf] %v2036
          %2165 = vst [vmem:[#allocation2 + $0x68] sm:$0xf] %v2037
          %2166 = vst [vmem:[#allocation2 + $0x6c] sm:$0xf] %v2038
          %2167 = vst [vmem:[#allocation2 + $0x70] sm:$0xf] %v2039
          %2168 = vst [vmem:[#allocation2 + $0x74] sm:$0xf] %v2040
          %2169 = vst [vmem:[#allocation2 + $0x78] sm:$0xf] %v2041
          %2170 = vst [vmem:[#allocation2 + $0x7c] sm:$0xf] %v2042
          %2171 = vst [vmem:[#allocation2 + $0x80] sm:$0xf] %v2043
          %2172 = vst [vmem:[#allocation2 + $0x84] sm:$0xf] %v2044
          %2173 = vst [vmem:[#allocation2 + $0x88] sm:$0xf] %v2045
          %2174 = vst [vmem:[#allocation2 + $0x8c] sm:$0xf] %v2046
          %2175 = vst [vmem:[#allocation2 + $0x90] sm:$0xf] %v2047
          %2176 = vst [vmem:[#allocation2 + $0x94] sm:$0xf] %v2048
          %2177 = vst [vmem:[#allocation2 + $0x98] sm:$0xf] %v2049
          %2178 = vst [vmem:[#allocation2 + $0x9c] sm:$0xf] %v2050
          %2179 = vst [vmem:[#allocation2 + $0xa0] sm:$0xf] %v2051
          %2180 = vst [vmem:[#allocation2 + $0xa4] sm:$0xf] %v2052
          %2181 = vst [vmem:[#allocation2 + $0xa8] sm:$0xf] %v2053
          %2182 = vst [vmem:[#allocation2 + $0xac] sm:$0xf] %v2054
          %2183 = vst [vmem:[#allocation2 + $0xb0] sm:$0xf] %v2055
          %2184 = vst [vmem:[#allocation2 + $0xb4] sm:$0xf] %v2056
          %2185 = vst [vmem:[#allocation2 + $0xb8] sm:$0xf] %v2057
          %2186 = vst [vmem:[#allocation2 + $0xbc] sm:$0xf] %v2058
          %2187 = vst [vmem:[#allocation2 + $0xc0] sm:$0xf] %v2059
          %2188 = vst [vmem:[#allocation2 + $0xc4] sm:$0xf] %v2060
          %2189 = vst [vmem:[#allocation2 + $0xc8] sm:$0xf] %v2061
          %2190 = vst [vmem:[#allocation2 + $0xcc] sm:$0xf] %v2062
          %2191 = vst [vmem:[#allocation2 + $0xd0] sm:$0xf] %v2063
          %2192 = vst [vmem:[#allocation2 + $0xd4] sm:$0xf] %v2064
          %2193 = vst [vmem:[#allocation2 + $0xd8] sm:$0xf] %v2065
          %2194 = vst [vmem:[#allocation2 + $0xdc] sm:$0xf] %v2066
          %2195 = vst [vmem:[#allocation2 + $0xe0] sm:$0xf] %v2067
          %2196 = vst [vmem:[#allocation2 + $0xe4] sm:$0xf] %v2068
          %2197 = vst [vmem:[#allocation2 + $0xe8] sm:$0xf] %v2069
          %2198 = vst [vmem:[#allocation2 + $0xec] sm:$0xf] %v2070
          %2199 = vst [vmem:[#allocation2 + $0xf0] sm:$0xf] %v2071
          %2200 = vst [vmem:[#allocation2 + $0xf4] sm:$0xf] %v2072
          %2201 = vst [vmem:[#allocation2 + $0xf8] sm:$0xf] %v2073
          %2202 = vst [vmem:[#allocation2 + $0xfc] sm:$0xf] %v2074
          %s2203 = sshra.s32 %s384, 3
          %s2204 = sand.u32 %s384, 7
          %s2205 = smul.addr %s2203, 64
          %s2206 = scalar_lea.hbm %s8, %s2205
          %s2207 = scalar_lea.sflag [#allocation3], 1
          // Predicated region
          $region85: #{tpu_custom_call.1} parent=71 // pred_check
            _
          $region86: #{tpu_custom_call.1} parent=71 // pred_check_branch
            %2209 = sbr.rel target = $region88
          $region87: #{tpu_custom_call.1} parent=71 // pred_region
            %2210 = sst [smem:[#allocation20]] [#allocation19]
            %2211 = sst [smem:[#allocation21]] [#allocation18]
          $region88: #{tpu_custom_call.1} parent=71 // pred_fallthru
            _
          %2213 = shalt.err (0)
          %s2215 = sshll.u32 [#allocation2], 4
          %s2216 = int_to_ptr.vmem [resolvable:$true] %s2215
          %2218 = dma.vmem_to_hbm [thread:$0]  %s2216, 4096, %s2206, %s2207
          %s2219 = smul.u32 4, 64
          %s2220 = smul.u32 %s2219, 1
          %s2221 = sshll.u32 %s2220, 4
          %2222 = dma.done %s2207, %s2221
        $region72: #{tpu_custom_call.1} parent=47 // pred_fallthru
          _
        %p2223 = scmp.eq.s32.totalorder %s32, 1
        // Predicated region
        $region89: #{tpu_custom_call.1} parent=47 // pred_check
          %p2224 = pneg %p2223
        $region90: #{tpu_custom_call.1} parent=47 // pred_check_branch
          %2226 = sbr.rel (%p2224) target = $region92
        $region91: #{tpu_custom_call.1} parent=47 // pred_region
          %p2227 = scmp.eq.s32.totalorder %s33, 0
          // Predicated region
          $region93: #{tpu_custom_call.1} parent=91 // pred_check
            %p2228 = pneg %p2227
          $region94: #{tpu_custom_call.1} parent=91 // pred_check_branch
            %2230 = sbr.rel (%p2228) target = $region96
          $region95: #{tpu_custom_call.1} parent=91 // pred_region
            %v2231 = vld [vmem:[#allocation13 + $0x1] sm:$0x1]
            %v2232 = vld [vmem:[#allocation13 + $0x2] sm:$0x1]
            %v2233 = vld [vmem:[#allocation4] sm:$0x1]
            %v2234 = vmul.f32 %v2233, 0.0016666667
            %v2235 = vld [vmem:[#allocation5] sm:$0x1]
            %v2236 = vmul.f32 %v2235, 0.0016666667
            %v2237 = vmul.f32 %v2234, %v2234
            %v2238 = vsub.f32 %v2236, %v2237
            %v2239 = vmax.f32 %v2238, 0.0
            %v2240 = vadd.f32 %v2239, 1e-05
            %v2241 = vrsqrt.pop %v2240
            %v2242 = vmul.f32 %v2231, %v2241
            %2243 = vst [vmem:[#allocation6] sm:$0x1] %v2242
            %v2244 = vmul.f32 %v2234, %v2242
            %v2245 = vsub.f32 %v2232, %v2244
            %2246 = vst [vmem:[#allocation7] sm:$0x1] %v2245
            %2247 = vst [vmem:[#allocation4] sm:$0x1] 0.0
            %2248 = vst [vmem:[#allocation5] sm:$0x1] 0.0
          $region96: #{tpu_custom_call.1} parent=91 // pred_fallthru
            _
          %s2249 = sshra.s32 %s384, 3
          %s2250 = sand.u32 %s384, 7
          %s2251 = smul.addr %s2249, 64
          %s2252 = scalar_lea.hbm %s8, %s2251
          // Predicated region
          $region97: #{tpu_custom_call.1} parent=91 // pred_check
            _
          $region98: #{tpu_custom_call.1} parent=91 // pred_check_branch
            %2254 = sbr.rel target = $region100
          $region99: #{tpu_custom_call.1} parent=91 // pred_region
            %2255 = sst [smem:[#allocation20]] [#allocation23]
            %2256 = sst [smem:[#allocation21]] [#allocation22]
          $region100: #{tpu_custom_call.1} parent=91 // pred_fallthru
            _
          %2258 = shalt.err (0)
          %s2260 = sshll.u32 [#allocation2], 4
          %s2261 = int_to_ptr.vmem [resolvable:$true] %s2260
          %2263 = dma.hbm_to_vmem [thread:$0]  %s2252, 4096, %s2261, [#allocation3]
          %s2264 = smul.u32 4, 64
          %s2265 = smul.u32 %s2264, 1
          %s2266 = sshll.u32 %s2265, 4
          %2267 = dma.done [#allocation3], %s2266
          %v2268 = vld [vmem:[#allocation2] sm:$0xf]
          %v2269 = vld [vmem:[#allocation2 + $0x4] sm:$0xf]
          %v2270 = vld [vmem:[#allocation2 + $0x8] sm:$0xf]
          %v2271 = vld [vmem:[#allocation2 + $0xc] sm:$0xf]
          %v2272 = vld [vmem:[#allocation2 + $0x10] sm:$0xf]
          %v2273 = vld [vmem:[#allocation2 + $0x14] sm:$0xf]
          %v2274 = vld [vmem:[#allocation2 + $0x18] sm:$0xf]
          %v2275 = vld [vmem:[#allocation2 + $0x1c] sm:$0xf]
          %v2276 = vld [vmem:[#allocation2 + $0x20] sm:$0xf]
          %v2277 = vld [vmem:[#allocation2 + $0x24] sm:$0xf]
          %v2278 = vld [vmem:[#allocation2 + $0x28] sm:$0xf]
          %v2279 = vld [vmem:[#allocation2 + $0x2c] sm:$0xf]
          %v2280 = vld [vmem:[#allocation2 + $0x30] sm:$0xf]
          %v2281 = vld [vmem:[#allocation2 + $0x34] sm:$0xf]
          %v2282 = vld [vmem:[#allocation2 + $0x38] sm:$0xf]
          %v2283 = vld [vmem:[#allocation2 + $0x3c] sm:$0xf]
          %v2284 = vld [vmem:[#allocation2 + $0x40] sm:$0xf]
          %v2285 = vld [vmem:[#allocation2 + $0x44] sm:$0xf]
          %v2286 = vld [vmem:[#allocation2 + $0x48] sm:$0xf]
          %v2287 = vld [vmem:[#allocation2 + $0x4c] sm:$0xf]
          %v2288 = vld [vmem:[#allocation2 + $0x50] sm:$0xf]
          %v2289 = vld [vmem:[#allocation2 + $0x54] sm:$0xf]
          %v2290 = vld [vmem:[#allocation2 + $0x58] sm:$0xf]
          %v2291 = vld [vmem:[#allocation2 + $0x5c] sm:$0xf]
          %v2292 = vld [vmem:[#allocation2 + $0x60] sm:$0xf]
          %v2293 = vld [vmem:[#allocation2 + $0x64] sm:$0xf]
          %v2294 = vld [vmem:[#allocation2 + $0x68] sm:$0xf]
          %v2295 = vld [vmem:[#allocation2 + $0x6c] sm:$0xf]
          %v2296 = vld [vmem:[#allocation2 + $0x70] sm:$0xf]
          %v2297 = vld [vmem:[#allocation2 + $0x74] sm:$0xf]
          %v2298 = vld [vmem:[#allocation2 + $0x78] sm:$0xf]
          %v2299 = vld [vmem:[#allocation2 + $0x7c] sm:$0xf]
          %v2300 = vld [vmem:[#allocation2 + $0x80] sm:$0xf]
          %v2301 = vld [vmem:[#allocation2 + $0x84] sm:$0xf]
          %v2302 = vld [vmem:[#allocation2 + $0x88] sm:$0xf]
          %v2303 = vld [vmem:[#allocation2 + $0x8c] sm:$0xf]
          %v2304 = vld [vmem:[#allocation2 + $0x90] sm:$0xf]
          %v2305 = vld [vmem:[#allocation2 + $0x94] sm:$0xf]
          %v2306 = vld [vmem:[#allocation2 + $0x98] sm:$0xf]
          %v2307 = vld [vmem:[#allocation2 + $0x9c] sm:$0xf]
          %v2308 = vld [vmem:[#allocation2 + $0xa0] sm:$0xf]
          %v2309 = vld [vmem:[#allocation2 + $0xa4] sm:$0xf]
          %v2310 = vld [vmem:[#allocation2 + $0xa8] sm:$0xf]
          %v2311 = vld [vmem:[#allocation2 + $0xac] sm:$0xf]
          %v2312 = vld [vmem:[#allocation2 + $0xb0] sm:$0xf]
          %v2313 = vld [vmem:[#allocation2 + $0xb4] sm:$0xf]
          %v2314 = vld [vmem:[#allocation2 + $0xb8] sm:$0xf]
          %v2315 = vld [vmem:[#allocation2 + $0xbc] sm:$0xf]
          %v2316 = vld [vmem:[#allocation2 + $0xc0] sm:$0xf]
          %v2317 = vld [vmem:[#allocation2 + $0xc4] sm:$0xf]
          %v2318 = vld [vmem:[#allocation2 + $0xc8] sm:$0xf]
          %v2319 = vld [vmem:[#allocation2 + $0xcc] sm:$0xf]
          %v2320 = vld [vmem:[#allocation2 + $0xd0] sm:$0xf]
          %v2321 = vld [vmem:[#allocation2 + $0xd4] sm:$0xf]
          %v2322 = vld [vmem:[#allocation2 + $0xd8] sm:$0xf]
          %v2323 = vld [vmem:[#allocation2 + $0xdc] sm:$0xf]
          %v2324 = vld [vmem:[#allocation2 + $0xe0] sm:$0xf]
          %v2325 = vld [vmem:[#allocation2 + $0xe4] sm:$0xf]
          %v2326 = vld [vmem:[#allocation2 + $0xe8] sm:$0xf]
          %v2327 = vld [vmem:[#allocation2 + $0xec] sm:$0xf]
          %v2328 = vld [vmem:[#allocation2 + $0xf0] sm:$0xf]
          %v2329 = vld [vmem:[#allocation2 + $0xf4] sm:$0xf]
          %v2330 = vld [vmem:[#allocation2 + $0xf8] sm:$0xf]
          %v2331 = vld [vmem:[#allocation2 + $0xfc] sm:$0xf]
          %v2332 = vunpack.c.l.bf16 %v2268
          %v2333 = vunpack.c.l.bf16 %v2269
          %v2334 = vunpack.c.l.bf16 %v2270
          %v2335 = vunpack.c.l.bf16 %v2271
          %v2336 = vunpack.c.l.bf16 %v2272
          %v2337 = vunpack.c.l.bf16 %v2273
          %v2338 = vunpack.c.l.bf16 %v2274
          %v2339 = vunpack.c.l.bf16 %v2275
          %v2340 = vunpack.c.l.bf16 %v2276
          %v2341 = vunpack.c.l.bf16 %v2277
          %v2342 = vunpack.c.l.bf16 %v2278
          %v2343 = vunpack.c.l.bf16 %v2279
          %v2344 = vunpack.c.l.bf16 %v2280
          %v2345 = vunpack.c.l.bf16 %v2281
          %v2346 = vunpack.c.l.bf16 %v2282
          %v2347 = vunpack.c.l.bf16 %v2283
          %v2348 = vunpack.c.l.bf16 %v2284
          %v2349 = vunpack.c.l.bf16 %v2285
          %v2350 = vunpack.c.l.bf16 %v2286
          %v2351 = vunpack.c.l.bf16 %v2287
          %v2352 = vunpack.c.l.bf16 %v2288
          %v2353 = vunpack.c.l.bf16 %v2289
          %v2354 = vunpack.c.l.bf16 %v2290
          %v2355 = vunpack.c.l.bf16 %v2291
          %v2356 = vunpack.c.l.bf16 %v2292
          %v2357 = vunpack.c.l.bf16 %v2293
          %v2358 = vunpack.c.l.bf16 %v2294
          %v2359 = vunpack.c.l.bf16 %v2295
          %v2360 = vunpack.c.l.bf16 %v2296
          %v2361 = vunpack.c.l.bf16 %v2297
          %v2362 = vunpack.c.l.bf16 %v2298
          %v2363 = vunpack.c.l.bf16 %v2299
          %v2364 = vunpack.c.l.bf16 %v2300
          %v2365 = vunpack.c.l.bf16 %v2301
          %v2366 = vunpack.c.l.bf16 %v2302
          %v2367 = vunpack.c.l.bf16 %v2303
          %v2368 = vunpack.c.l.bf16 %v2304
          %v2369 = vunpack.c.l.bf16 %v2305
          %v2370 = vunpack.c.l.bf16 %v2306
          %v2371 = vunpack.c.l.bf16 %v2307
          %v2372 = vunpack.c.l.bf16 %v2308
          %v2373 = vunpack.c.l.bf16 %v2309
          %v2374 = vunpack.c.l.bf16 %v2310
          %v2375 = vunpack.c.l.bf16 %v2311
          %v2376 = vunpack.c.l.bf16 %v2312
          %v2377 = vunpack.c.l.bf16 %v2313
          %v2378 = vunpack.c.l.bf16 %v2314
          %v2379 = vunpack.c.l.bf16 %v2315
          %v2380 = vunpack.c.l.bf16 %v2316
          %v2381 = vunpack.c.l.bf16 %v2317
          %v2382 = vunpack.c.l.bf16 %v2318
          %v2383 = vunpack.c.l.bf16 %v2319
          %v2384 = vunpack.c.l.bf16 %v2320
          %v2385 = vunpack.c.l.bf16 %v2321
          %v2386 = vunpack.c.l.bf16 %v2322
          %v2387 = vunpack.c.l.bf16 %v2323
          %v2388 = vunpack.c.l.bf16 %v2324
          %v2389 = vunpack.c.l.bf16 %v2325
          %v2390 = vunpack.c.l.bf16 %v2326
          %v2391 = vunpack.c.l.bf16 %v2327
          %v2392 = vunpack.c.l.bf16 %v2328
          %v2393 = vunpack.c.l.bf16 %v2329
          %v2394 = vunpack.c.l.bf16 %v2330
          %v2395 = vunpack.c.l.bf16 %v2331
          %v2396 = vld [vmem:[#allocation6] sm:$0x1]
          %v2398 = vlaneseq
          %v2399 = vshrl.u32 %v2398, 7
          %v2400 = vsub.s32 0, %v2399
          %v2401 = vrot.slane %v2396, %v2400
          %v2403 = vmul.f32 %v2332, %v2401
          %v2404 = vmul.f32 %v2333, %v2401
          %v2405 = vmul.f32 %v2334, %v2401
          %v2406 = vmul.f32 %v2335, %v2401
          %v2407 = vmul.f32 %v2336, %v2401
          %v2408 = vmul.f32 %v2337, %v2401
          %v2409 = vmul.f32 %v2338, %v2401
          %v2410 = vmul.f32 %v2339, %v2401
          %v2411 = vmul.f32 %v2340, %v2401
          %v2412 = vmul.f32 %v2341, %v2401
          %v2413 = vmul.f32 %v2342, %v2401
          %v2414 = vmul.f32 %v2343, %v2401
          %v2415 = vmul.f32 %v2344, %v2401
          %v2416 = vmul.f32 %v2345, %v2401
          %v2417 = vmul.f32 %v2346, %v2401
          %v2418 = vmul.f32 %v2347, %v2401
          %v2419 = vmul.f32 %v2348, %v2401
          %v2420 = vmul.f32 %v2349, %v2401
          %v2421 = vmul.f32 %v2350, %v2401
          %v2422 = vmul.f32 %v2351, %v2401
          %v2423 = vmul.f32 %v2352, %v2401
          %v2424 = vmul.f32 %v2353, %v2401
          %v2425 = vmul.f32 %v2354, %v2401
          %v2426 = vmul.f32 %v2355, %v2401
          %v2427 = vmul.f32 %v2356, %v2401
          %v2428 = vmul.f32 %v2357, %v2401
          %v2429 = vmul.f32 %v2358, %v2401
          %v2430 = vmul.f32 %v2359, %v2401
          %v2431 = vmul.f32 %v2360, %v2401
          %v2432 = vmul.f32 %v2361, %v2401
          %v2433 = vmul.f32 %v2362, %v2401
          %v2434 = vmul.f32 %v2363, %v2401
          %v2435 = vmul.f32 %v2364, %v2401
          %v2436 = vmul.f32 %v2365, %v2401
          %v2437 = vmul.f32 %v2366, %v2401
          %v2438 = vmul.f32 %v2367, %v2401
          %v2439 = vmul.f32 %v2368, %v2401
          %v2440 = vmul.f32 %v2369, %v2401
          %v2441 = vmul.f32 %v2370, %v2401
          %v2442 = vmul.f32 %v2371, %v2401
          %v2443 = vmul.f32 %v2372, %v2401
          %v2444 = vmul.f32 %v2373, %v2401
          %v2445 = vmul.f32 %v2374, %v2401
          %v2446 = vmul.f32 %v2375, %v2401
          %v2447 = vmul.f32 %v2376, %v2401
          %v2448 = vmul.f32 %v2377, %v2401
          %v2449 = vmul.f32 %v2378, %v2401
          %v2450 = vmul.f32 %v2379, %v2401
          %v2451 = vmul.f32 %v2380, %v2401
          %v2452 = vmul.f32 %v2381, %v2401
          %v2453 = vmul.f32 %v2382, %v2401
          %v2454 = vmul.f32 %v2383, %v2401
          %v2455 = vmul.f32 %v2384, %v2401
          %v2456 = vmul.f32 %v2385, %v2401
          %v2457 = vmul.f32 %v2386, %v2401
          %v2458 = vmul.f32 %v2387, %v2401
          %v2459 = vmul.f32 %v2388, %v2401
          %v2460 = vmul.f32 %v2389, %v2401
          %v2461 = vmul.f32 %v2390, %v2401
          %v2462 = vmul.f32 %v2391, %v2401
          %v2463 = vmul.f32 %v2392, %v2401
          %v2464 = vmul.f32 %v2393, %v2401
          %v2465 = vmul.f32 %v2394, %v2401
          %v2466 = vmul.f32 %v2395, %v2401
          %v2467 = vld [vmem:[#allocation7] sm:$0x1]
          %v2469 = vlaneseq
          %v2470 = vshrl.u32 %v2469, 7
          %v2471 = vsub.s32 0, %v2470
          %v2472 = vrot.slane %v2467, %v2471
          %v2474 = vadd.f32 %v2403, %v2472
          %v2475 = vadd.f32 %v2404, %v2472
          %v2476 = vadd.f32 %v2405, %v2472
          %v2477 = vadd.f32 %v2406, %v2472
          %v2478 = vadd.f32 %v2407, %v2472
          %v2479 = vadd.f32 %v2408, %v2472
          %v2480 = vadd.f32 %v2409, %v2472
          %v2481 = vadd.f32 %v2410, %v2472
          %v2482 = vadd.f32 %v2411, %v2472
          %v2483 = vadd.f32 %v2412, %v2472
          %v2484 = vadd.f32 %v2413, %v2472
          %v2485 = vadd.f32 %v2414, %v2472
          %v2486 = vadd.f32 %v2415, %v2472
          %v2487 = vadd.f32 %v2416, %v2472
          %v2488 = vadd.f32 %v2417, %v2472
          %v2489 = vadd.f32 %v2418, %v2472
          %v2490 = vadd.f32 %v2419, %v2472
          %v2491 = vadd.f32 %v2420, %v2472
          %v2492 = vadd.f32 %v2421, %v2472
          %v2493 = vadd.f32 %v2422, %v2472
          %v2494 = vadd.f32 %v2423, %v2472
          %v2495 = vadd.f32 %v2424, %v2472
          %v2496 = vadd.f32 %v2425, %v2472
          %v2497 = vadd.f32 %v2426, %v2472
          %v2498 = vadd.f32 %v2427, %v2472
          %v2499 = vadd.f32 %v2428, %v2472
          %v2500 = vadd.f32 %v2429, %v2472
          %v2501 = vadd.f32 %v2430, %v2472
          %v2502 = vadd.f32 %v2431, %v2472
          %v2503 = vadd.f32 %v2432, %v2472
          %v2504 = vadd.f32 %v2433, %v2472
          %v2505 = vadd.f32 %v2434, %v2472
          %v2506 = vadd.f32 %v2435, %v2472
          %v2507 = vadd.f32 %v2436, %v2472
          %v2508 = vadd.f32 %v2437, %v2472
          %v2509 = vadd.f32 %v2438, %v2472
          %v2510 = vadd.f32 %v2439, %v2472
          %v2511 = vadd.f32 %v2440, %v2472
          %v2512 = vadd.f32 %v2441, %v2472
          %v2513 = vadd.f32 %v2442, %v2472
          %v2514 = vadd.f32 %v2443, %v2472
          %v2515 = vadd.f32 %v2444, %v2472
          %v2516 = vadd.f32 %v2445, %v2472
          %v2517 = vadd.f32 %v2446, %v2472
          %v2518 = vadd.f32 %v2447, %v2472
          %v2519 = vadd.f32 %v2448, %v2472
          %v2520 = vadd.f32 %v2449, %v2472
          %v2521 = vadd.f32 %v2450, %v2472
          %v2522 = vadd.f32 %v2451, %v2472
          %v2523 = vadd.f32 %v2452, %v2472
          %v2524 = vadd.f32 %v2453, %v2472
          %v2525 = vadd.f32 %v2454, %v2472
          %v2526 = vadd.f32 %v2455, %v2472
          %v2527 = vadd.f32 %v2456, %v2472
          %v2528 = vadd.f32 %v2457, %v2472
          %v2529 = vadd.f32 %v2458, %v2472
          %v2530 = vadd.f32 %v2459, %v2472
          %v2531 = vadd.f32 %v2460, %v2472
          %v2532 = vadd.f32 %v2461, %v2472
          %v2533 = vadd.f32 %v2462, %v2472
          %v2534 = vadd.f32 %v2463, %v2472
          %v2535 = vadd.f32 %v2464, %v2472
          %v2536 = vadd.f32 %v2465, %v2472
          %v2537 = vadd.f32 %v2466, %v2472
          %v2538 = vpack.c.bf16 %v2475, %v2474
          %v2539 = vpack.c.bf16 %v2477, %v2476
          %v2540 = vpack.c.bf16 %v2479, %v2478
          %v2541 = vpack.c.bf16 %v2481, %v2480
          %v2542 = vpack.c.bf16 %v2483, %v2482
          %v2543 = vpack.c.bf16 %v2485, %v2484
          %v2544 = vpack.c.bf16 %v2487, %v2486
          %v2545 = vpack.c.bf16 %v2489, %v2488
          %v2546 = vpack.c.bf16 %v2491, %v2490
          %v2547 = vpack.c.bf16 %v2493, %v2492
          %v2548 = vpack.c.bf16 %v2495, %v2494
          %v2549 = vpack.c.bf16 %v2497, %v2496
          %v2550 = vpack.c.bf16 %v2499, %v2498
          %v2551 = vpack.c.bf16 %v2501, %v2500
          %v2552 = vpack.c.bf16 %v2503, %v2502
          %v2553 = vpack.c.bf16 %v2505, %v2504
          %v2554 = vpack.c.bf16 %v2507, %v2506
          %v2555 = vpack.c.bf16 %v2509, %v2508
          %v2556 = vpack.c.bf16 %v2511, %v2510
          %v2557 = vpack.c.bf16 %v2513, %v2512
          %v2558 = vpack.c.bf16 %v2515, %v2514
          %v2559 = vpack.c.bf16 %v2517, %v2516
          %v2560 = vpack.c.bf16 %v2519, %v2518
          %v2561 = vpack.c.bf16 %v2521, %v2520
          %v2562 = vpack.c.bf16 %v2523, %v2522
          %v2563 = vpack.c.bf16 %v2525, %v2524
          %v2564 = vpack.c.bf16 %v2527, %v2526
          %v2565 = vpack.c.bf16 %v2529, %v2528
          %v2566 = vpack.c.bf16 %v2531, %v2530
          %v2567 = vpack.c.bf16 %v2533, %v2532
          %v2568 = vpack.c.bf16 %v2535, %v2534
          %v2569 = vpack.c.bf16 %v2537, %v2536
          %v2570 = vld [vmem:[#allocation14] sm:$0xf]
          %v2571 = vld [vmem:[#allocation14 + $0x4] sm:$0xf]
          %v2572 = vld [vmem:[#allocation14 + $0x8] sm:$0xf]
          %v2573 = vld [vmem:[#allocation14 + $0xc] sm:$0xf]
          %v2574 = vld [vmem:[#allocation14 + $0x10] sm:$0xf]
          %v2575 = vld [vmem:[#allocation14 + $0x14] sm:$0xf]
          %v2576 = vld [vmem:[#allocation14 + $0x18] sm:$0xf]
          %v2577 = vld [vmem:[#allocation14 + $0x1c] sm:$0xf]
          %v2578 = vld [vmem:[#allocation14 + $0x20] sm:$0xf]
          %v2579 = vld [vmem:[#allocation14 + $0x24] sm:$0xf]
          %v2580 = vld [vmem:[#allocation14 + $0x28] sm:$0xf]
          %v2581 = vld [vmem:[#allocation14 + $0x2c] sm:$0xf]
          %v2582 = vld [vmem:[#allocation14 + $0x30] sm:$0xf]
          %v2583 = vld [vmem:[#allocation14 + $0x34] sm:$0xf]
          %v2584 = vld [vmem:[#allocation14 + $0x38] sm:$0xf]
          %v2585 = vld [vmem:[#allocation14 + $0x3c] sm:$0xf]
          %v2586 = vld [vmem:[%s4] sm:$0x1]
          %v2587 = vlaneseq
          %v2588 = vshrl.u32 %v2587, 7
          %v2589 = vsub.s32 0, %v2588
          %v2590 = vrot.slane %v2586, %v2589
          %v2607 = vunpack.c.l.b16 %v2570
          %v2608 = vunpack.c.l.b16 %v2571
          %v2609 = vunpack.c.l.b16 %v2572
          %v2610 = vunpack.c.l.b16 %v2573
          %v2611 = vunpack.c.l.b16 %v2574
          %v2612 = vunpack.c.l.b16 %v2575
          %v2613 = vunpack.c.l.b16 %v2576
          %v2614 = vunpack.c.l.b16 %v2577
          %v2615 = vunpack.c.l.b16 %v2578
          %v2616 = vunpack.c.l.b16 %v2579
          %v2617 = vunpack.c.l.b16 %v2580
          %v2618 = vunpack.c.l.b16 %v2581
          %v2619 = vunpack.c.l.b16 %v2582
          %v2620 = vunpack.c.l.b16 %v2583
          %v2621 = vunpack.c.l.b16 %v2584
          %v2622 = vunpack.c.l.b16 %v2585
          %v2623 = vpack.c.b16 %v2608, %v2607
          %v2624 = vpack.c.b16 %v2610, %v2609
          %v2625 = vpack.c.b16 %v2612, %v2611
          %v2626 = vpack.c.b16 %v2614, %v2613
          %v2627 = vpack.c.b16 %v2616, %v2615
          %v2628 = vpack.c.b16 %v2618, %v2617
          %v2629 = vpack.c.b16 %v2620, %v2619
          %v2630 = vpack.c.b16 %v2622, %v2621
          %2639 = vmatprep.subr.bf16.mxu0 0
          %2640 = vmatpush1.bf16.msra.mxu0 %v2630
          %2641 = vmatprep.subr.bf16.mxu0 0
          %2642 = vmatpush1.bf16.msra.mxu0 %v2629
          %2643 = vmatprep.subr.bf16.mxu0 0
          %2644 = vmatpush1.bf16.msra.mxu0 %v2628
          %2645 = vmatprep.subr.bf16.mxu0 0
          %2646 = vmatpush1.bf16.msra.mxu0 %v2627
          %2647 = vmatprep.subr.bf16.mxu0 0
          %2648 = vmatpush1.bf16.msra.mxu0 %v2626
          %2649 = vmatprep.subr.bf16.mxu0 0
          %2650 = vmatpush1.bf16.msra.mxu0 %v2625
          %2651 = vmatprep.subr.bf16.mxu0 0
          %2652 = vmatpush1.bf16.msra.mxu0 %v2624
          %2653 = vmatprep.subr.bf16.mxu0 0
          %2654 = vmatpush1.bf16.msra.mxu0 %v2623
          %2655 = vmatprep.subr.bf16.mxu0 0
          %2656 = vmatpush2.bf16.msra.mxu0 0
          %2657 = vmatprep.subr.bf16.mxu0 0
          %2658 = vmatpush2.bf16.msra.mxu0 0
          %2659 = vmatprep.subr.bf16.mxu0 0
          %2660 = vmatpush2.bf16.msra.mxu0 0
          %2661 = vmatprep.subr.bf16.mxu0 0
          %2662 = vmatpush2.bf16.msra.mxu0 0
          %2663 = vmatprep.subr.bf16.mxu0 0
          %2664 = vmatpush2.bf16.msra.mxu0 0
          %2665 = vmatprep.subr.bf16.mxu0 0
          %2666 = vmatpush2.bf16.msra.mxu0 0
          %2667 = vmatprep.subr.bf16.mxu0 0
          %2668 = vmatpush2.bf16.msra.mxu0 0
          %2669 = vmatprep.subr.bf16.mxu0 0
          %2670 = vmatpush2.bf16.msra.mxu0 0
          %2671 = vmatprep.mubr.bf16.mxu0 0
          %2672 = vmatmul.mubr.bf16.gmra.mxu0 %v2538
          %v2673 = vpop.f32.mrf.mxu0
          %v2674 = vadd.f32 %v2590, %v2673
          %v2675 = vpop.f32.mrf.mxu0
          %v2676 = vpop.f32.mrf.mxu0
          %v2677 = vadd.f32 %v2590, %v2676
          %v2678 = vpop.f32.mrf.mxu0
          %2679 = vmatprep.mubr.bf16.mxu0 0
          %2680 = vmatmul.mubr.bf16.gmra.mxu0 %v2539
          %v2681 = vpop.f32.mrf.mxu0
          %v2682 = vadd.f32 %v2590, %v2681
          %v2683 = vpop.f32.mrf.mxu0
          %v2684 = vpop.f32.mrf.mxu0
          %v2685 = vadd.f32 %v2590, %v2684
          %v2686 = vpop.f32.mrf.mxu0
          %2687 = vmatprep.mubr.bf16.mxu0 0
          %2688 = vmatmul.mubr.bf16.gmra.mxu0 %v2540
          %v2689 = vpop.f32.mrf.mxu0
          %v2690 = vadd.f32 %v2590, %v2689
          %v2691 = vpop.f32.mrf.mxu0
          %v2692 = vpop.f32.mrf.mxu0
          %v2693 = vadd.f32 %v2590, %v2692
          %v2694 = vpop.f32.mrf.mxu0
          %2695 = vmatprep.mubr.bf16.mxu0 0
          %2696 = vmatmul.mubr.bf16.gmra.mxu0 %v2541
          %v2697 = vpop.f32.mrf.mxu0
          %v2698 = vadd.f32 %v2590, %v2697
          %v2699 = vpop.f32.mrf.mxu0
          %v2700 = vpop.f32.mrf.mxu0
          %v2701 = vadd.f32 %v2590, %v2700
          %v2702 = vpop.f32.mrf.mxu0
          %2703 = vmatprep.mubr.bf16.mxu0 0
          %2704 = vmatmul.mubr.bf16.gmra.mxu0 %v2542
          %v2705 = vpop.f32.mrf.mxu0
          %v2706 = vadd.f32 %v2590, %v2705
          %v2707 = vpop.f32.mrf.mxu0
          %v2708 = vpop.f32.mrf.mxu0
          %v2709 = vadd.f32 %v2590, %v2708
          %v2710 = vpop.f32.mrf.mxu0
          %2711 = vmatprep.mubr.bf16.mxu0 0
          %2712 = vmatmul.mubr.bf16.gmra.mxu0 %v2543
          %v2713 = vpop.f32.mrf.mxu0
          %v2714 = vadd.f32 %v2590, %v2713
          %v2715 = vpop.f32.mrf.mxu0
          %v2716 = vpop.f32.mrf.mxu0
          %v2717 = vadd.f32 %v2590, %v2716
          %v2718 = vpop.f32.mrf.mxu0
          %2719 = vmatprep.mubr.bf16.mxu0 0
          %2720 = vmatmul.mubr.bf16.gmra.mxu0 %v2544
          %v2721 = vpop.f32.mrf.mxu0
          %v2722 = vadd.f32 %v2590, %v2721
          %v2723 = vpop.f32.mrf.mxu0
          %v2724 = vpop.f32.mrf.mxu0
          %v2725 = vadd.f32 %v2590, %v2724
          %v2726 = vpop.f32.mrf.mxu0
          %2727 = vmatprep.mubr.bf16.mxu0 0
          %2728 = vmatmul.mubr.bf16.gmra.mxu0 %v2545
          %v2729 = vpop.f32.mrf.mxu0
          %v2730 = vadd.f32 %v2590, %v2729
          %v2731 = vpop.f32.mrf.mxu0
          %v2732 = vpop.f32.mrf.mxu0
          %v2733 = vadd.f32 %v2590, %v2732
          %v2734 = vpop.f32.mrf.mxu0
          %2735 = vmatprep.mubr.bf16.mxu0 0
          %2736 = vmatmul.mubr.bf16.gmra.mxu0 %v2546
          %v2737 = vpop.f32.mrf.mxu0
          %v2738 = vadd.f32 %v2590, %v2737
          %v2739 = vpop.f32.mrf.mxu0
          %v2740 = vpop.f32.mrf.mxu0
          %v2741 = vadd.f32 %v2590, %v2740
          %v2742 = vpop.f32.mrf.mxu0
          %2743 = vmatprep.mubr.bf16.mxu0 0
          %2744 = vmatmul.mubr.bf16.gmra.mxu0 %v2547
          %v2745 = vpop.f32.mrf.mxu0
          %v2746 = vadd.f32 %v2590, %v2745
          %v2747 = vpop.f32.mrf.mxu0
          %v2748 = vpop.f32.mrf.mxu0
          %v2749 = vadd.f32 %v2590, %v2748
          %v2750 = vpop.f32.mrf.mxu0
          %2751 = vmatprep.mubr.bf16.mxu0 0
          %2752 = vmatmul.mubr.bf16.gmra.mxu0 %v2548
          %v2753 = vpop.f32.mrf.mxu0
          %v2754 = vadd.f32 %v2590, %v2753
          %v2755 = vpop.f32.mrf.mxu0
          %v2756 = vpop.f32.mrf.mxu0
          %v2757 = vadd.f32 %v2590, %v2756
          %v2758 = vpop.f32.mrf.mxu0
          %2759 = vmatprep.mubr.bf16.mxu0 0
          %2760 = vmatmul.mubr.bf16.gmra.mxu0 %v2549
          %v2761 = vpop.f32.mrf.mxu0
          %v2762 = vadd.f32 %v2590, %v2761
          %v2763 = vpop.f32.mrf.mxu0
          %v2764 = vpop.f32.mrf.mxu0
          %v2765 = vadd.f32 %v2590, %v2764
          %v2766 = vpop.f32.mrf.mxu0
          %2767 = vmatprep.mubr.bf16.mxu0 0
          %2768 = vmatmul.mubr.bf16.gmra.mxu0 %v2550
          %v2769 = vpop.f32.mrf.mxu0
          %v2770 = vadd.f32 %v2590, %v2769
          %v2771 = vpop.f32.mrf.mxu0
          %v2772 = vpop.f32.mrf.mxu0
          %v2773 = vadd.f32 %v2590, %v2772
          %v2774 = vpop.f32.mrf.mxu0
          %2775 = vmatprep.mubr.bf16.mxu0 0
          %2776 = vmatmul.mubr.bf16.gmra.mxu0 %v2551
          %v2777 = vpop.f32.mrf.mxu0
          %v2778 = vadd.f32 %v2590, %v2777
          %v2779 = vpop.f32.mrf.mxu0
          %v2780 = vpop.f32.mrf.mxu0
          %v2781 = vadd.f32 %v2590, %v2780
          %v2782 = vpop.f32.mrf.mxu0
          %2783 = vmatprep.mubr.bf16.mxu0 0
          %2784 = vmatmul.mubr.bf16.gmra.mxu0 %v2552
          %v2785 = vpop.f32.mrf.mxu0
          %v2786 = vadd.f32 %v2590, %v2785
          %v2787 = vpop.f32.mrf.mxu0
          %v2788 = vpop.f32.mrf.mxu0
          %v2789 = vadd.f32 %v2590, %v2788
          %v2790 = vpop.f32.mrf.mxu0
          %2791 = vmatprep.mubr.bf16.mxu0 0
          %2792 = vmatmul.mubr.bf16.gmra.mxu0 %v2553
          %v2793 = vpop.f32.mrf.mxu0
          %v2794 = vadd.f32 %v2590, %v2793
          %v2795 = vpop.f32.mrf.mxu0
          %v2796 = vpop.f32.mrf.mxu0
          %v2797 = vadd.f32 %v2590, %v2796
          %v2798 = vpop.f32.mrf.mxu0
          %2799 = vmatprep.mubr.bf16.mxu0 0
          %2800 = vmatmul.mubr.bf16.gmra.mxu0 %v2554
          %v2801 = vpop.f32.mrf.mxu0
          %v2802 = vadd.f32 %v2590, %v2801
          %v2803 = vpop.f32.mrf.mxu0
          %v2804 = vpop.f32.mrf.mxu0
          %v2805 = vadd.f32 %v2590, %v2804
          %v2806 = vpop.f32.mrf.mxu0
          %2807 = vmatprep.mubr.bf16.mxu0 0
          %2808 = vmatmul.mubr.bf16.gmra.mxu0 %v2555
          %v2809 = vpop.f32.mrf.mxu0
          %v2810 = vadd.f32 %v2590, %v2809
          %v2811 = vpop.f32.mrf.mxu0
          %v2812 = vpop.f32.mrf.mxu0
          %v2813 = vadd.f32 %v2590, %v2812
          %v2814 = vpop.f32.mrf.mxu0
          %2815 = vmatprep.mubr.bf16.mxu0 0
          %2816 = vmatmul.mubr.bf16.gmra.mxu0 %v2556
          %v2817 = vpop.f32.mrf.mxu0
          %v2818 = vadd.f32 %v2590, %v2817
          %v2819 = vpop.f32.mrf.mxu0
          %v2820 = vpop.f32.mrf.mxu0
          %v2821 = vadd.f32 %v2590, %v2820
          %v2822 = vpop.f32.mrf.mxu0
          %2823 = vmatprep.mubr.bf16.mxu0 0
          %2824 = vmatmul.mubr.bf16.gmra.mxu0 %v2557
          %v2825 = vpop.f32.mrf.mxu0
          %v2826 = vadd.f32 %v2590, %v2825
          %v2827 = vpop.f32.mrf.mxu0
          %v2828 = vpop.f32.mrf.mxu0
          %v2829 = vadd.f32 %v2590, %v2828
          %v2830 = vpop.f32.mrf.mxu0
          %2831 = vmatprep.mubr.bf16.mxu0 0
          %2832 = vmatmul.mubr.bf16.gmra.mxu0 %v2558
          %v2833 = vpop.f32.mrf.mxu0
          %v2834 = vadd.f32 %v2590, %v2833
          %v2835 = vpop.f32.mrf.mxu0
          %v2836 = vpop.f32.mrf.mxu0
          %v2837 = vadd.f32 %v2590, %v2836
          %v2838 = vpop.f32.mrf.mxu0
          %2839 = vmatprep.mubr.bf16.mxu0 0
          %2840 = vmatmul.mubr.bf16.gmra.mxu0 %v2559
          %v2841 = vpop.f32.mrf.mxu0
          %v2842 = vadd.f32 %v2590, %v2841
          %v2843 = vpop.f32.mrf.mxu0
          %v2844 = vpop.f32.mrf.mxu0
          %v2845 = vadd.f32 %v2590, %v2844
          %v2846 = vpop.f32.mrf.mxu0
          %2847 = vmatprep.mubr.bf16.mxu0 0
          %2848 = vmatmul.mubr.bf16.gmra.mxu0 %v2560
          %v2849 = vpop.f32.mrf.mxu0
          %v2850 = vadd.f32 %v2590, %v2849
          %v2851 = vpop.f32.mrf.mxu0
          %v2852 = vpop.f32.mrf.mxu0
          %v2853 = vadd.f32 %v2590, %v2852
          %v2854 = vpop.f32.mrf.mxu0
          %2855 = vmatprep.mubr.bf16.mxu0 0
          %2856 = vmatmul.mubr.bf16.gmra.mxu0 %v2561
          %v2857 = vpop.f32.mrf.mxu0
          %v2858 = vadd.f32 %v2590, %v2857
          %v2859 = vpop.f32.mrf.mxu0
          %v2860 = vpop.f32.mrf.mxu0
          %v2861 = vadd.f32 %v2590, %v2860
          %v2862 = vpop.f32.mrf.mxu0
          %2863 = vmatprep.mubr.bf16.mxu0 0
          %2864 = vmatmul.mubr.bf16.gmra.mxu0 %v2562
          %v2865 = vpop.f32.mrf.mxu0
          %v2866 = vadd.f32 %v2590, %v2865
          %v2867 = vpop.f32.mrf.mxu0
          %v2868 = vpop.f32.mrf.mxu0
          %v2869 = vadd.f32 %v2590, %v2868
          %v2870 = vpop.f32.mrf.mxu0
          %2871 = vmatprep.mubr.bf16.mxu0 0
          %2872 = vmatmul.mubr.bf16.gmra.mxu0 %v2563
          %v2873 = vpop.f32.mrf.mxu0
          %v2874 = vadd.f32 %v2590, %v2873
          %v2875 = vpop.f32.mrf.mxu0
          %v2876 = vpop.f32.mrf.mxu0
          %v2877 = vadd.f32 %v2590, %v2876
          %v2878 = vpop.f32.mrf.mxu0
          %2879 = vmatprep.mubr.bf16.mxu0 0
          %2880 = vmatmul.mubr.bf16.gmra.mxu0 %v2564
          %v2881 = vpop.f32.mrf.mxu0
          %v2882 = vadd.f32 %v2590, %v2881
          %v2883 = vpop.f32.mrf.mxu0
          %v2884 = vpop.f32.mrf.mxu0
          %v2885 = vadd.f32 %v2590, %v2884
          %v2886 = vpop.f32.mrf.mxu0
          %2887 = vmatprep.mubr.bf16.mxu0 0
          %2888 = vmatmul.mubr.bf16.gmra.mxu0 %v2565
          %v2889 = vpop.f32.mrf.mxu0
          %v2890 = vadd.f32 %v2590, %v2889
          %v2891 = vpop.f32.mrf.mxu0
          %v2892 = vpop.f32.mrf.mxu0
          %v2893 = vadd.f32 %v2590, %v2892
          %v2894 = vpop.f32.mrf.mxu0
          %2895 = vmatprep.mubr.bf16.mxu0 0
          %2896 = vmatmul.mubr.bf16.gmra.mxu0 %v2566
          %v2897 = vpop.f32.mrf.mxu0
          %v2898 = vadd.f32 %v2590, %v2897
          %v2899 = vpop.f32.mrf.mxu0
          %v2900 = vpop.f32.mrf.mxu0
          %v2901 = vadd.f32 %v2590, %v2900
          %v2902 = vpop.f32.mrf.mxu0
          %2903 = vmatprep.mubr.bf16.mxu0 0
          %2904 = vmatmul.mubr.bf16.gmra.mxu0 %v2567
          %v2905 = vpop.f32.mrf.mxu0
          %v2906 = vadd.f32 %v2590, %v2905
          %v2907 = vpop.f32.mrf.mxu0
          %v2908 = vpop.f32.mrf.mxu0
          %v2909 = vadd.f32 %v2590, %v2908
          %v2910 = vpop.f32.mrf.mxu0
          %2911 = vmatprep.mubr.bf16.mxu0 0
          %2912 = vmatmul.mubr.bf16.gmra.mxu0 %v2568
          %v2913 = vpop.f32.mrf.mxu0
          %v2914 = vadd.f32 %v2590, %v2913
          %v2915 = vpop.f32.mrf.mxu0
          %v2916 = vpop.f32.mrf.mxu0
          %v2917 = vadd.f32 %v2590, %v2916
          %v2918 = vpop.f32.mrf.mxu0
          %2919 = vmatprep.mubr.bf16.mxu0 0
          %2920 = vmatmul.mubr.bf16.gmra.mxu0 %v2569
          %v2921 = vpop.f32.mrf.mxu0
          %v2922 = vadd.f32 %v2590, %v2921
          %v2923 = vpop.f32.mrf.mxu0
          %v2924 = vpop.f32.mrf.mxu0
          %v2925 = vadd.f32 %v2590, %v2924
          %v2926 = vpop.f32.mrf.mxu0
          %2927 = vdwg.mxu0
          %v2928 = vmax.f32 %v2674, 0.0
          %v2929 = vmax.f32 %v2677, 0.0
          %v2930 = vmax.f32 %v2682, 0.0
          %v2931 = vmax.f32 %v2685, 0.0
          %v2932 = vmax.f32 %v2690, 0.0
          %v2933 = vmax.f32 %v2693, 0.0
          %v2934 = vmax.f32 %v2698, 0.0
          %v2935 = vmax.f32 %v2701, 0.0
          %v2936 = vmax.f32 %v2706, 0.0
          %v2937 = vmax.f32 %v2709, 0.0
          %v2938 = vmax.f32 %v2714, 0.0
          %v2939 = vmax.f32 %v2717, 0.0
          %v2940 = vmax.f32 %v2722, 0.0
          %v2941 = vmax.f32 %v2725, 0.0
          %v2942 = vmax.f32 %v2730, 0.0
          %v2943 = vmax.f32 %v2733, 0.0
          %v2944 = vmax.f32 %v2738, 0.0
          %v2945 = vmax.f32 %v2741, 0.0
          %v2946 = vmax.f32 %v2746, 0.0
          %v2947 = vmax.f32 %v2749, 0.0
          %v2948 = vmax.f32 %v2754, 0.0
          %v2949 = vmax.f32 %v2757, 0.0
          %v2950 = vmax.f32 %v2762, 0.0
          %v2951 = vmax.f32 %v2765, 0.0
          %v2952 = vmax.f32 %v2770, 0.0
          %v2953 = vmax.f32 %v2773, 0.0
          %v2954 = vmax.f32 %v2778, 0.0
          %v2955 = vmax.f32 %v2781, 0.0
          %v2956 = vmax.f32 %v2786, 0.0
          %v2957 = vmax.f32 %v2789, 0.0
          %v2958 = vmax.f32 %v2794, 0.0
          %v2959 = vmax.f32 %v2797, 0.0
          %v2960 = vmax.f32 %v2802, 0.0
          %v2961 = vmax.f32 %v2805, 0.0
          %v2962 = vmax.f32 %v2810, 0.0
          %v2963 = vmax.f32 %v2813, 0.0
          %v2964 = vmax.f32 %v2818, 0.0
          %v2965 = vmax.f32 %v2821, 0.0
          %v2966 = vmax.f32 %v2826, 0.0
          %v2967 = vmax.f32 %v2829, 0.0
          %v2968 = vmax.f32 %v2834, 0.0
          %v2969 = vmax.f32 %v2837, 0.0
          %v2970 = vmax.f32 %v2842, 0.0
          %v2971 = vmax.f32 %v2845, 0.0
          %v2972 = vmax.f32 %v2850, 0.0
          %v2973 = vmax.f32 %v2853, 0.0
          %v2974 = vmax.f32 %v2858, 0.0
          %v2975 = vmax.f32 %v2861, 0.0
          %v2976 = vmax.f32 %v2866, 0.0
          %v2977 = vmax.f32 %v2869, 0.0
          %v2978 = vmax.f32 %v2874, 0.0
          %v2979 = vmax.f32 %v2877, 0.0
          %v2980 = vmax.f32 %v2882, 0.0
          %v2981 = vmax.f32 %v2885, 0.0
          %v2982 = vmax.f32 %v2890, 0.0
          %v2983 = vmax.f32 %v2893, 0.0
          %v2984 = vmax.f32 %v2898, 0.0
          %v2985 = vmax.f32 %v2901, 0.0
          %v2986 = vmax.f32 %v2906, 0.0
          %v2987 = vmax.f32 %v2909, 0.0
          %v2988 = vmax.f32 %v2914, 0.0
          %v2989 = vmax.f32 %v2917, 0.0
          %v2990 = vmax.f32 %v2922, 0.0
          %v2991 = vmax.f32 %v2925, 0.0
          %p2992 = scmp.eq.s32.totalorder %s33, 1
          // Predicated region
          $region101: #{tpu_custom_call.1} parent=91 // pred_check
            %p2993 = pneg %p2992
          $region102: #{tpu_custom_call.1} parent=91 // pred_check_branch
            %2995 = sbr.rel (%p2993) target = $region104
          $region103: #{tpu_custom_call.1} parent=91 // pred_region
            %v2996 = vlaneseq
            %v2997 = vshrl.u32 %v2996, 7
            %v2998 = vadd.s32 %v2997, 8
            %v2999 = vadd.s32 %v2997, 16
            %v3000 = vadd.s32 %v2997, 24
            %v3001 = vadd.s32 %v2997, 32
            %v3002 = vadd.s32 %v2997, 40
            %v3003 = vadd.s32 %v2997, 48
            %v3004 = vadd.s32 %v2997, 56
            %v3005 = vadd.s32 %v2997, 64
            %v3006 = vadd.s32 %v2997, 72
            %v3007 = vadd.s32 %v2997, 80
            %v3008 = vadd.s32 %v2997, 88
            %v3009 = vadd.s32 %v2997, 96
            %v3010 = vadd.s32 %v2997, 104
            %v3011 = vadd.s32 %v2997, 112
            %v3012 = vadd.s32 %v2997, 120
            %v3013 = vadd.s32 %v2997, 128
            %v3014 = vadd.s32 %v2997, 136
            %v3015 = vadd.s32 %v2997, 144
            %v3016 = vadd.s32 %v2997, 152
            %v3017 = vadd.s32 %v2997, 160
            %v3018 = vadd.s32 %v2997, 168
            %v3019 = vadd.s32 %v2997, 176
            %v3020 = vadd.s32 %v2997, 184
            %v3021 = vadd.s32 %v2997, 192
            %v3022 = vadd.s32 %v2997, 200
            %v3023 = vadd.s32 %v2997, 208
            %v3024 = vadd.s32 %v2997, 216
            %v3025 = vadd.s32 %v2997, 224
            %v3026 = vadd.s32 %v2997, 232
            %v3027 = vadd.s32 %v2997, 240
            %v3028 = vadd.s32 %v2997, 248
            %v3029 = vadd.s32 %v2997, 256
            %v3030 = vadd.s32 %v2997, 264
            %v3031 = vadd.s32 %v2997, 272
            %v3032 = vadd.s32 %v2997, 280
            %v3033 = vadd.s32 %v2997, 288
            %v3034 = vadd.s32 %v2997, 296
            %v3035 = vadd.s32 %v2997, 304
            %v3036 = vadd.s32 %v2997, 312
            %v3037 = vadd.s32 %v2997, 320
            %v3038 = vadd.s32 %v2997, 328
            %v3039 = vadd.s32 %v2997, 336
            %v3040 = vadd.s32 %v2997, 344
            %v3041 = vadd.s32 %v2997, 352
            %v3042 = vadd.s32 %v2997, 360
            %v3043 = vadd.s32 %v2997, 368
            %v3044 = vadd.s32 %v2997, 376
            %v3045 = vadd.s32 %v2997, 384
            %v3046 = vadd.s32 %v2997, 392
            %v3047 = vadd.s32 %v2997, 400
            %v3048 = vadd.s32 %v2997, 408
            %v3049 = vadd.s32 %v2997, 416
            %v3050 = vadd.s32 %v2997, 424
            %v3051 = vadd.s32 %v2997, 432
            %v3052 = vadd.s32 %v2997, 440
            %v3053 = vadd.s32 %v2997, 448
            %v3054 = vadd.s32 %v2997, 456
            %v3055 = vadd.s32 %v2997, 464
            %v3056 = vadd.s32 %v2997, 472
            %v3057 = vadd.s32 %v2997, 480
            %v3058 = vadd.s32 %v2997, 488
            %v3059 = vadd.s32 %v2997, 496
            %v3060 = vadd.s32 %v2997, 504
            %v3061 = vstv %s384
            %v3062 = vadd.s32 %v2997, %v3061
            %v3063 = vadd.s32 %v2998, %v3061
            %v3064 = vadd.s32 %v2999, %v3061
            %v3065 = vadd.s32 %v3000, %v3061
            %v3066 = vadd.s32 %v3001, %v3061
            %v3067 = vadd.s32 %v3002, %v3061
            %v3068 = vadd.s32 %v3003, %v3061
            %v3069 = vadd.s32 %v3004, %v3061
            %v3070 = vadd.s32 %v3005, %v3061
            %v3071 = vadd.s32 %v3006, %v3061
            %v3072 = vadd.s32 %v3007, %v3061
            %v3073 = vadd.s32 %v3008, %v3061
            %v3074 = vadd.s32 %v3009, %v3061
            %v3075 = vadd.s32 %v3010, %v3061
            %v3076 = vadd.s32 %v3011, %v3061
            %v3077 = vadd.s32 %v3012, %v3061
            %v3078 = vadd.s32 %v3013, %v3061
            %v3079 = vadd.s32 %v3014, %v3061
            %v3080 = vadd.s32 %v3015, %v3061
            %v3081 = vadd.s32 %v3016, %v3061
            %v3082 = vadd.s32 %v3017, %v3061
            %v3083 = vadd.s32 %v3018, %v3061
            %v3084 = vadd.s32 %v3019, %v3061
            %v3085 = vadd.s32 %v3020, %v3061
            %v3086 = vadd.s32 %v3021, %v3061
            %v3087 = vadd.s32 %v3022, %v3061
            %v3088 = vadd.s32 %v3023, %v3061
            %v3089 = vadd.s32 %v3024, %v3061
            %v3090 = vadd.s32 %v3025, %v3061
            %v3091 = vadd.s32 %v3026, %v3061
            %v3092 = vadd.s32 %v3027, %v3061
            %v3093 = vadd.s32 %v3028, %v3061
            %v3094 = vadd.s32 %v3029, %v3061
            %v3095 = vadd.s32 %v3030, %v3061
            %v3096 = vadd.s32 %v3031, %v3061
            %v3097 = vadd.s32 %v3032, %v3061
            %v3098 = vadd.s32 %v3033, %v3061
            %v3099 = vadd.s32 %v3034, %v3061
            %v3100 = vadd.s32 %v3035, %v3061
            %v3101 = vadd.s32 %v3036, %v3061
            %v3102 = vadd.s32 %v3037, %v3061
            %v3103 = vadd.s32 %v3038, %v3061
            %v3104 = vadd.s32 %v3039, %v3061
            %v3105 = vadd.s32 %v3040, %v3061
            %v3106 = vadd.s32 %v3041, %v3061
            %v3107 = vadd.s32 %v3042, %v3061
            %v3108 = vadd.s32 %v3043, %v3061
            %v3109 = vadd.s32 %v3044, %v3061
            %v3110 = vadd.s32 %v3045, %v3061
            %v3111 = vadd.s32 %v3046, %v3061
            %v3112 = vadd.s32 %v3047, %v3061
            %v3113 = vadd.s32 %v3048, %v3061
            %v3114 = vadd.s32 %v3049, %v3061
            %v3115 = vadd.s32 %v3050, %v3061
            %v3116 = vadd.s32 %v3051, %v3061
            %v3117 = vadd.s32 %v3052, %v3061
            %v3118 = vadd.s32 %v3053, %v3061
            %v3119 = vadd.s32 %v3054, %v3061
            %v3120 = vadd.s32 %v3055, %v3061
            %v3121 = vadd.s32 %v3056, %v3061
            %v3122 = vadd.s32 %v3057, %v3061
            %v3123 = vadd.s32 %v3058, %v3061
            %v3124 = vadd.s32 %v3059, %v3061
            %v3125 = vadd.s32 %v3060, %v3061
            %vm3126 = vcmp.lt.s32.totalorder %v3062, 600
            %vm3127 = vcmp.lt.s32.totalorder %v3063, 600
            %vm3128 = vcmp.lt.s32.totalorder %v3064, 600
            %vm3129 = vcmp.lt.s32.totalorder %v3065, 600
            %vm3130 = vcmp.lt.s32.totalorder %v3066, 600
            %vm3131 = vcmp.lt.s32.totalorder %v3067, 600
            %vm3132 = vcmp.lt.s32.totalorder %v3068, 600
            %vm3133 = vcmp.lt.s32.totalorder %v3069, 600
            %vm3134 = vcmp.lt.s32.totalorder %v3070, 600
            %vm3135 = vcmp.lt.s32.totalorder %v3071, 600
            %vm3136 = vcmp.lt.s32.totalorder %v3072, 600
            %vm3137 = vcmp.lt.s32.totalorder %v3073, 600
            %vm3138 = vcmp.lt.s32.totalorder %v3074, 600
            %vm3139 = vcmp.lt.s32.totalorder %v3075, 600
            %vm3140 = vcmp.lt.s32.totalorder %v3076, 600
            %vm3141 = vcmp.lt.s32.totalorder %v3077, 600
            %vm3142 = vcmp.lt.s32.totalorder %v3078, 600
            %vm3143 = vcmp.lt.s32.totalorder %v3079, 600
            %vm3144 = vcmp.lt.s32.totalorder %v3080, 600
            %vm3145 = vcmp.lt.s32.totalorder %v3081, 600
            %vm3146 = vcmp.lt.s32.totalorder %v3082, 600
            %vm3147 = vcmp.lt.s32.totalorder %v3083, 600
            %vm3148 = vcmp.lt.s32.totalorder %v3084, 600
            %vm3149 = vcmp.lt.s32.totalorder %v3085, 600
            %vm3150 = vcmp.lt.s32.totalorder %v3086, 600
            %vm3151 = vcmp.lt.s32.totalorder %v3087, 600
            %vm3152 = vcmp.lt.s32.totalorder %v3088, 600
            %vm3153 = vcmp.lt.s32.totalorder %v3089, 600
            %vm3154 = vcmp.lt.s32.totalorder %v3090, 600
            %vm3155 = vcmp.lt.s32.totalorder %v3091, 600
            %vm3156 = vcmp.lt.s32.totalorder %v3092, 600
            %vm3157 = vcmp.lt.s32.totalorder %v3093, 600
            %vm3158 = vcmp.lt.s32.totalorder %v3094, 600
            %vm3159 = vcmp.lt.s32.totalorder %v3095, 600
            %vm3160 = vcmp.lt.s32.totalorder %v3096, 600
            %vm3161 = vcmp.lt.s32.totalorder %v3097, 600
            %vm3162 = vcmp.lt.s32.totalorder %v3098, 600
            %vm3163 = vcmp.lt.s32.totalorder %v3099, 600
            %vm3164 = vcmp.lt.s32.totalorder %v3100, 600
            %vm3165 = vcmp.lt.s32.totalorder %v3101, 600
            %vm3166 = vcmp.lt.s32.totalorder %v3102, 600
            %vm3167 = vcmp.lt.s32.totalorder %v3103, 600
            %vm3168 = vcmp.lt.s32.totalorder %v3104, 600
            %vm3169 = vcmp.lt.s32.totalorder %v3105, 600
            %vm3170 = vcmp.lt.s32.totalorder %v3106, 600
            %vm3171 = vcmp.lt.s32.totalorder %v3107, 600
            %vm3172 = vcmp.lt.s32.totalorder %v3108, 600
            %vm3173 = vcmp.lt.s32.totalorder %v3109, 600
            %vm3174 = vcmp.lt.s32.totalorder %v3110, 600
            %vm3175 = vcmp.lt.s32.totalorder %v3111, 600
            %vm3176 = vcmp.lt.s32.totalorder %v3112, 600
            %vm3177 = vcmp.lt.s32.totalorder %v3113, 600
            %vm3178 = vcmp.lt.s32.totalorder %v3114, 600
            %vm3179 = vcmp.lt.s32.totalorder %v3115, 600
            %vm3180 = vcmp.lt.s32.totalorder %v3116, 600
            %vm3181 = vcmp.lt.s32.totalorder %v3117, 600
            %vm3182 = vcmp.lt.s32.totalorder %v3118, 600
            %vm3183 = vcmp.lt.s32.totalorder %v3119, 600
            %vm3184 = vcmp.lt.s32.totalorder %v3120, 600
            %vm3185 = vcmp.lt.s32.totalorder %v3121, 600
            %vm3186 = vcmp.lt.s32.totalorder %v3122, 600
            %vm3187 = vcmp.lt.s32.totalorder %v3123, 600
            %vm3188 = vcmp.lt.s32.totalorder %v3124, 600
            %vm3189 = vcmp.lt.s32.totalorder %v3125, 600
            %v3190 = vsel %vm3126, 1, 0
            %v3191 = vsel %vm3127, 1, 0
            %v3192 = vsel %vm3128, 1, 0
            %v3193 = vsel %vm3129, 1, 0
            %v3194 = vsel %vm3130, 1, 0
            %v3195 = vsel %vm3131, 1, 0
            %v3196 = vsel %vm3132, 1, 0
            %v3197 = vsel %vm3133, 1, 0
            %v3198 = vsel %vm3134, 1, 0
            %v3199 = vsel %vm3135, 1, 0
            %v3200 = vsel %vm3136, 1, 0
            %v3201 = vsel %vm3137, 1, 0
            %v3202 = vsel %vm3138, 1, 0
            %v3203 = vsel %vm3139, 1, 0
            %v3204 = vsel %vm3140, 1, 0
            %v3205 = vsel %vm3141, 1, 0
            %v3206 = vsel %vm3142, 1, 0
            %v3207 = vsel %vm3143, 1, 0
            %v3208 = vsel %vm3144, 1, 0
            %v3209 = vsel %vm3145, 1, 0
            %v3210 = vsel %vm3146, 1, 0
            %v3211 = vsel %vm3147, 1, 0
            %v3212 = vsel %vm3148, 1, 0
            %v3213 = vsel %vm3149, 1, 0
            %v3214 = vsel %vm3150, 1, 0
            %v3215 = vsel %vm3151, 1, 0
            %v3216 = vsel %vm3152, 1, 0
            %v3217 = vsel %vm3153, 1, 0
            %v3218 = vsel %vm3154, 1, 0
            %v3219 = vsel %vm3155, 1, 0
            %v3220 = vsel %vm3156, 1, 0
            %v3221 = vsel %vm3157, 1, 0
            %v3222 = vsel %vm3158, 1, 0
            %v3223 = vsel %vm3159, 1, 0
            %v3224 = vsel %vm3160, 1, 0
            %v3225 = vsel %vm3161, 1, 0
            %v3226 = vsel %vm3162, 1, 0
            %v3227 = vsel %vm3163, 1, 0
            %v3228 = vsel %vm3164, 1, 0
            %v3229 = vsel %vm3165, 1, 0
            %v3230 = vsel %vm3166, 1, 0
            %v3231 = vsel %vm3167, 1, 0
            %v3232 = vsel %vm3168, 1, 0
            %v3233 = vsel %vm3169, 1, 0
            %v3234 = vsel %vm3170, 1, 0
            %v3235 = vsel %vm3171, 1, 0
            %v3236 = vsel %vm3172, 1, 0
            %v3237 = vsel %vm3173, 1, 0
            %v3238 = vsel %vm3174, 1, 0
            %v3239 = vsel %vm3175, 1, 0
            %v3240 = vsel %vm3176, 1, 0
            %v3241 = vsel %vm3177, 1, 0
            %v3242 = vsel %vm3178, 1, 0
            %v3243 = vsel %vm3179, 1, 0
            %v3244 = vsel %vm3180, 1, 0
            %v3245 = vsel %vm3181, 1, 0
            %v3246 = vsel %vm3182, 1, 0
            %v3247 = vsel %vm3183, 1, 0
            %v3248 = vsel %vm3184, 1, 0
            %v3249 = vsel %vm3185, 1, 0
            %v3250 = vsel %vm3186, 1, 0
            %v3251 = vsel %vm3187, 1, 0
            %v3252 = vsel %vm3188, 1, 0
            %v3253 = vsel %vm3189, 1, 0
            %vm3254 = vcmp.eq.s32.totalorder %v3190, 1
            %vm3255 = vcmp.eq.s32.totalorder %v3191, 1
            %vm3256 = vcmp.eq.s32.totalorder %v3192, 1
            %vm3257 = vcmp.eq.s32.totalorder %v3193, 1
            %vm3258 = vcmp.eq.s32.totalorder %v3194, 1
            %vm3259 = vcmp.eq.s32.totalorder %v3195, 1
            %vm3260 = vcmp.eq.s32.totalorder %v3196, 1
            %vm3261 = vcmp.eq.s32.totalorder %v3197, 1
            %vm3262 = vcmp.eq.s32.totalorder %v3198, 1
            %vm3263 = vcmp.eq.s32.totalorder %v3199, 1
            %vm3264 = vcmp.eq.s32.totalorder %v3200, 1
            %vm3265 = vcmp.eq.s32.totalorder %v3201, 1
            %vm3266 = vcmp.eq.s32.totalorder %v3202, 1
            %vm3267 = vcmp.eq.s32.totalorder %v3203, 1
            %vm3268 = vcmp.eq.s32.totalorder %v3204, 1
            %vm3269 = vcmp.eq.s32.totalorder %v3205, 1
            %vm3270 = vcmp.eq.s32.totalorder %v3206, 1
            %vm3271 = vcmp.eq.s32.totalorder %v3207, 1
            %vm3272 = vcmp.eq.s32.totalorder %v3208, 1
            %vm3273 = vcmp.eq.s32.totalorder %v3209, 1
            %vm3274 = vcmp.eq.s32.totalorder %v3210, 1
            %vm3275 = vcmp.eq.s32.totalorder %v3211, 1
            %vm3276 = vcmp.eq.s32.totalorder %v3212, 1
            %vm3277 = vcmp.eq.s32.totalorder %v3213, 1
            %vm3278 = vcmp.eq.s32.totalorder %v3214, 1
            %vm3279 = vcmp.eq.s32.totalorder %v3215, 1
            %vm3280 = vcmp.eq.s32.totalorder %v3216, 1
            %vm3281 = vcmp.eq.s32.totalorder %v3217, 1
            %vm3282 = vcmp.eq.s32.totalorder %v3218, 1
            %vm3283 = vcmp.eq.s32.totalorder %v3219, 1
            %vm3284 = vcmp.eq.s32.totalorder %v3220, 1
            %vm3285 = vcmp.eq.s32.totalorder %v3221, 1
            %vm3286 = vcmp.eq.s32.totalorder %v3222, 1
            %vm3287 = vcmp.eq.s32.totalorder %v3223, 1
            %vm3288 = vcmp.eq.s32.totalorder %v3224, 1
            %vm3289 = vcmp.eq.s32.totalorder %v3225, 1
            %vm3290 = vcmp.eq.s32.totalorder %v3226, 1
            %vm3291 = vcmp.eq.s32.totalorder %v3227, 1
            %vm3292 = vcmp.eq.s32.totalorder %v3228, 1
            %vm3293 = vcmp.eq.s32.totalorder %v3229, 1
            %vm3294 = vcmp.eq.s32.totalorder %v3230, 1
            %vm3295 = vcmp.eq.s32.totalorder %v3231, 1
            %vm3296 = vcmp.eq.s32.totalorder %v3232, 1
            %vm3297 = vcmp.eq.s32.totalorder %v3233, 1
            %vm3298 = vcmp.eq.s32.totalorder %v3234, 1
            %vm3299 = vcmp.eq.s32.totalorder %v3235, 1
            %vm3300 = vcmp.eq.s32.totalorder %v3236, 1
            %vm3301 = vcmp.eq.s32.totalorder %v3237, 1
            %vm3302 = vcmp.eq.s32.totalorder %v3238, 1
            %vm3303 = vcmp.eq.s32.totalorder %v3239, 1
            %vm3304 = vcmp.eq.s32.totalorder %v3240, 1
            %vm3305 = vcmp.eq.s32.totalorder %v3241, 1
            %vm3306 = vcmp.eq.s32.totalorder %v3242, 1
            %vm3307 = vcmp.eq.s32.totalorder %v3243, 1
            %vm3308 = vcmp.eq.s32.totalorder %v3244, 1
            %vm3309 = vcmp.eq.s32.totalorder %v3245, 1
            %vm3310 = vcmp.eq.s32.totalorder %v3246, 1
            %vm3311 = vcmp.eq.s32.totalorder %v3247, 1
            %vm3312 = vcmp.eq.s32.totalorder %v3248, 1
            %vm3313 = vcmp.eq.s32.totalorder %v3249, 1
            %vm3314 = vcmp.eq.s32.totalorder %v3250, 1
            %vm3315 = vcmp.eq.s32.totalorder %v3251, 1
            %vm3316 = vcmp.eq.s32.totalorder %v3252, 1
            %vm3317 = vcmp.eq.s32.totalorder %v3253, 1
            %v3318 = vsel %vm3254, %v2928, 0.0
            %v3319 = vsel %vm3255, %v2929, 0.0
            %v3320 = vsel %vm3256, %v2930, 0.0
            %v3321 = vsel %vm3257, %v2931, 0.0
            %v3322 = vsel %vm3258, %v2932, 0.0
            %v3323 = vsel %vm3259, %v2933, 0.0
            %v3324 = vsel %vm3260, %v2934, 0.0
            %v3325 = vsel %vm3261, %v2935, 0.0
            %v3326 = vsel %vm3262, %v2936, 0.0
            %v3327 = vsel %vm3263, %v2937, 0.0
            %v3328 = vsel %vm3264, %v2938, 0.0
            %v3329 = vsel %vm3265, %v2939, 0.0
            %v3330 = vsel %vm3266, %v2940, 0.0
            %v3331 = vsel %vm3267, %v2941, 0.0
            %v3332 = vsel %vm3268, %v2942, 0.0
            %v3333 = vsel %vm3269, %v2943, 0.0
            %v3334 = vsel %vm3270, %v2944, 0.0
            %v3335 = vsel %vm3271, %v2945, 0.0
            %v3336 = vsel %vm3272, %v2946, 0.0
            %v3337 = vsel %vm3273, %v2947, 0.0
            %v3338 = vsel %vm3274, %v2948, 0.0
            %v3339 = vsel %vm3275, %v2949, 0.0
            %v3340 = vsel %vm3276, %v2950, 0.0
            %v3341 = vsel %vm3277, %v2951, 0.0
            %v3342 = vsel %vm3278, %v2952, 0.0
            %v3343 = vsel %vm3279, %v2953, 0.0
            %v3344 = vsel %vm3280, %v2954, 0.0
            %v3345 = vsel %vm3281, %v2955, 0.0
            %v3346 = vsel %vm3282, %v2956, 0.0
            %v3347 = vsel %vm3283, %v2957, 0.0
            %v3348 = vsel %vm3284, %v2958, 0.0
            %v3349 = vsel %vm3285, %v2959, 0.0
            %v3350 = vsel %vm3286, %v2960, 0.0
            %v3351 = vsel %vm3287, %v2961, 0.0
            %v3352 = vsel %vm3288, %v2962, 0.0
            %v3353 = vsel %vm3289, %v2963, 0.0
            %v3354 = vsel %vm3290, %v2964, 0.0
            %v3355 = vsel %vm3291, %v2965, 0.0
            %v3356 = vsel %vm3292, %v2966, 0.0
            %v3357 = vsel %vm3293, %v2967, 0.0
            %v3358 = vsel %vm3294, %v2968, 0.0
            %v3359 = vsel %vm3295, %v2969, 0.0
            %v3360 = vsel %vm3296, %v2970, 0.0
            %v3361 = vsel %vm3297, %v2971, 0.0
            %v3362 = vsel %vm3298, %v2972, 0.0
            %v3363 = vsel %vm3299, %v2973, 0.0
            %v3364 = vsel %vm3300, %v2974, 0.0
            %v3365 = vsel %vm3301, %v2975, 0.0
            %v3366 = vsel %vm3302, %v2976, 0.0
            %v3367 = vsel %vm3303, %v2977, 0.0
            %v3368 = vsel %vm3304, %v2978, 0.0
            %v3369 = vsel %vm3305, %v2979, 0.0
            %v3370 = vsel %vm3306, %v2980, 0.0
            %v3371 = vsel %vm3307, %v2981, 0.0
            %v3372 = vsel %vm3308, %v2982, 0.0
            %v3373 = vsel %vm3309, %v2983, 0.0
            %v3374 = vsel %vm3310, %v2984, 0.0
            %v3375 = vsel %vm3311, %v2985, 0.0
            %v3376 = vsel %vm3312, %v2986, 0.0
            %v3377 = vsel %vm3313, %v2987, 0.0
            %v3378 = vsel %vm3314, %v2988, 0.0
            %v3379 = vsel %vm3315, %v2989, 0.0
            %v3380 = vsel %vm3316, %v2990, 0.0
            %v3381 = vsel %vm3317, %v2991, 0.0
            %v3382 = vld [vmem:[#allocation4] sm:$0x1]
            %v3383 = vadd.f32 %v3318, %v3319
            %v3384 = vadd.f32 %v3383, %v3320
            %v3385 = vadd.f32 %v3384, %v3321
            %v3386 = vadd.f32 %v3385, %v3322
            %v3387 = vadd.f32 %v3386, %v3323
            %v3388 = vadd.f32 %v3387, %v3324
            %v3389 = vadd.f32 %v3388, %v3325
            %v3390 = vadd.f32 %v3389, %v3326
            %v3391 = vadd.f32 %v3390, %v3327
            %v3392 = vadd.f32 %v3391, %v3328
            %v3393 = vadd.f32 %v3392, %v3329
            %v3394 = vadd.f32 %v3393, %v3330
            %v3395 = vadd.f32 %v3394, %v3331
            %v3396 = vadd.f32 %v3395, %v3332
            %v3397 = vadd.f32 %v3396, %v3333
            %v3398 = vadd.f32 %v3397, %v3334
            %v3399 = vadd.f32 %v3398, %v3335
            %v3400 = vadd.f32 %v3399, %v3336
            %v3401 = vadd.f32 %v3400, %v3337
            %v3402 = vadd.f32 %v3401, %v3338
            %v3403 = vadd.f32 %v3402, %v3339
            %v3404 = vadd.f32 %v3403, %v3340
            %v3405 = vadd.f32 %v3404, %v3341
            %v3406 = vadd.f32 %v3405, %v3342
            %v3407 = vadd.f32 %v3406, %v3343
            %v3408 = vadd.f32 %v3407, %v3344
            %v3409 = vadd.f32 %v3408, %v3345
            %v3410 = vadd.f32 %v3409, %v3346
            %v3411 = vadd.f32 %v3410, %v3347
            %v3412 = vadd.f32 %v3411, %v3348
            %v3413 = vadd.f32 %v3412, %v3349
            %v3414 = vadd.f32 %v3413, %v3350
            %v3415 = vadd.f32 %v3414, %v3351
            %v3416 = vadd.f32 %v3415, %v3352
            %v3417 = vadd.f32 %v3416, %v3353
            %v3418 = vadd.f32 %v3417, %v3354
            %v3419 = vadd.f32 %v3418, %v3355
            %v3420 = vadd.f32 %v3419, %v3356
            %v3421 = vadd.f32 %v3420, %v3357
            %v3422 = vadd.f32 %v3421, %v3358
            %v3423 = vadd.f32 %v3422, %v3359
            %v3424 = vadd.f32 %v3423, %v3360
            %v3425 = vadd.f32 %v3424, %v3361
            %v3426 = vadd.f32 %v3425, %v3362
            %v3427 = vadd.f32 %v3426, %v3363
            %v3428 = vadd.f32 %v3427, %v3364
            %v3429 = vadd.f32 %v3428, %v3365
            %v3430 = vadd.f32 %v3429, %v3366
            %v3431 = vadd.f32 %v3430, %v3367
            %v3432 = vadd.f32 %v3431, %v3368
            %v3433 = vadd.f32 %v3432, %v3369
            %v3434 = vadd.f32 %v3433, %v3370
            %v3435 = vadd.f32 %v3434, %v3371
            %v3436 = vadd.f32 %v3435, %v3372
            %v3437 = vadd.f32 %v3436, %v3373
            %v3438 = vadd.f32 %v3437, %v3374
            %v3439 = vadd.f32 %v3438, %v3375
            %v3440 = vadd.f32 %v3439, %v3376
            %v3441 = vadd.f32 %v3440, %v3377
            %v3442 = vadd.f32 %v3441, %v3378
            %v3443 = vadd.f32 %v3442, %v3379
            %v3444 = vadd.f32 %v3443, %v3380
            %v3445 = vadd.f32 %v3444, %v3381
            %v3446 = vrot.slane %v3445, 4
            %v3447 = vadd.f32 %v3445, %v3446
            %v3448 = vrot.slane %v3447, 2
            %v3449 = vadd.f32 %v3447, %v3448
            %v3450 = vrot.slane %v3449, 1
            %v3451 = vadd.f32 %v3449, %v3450
            %v3452 = vadd.f32 %v3382, %v3451
            %3453 = vst [vmem:[#allocation4] sm:$0x1] %v3452
            %v3454 = vld [vmem:[#allocation5] sm:$0x1]
            %v3455 = vmul.f32 %v3318, %v3318
            %v3456 = vmul.f32 %v3319, %v3319
            %v3457 = vmul.f32 %v3320, %v3320
            %v3458 = vmul.f32 %v3321, %v3321
            %v3459 = vmul.f32 %v3322, %v3322
            %v3460 = vmul.f32 %v3323, %v3323
            %v3461 = vmul.f32 %v3324, %v3324
            %v3462 = vmul.f32 %v3325, %v3325
            %v3463 = vmul.f32 %v3326, %v3326
            %v3464 = vmul.f32 %v3327, %v3327
            %v3465 = vmul.f32 %v3328, %v3328
            %v3466 = vmul.f32 %v3329, %v3329
            %v3467 = vmul.f32 %v3330, %v3330
            %v3468 = vmul.f32 %v3331, %v3331
            %v3469 = vmul.f32 %v3332, %v3332
            %v3470 = vmul.f32 %v3333, %v3333
            %v3471 = vmul.f32 %v3334, %v3334
            %v3472 = vmul.f32 %v3335, %v3335
            %v3473 = vmul.f32 %v3336, %v3336
            %v3474 = vmul.f32 %v3337, %v3337
            %v3475 = vmul.f32 %v3338, %v3338
            %v3476 = vmul.f32 %v3339, %v3339
            %v3477 = vmul.f32 %v3340, %v3340
            %v3478 = vmul.f32 %v3341, %v3341
            %v3479 = vmul.f32 %v3342, %v3342
            %v3480 = vmul.f32 %v3343, %v3343
            %v3481 = vmul.f32 %v3344, %v3344
            %v3482 = vmul.f32 %v3345, %v3345
            %v3483 = vmul.f32 %v3346, %v3346
            %v3484 = vmul.f32 %v3347, %v3347
            %v3485 = vmul.f32 %v3348, %v3348
            %v3486 = vmul.f32 %v3349, %v3349
            %v3487 = vmul.f32 %v3350, %v3350
            %v3488 = vmul.f32 %v3351, %v3351
            %v3489 = vmul.f32 %v3352, %v3352
            %v3490 = vmul.f32 %v3353, %v3353
            %v3491 = vmul.f32 %v3354, %v3354
            %v3492 = vmul.f32 %v3355, %v3355
            %v3493 = vmul.f32 %v3356, %v3356
            %v3494 = vmul.f32 %v3357, %v3357
            %v3495 = vmul.f32 %v3358, %v3358
            %v3496 = vmul.f32 %v3359, %v3359
            %v3497 = vmul.f32 %v3360, %v3360
            %v3498 = vmul.f32 %v3361, %v3361
            %v3499 = vmul.f32 %v3362, %v3362
            %v3500 = vmul.f32 %v3363, %v3363
            %v3501 = vmul.f32 %v3364, %v3364
            %v3502 = vmul.f32 %v3365, %v3365
            %v3503 = vmul.f32 %v3366, %v3366
            %v3504 = vmul.f32 %v3367, %v3367
            %v3505 = vmul.f32 %v3368, %v3368
            %v3506 = vmul.f32 %v3369, %v3369
            %v3507 = vmul.f32 %v3370, %v3370
            %v3508 = vmul.f32 %v3371, %v3371
            %v3509 = vmul.f32 %v3372, %v3372
            %v3510 = vmul.f32 %v3373, %v3373
            %v3511 = vmul.f32 %v3374, %v3374
            %v3512 = vmul.f32 %v3375, %v3375
            %v3513 = vmul.f32 %v3376, %v3376
            %v3514 = vmul.f32 %v3377, %v3377
            %v3515 = vmul.f32 %v3378, %v3378
            %v3516 = vmul.f32 %v3379, %v3379
            %v3517 = vmul.f32 %v3380, %v3380
            %v3518 = vmul.f32 %v3381, %v3381
            %v3519 = vadd.f32 %v3455, %v3456
            %v3520 = vadd.f32 %v3519, %v3457
            %v3521 = vadd.f32 %v3520, %v3458
            %v3522 = vadd.f32 %v3521, %v3459
            %v3523 = vadd.f32 %v3522, %v3460
            %v3524 = vadd.f32 %v3523, %v3461
            %v3525 = vadd.f32 %v3524, %v3462
            %v3526 = vadd.f32 %v3525, %v3463
            %v3527 = vadd.f32 %v3526, %v3464
            %v3528 = vadd.f32 %v3527, %v3465
            %v3529 = vadd.f32 %v3528, %v3466
            %v3530 = vadd.f32 %v3529, %v3467
            %v3531 = vadd.f32 %v3530, %v3468
            %v3532 = vadd.f32 %v3531, %v3469
            %v3533 = vadd.f32 %v3532, %v3470
            %v3534 = vadd.f32 %v3533, %v3471
            %v3535 = vadd.f32 %v3534, %v3472
            %v3536 = vadd.f32 %v3535, %v3473
            %v3537 = vadd.f32 %v3536, %v3474
            %v3538 = vadd.f32 %v3537, %v3475
            %v3539 = vadd.f32 %v3538, %v3476
            %v3540 = vadd.f32 %v3539, %v3477
            %v3541 = vadd.f32 %v3540, %v3478
            %v3542 = vadd.f32 %v3541, %v3479
            %v3543 = vadd.f32 %v3542, %v3480
            %v3544 = vadd.f32 %v3543, %v3481
            %v3545 = vadd.f32 %v3544, %v3482
            %v3546 = vadd.f32 %v3545, %v3483
            %v3547 = vadd.f32 %v3546, %v3484
            %v3548 = vadd.f32 %v3547, %v3485
            %v3549 = vadd.f32 %v3548, %v3486
            %v3550 = vadd.f32 %v3549, %v3487
            %v3551 = vadd.f32 %v3550, %v3488
            %v3552 = vadd.f32 %v3551, %v3489
            %v3553 = vadd.f32 %v3552, %v3490
            %v3554 = vadd.f32 %v3553, %v3491
            %v3555 = vadd.f32 %v3554, %v3492
            %v3556 = vadd.f32 %v3555, %v3493
            %v3557 = vadd.f32 %v3556, %v3494
            %v3558 = vadd.f32 %v3557, %v3495
            %v3559 = vadd.f32 %v3558, %v3496
            %v3560 = vadd.f32 %v3559, %v3497
            %v3561 = vadd.f32 %v3560, %v3498
            %v3562 = vadd.f32 %v3561, %v3499
            %v3563 = vadd.f32 %v3562, %v3500
            %v3564 = vadd.f32 %v3563, %v3501
            %v3565 = vadd.f32 %v3564, %v3502
            %v3566 = vadd.f32 %v3565, %v3503
            %v3567 = vadd.f32 %v3566, %v3504
            %v3568 = vadd.f32 %v3567, %v3505
            %v3569 = vadd.f32 %v3568, %v3506
            %v3570 = vadd.f32 %v3569, %v3507
            %v3571 = vadd.f32 %v3570, %v3508
            %v3572 = vadd.f32 %v3571, %v3509
            %v3573 = vadd.f32 %v3572, %v3510
            %v3574 = vadd.f32 %v3573, %v3511
            %v3575 = vadd.f32 %v3574, %v3512
            %v3576 = vadd.f32 %v3575, %v3513
            %v3577 = vadd.f32 %v3576, %v3514
            %v3578 = vadd.f32 %v3577, %v3515
            %v3579 = vadd.f32 %v3578, %v3516
            %v3580 = vadd.f32 %v3579, %v3517
            %v3581 = vadd.f32 %v3580, %v3518
            %v3582 = vrot.slane %v3581, 4
            %v3583 = vadd.f32 %v3581, %v3582
            %v3584 = vrot.slane %v3583, 2
            %v3585 = vadd.f32 %v3583, %v3584
            %v3586 = vrot.slane %v3585, 1
            %v3587 = vadd.f32 %v3585, %v3586
            %v3588 = vadd.f32 %v3454, %v3587
            %3589 = vst [vmem:[#allocation5] sm:$0x1] %v3588
          $region104: #{tpu_custom_call.1} parent=91 // pred_fallthru
            _
          %p3590 = scmp.ne.s32.totalorder %s33, 1
          // Predicated region
          $region105: #{tpu_custom_call.1} parent=91 // pred_check
            %p3591 = pneg %p3590
          $region106: #{tpu_custom_call.1} parent=91 // pred_check_branch
            %3593 = sbr.rel (%p3591) target = $region108
          $region107: #{tpu_custom_call.1} parent=91 // pred_region
            %v3594 = vld [vmem:[#allocation4] sm:$0x1]
            %v3595 = vadd.f32 %v2928, %v2929
            %v3596 = vadd.f32 %v3595, %v2930
            %v3597 = vadd.f32 %v3596, %v2931
            %v3598 = vadd.f32 %v3597, %v2932
            %v3599 = vadd.f32 %v3598, %v2933
            %v3600 = vadd.f32 %v3599, %v2934
            %v3601 = vadd.f32 %v3600, %v2935
            %v3602 = vadd.f32 %v3601, %v2936
            %v3603 = vadd.f32 %v3602, %v2937
            %v3604 = vadd.f32 %v3603, %v2938
            %v3605 = vadd.f32 %v3604, %v2939
            %v3606 = vadd.f32 %v3605, %v2940
            %v3607 = vadd.f32 %v3606, %v2941
            %v3608 = vadd.f32 %v3607, %v2942
            %v3609 = vadd.f32 %v3608, %v2943
            %v3610 = vadd.f32 %v3609, %v2944
            %v3611 = vadd.f32 %v3610, %v2945
            %v3612 = vadd.f32 %v3611, %v2946
            %v3613 = vadd.f32 %v3612, %v2947
            %v3614 = vadd.f32 %v3613, %v2948
            %v3615 = vadd.f32 %v3614, %v2949
            %v3616 = vadd.f32 %v3615, %v2950
            %v3617 = vadd.f32 %v3616, %v2951
            %v3618 = vadd.f32 %v3617, %v2952
            %v3619 = vadd.f32 %v3618, %v2953
            %v3620 = vadd.f32 %v3619, %v2954
            %v3621 = vadd.f32 %v3620, %v2955
            %v3622 = vadd.f32 %v3621, %v2956
            %v3623 = vadd.f32 %v3622, %v2957
            %v3624 = vadd.f32 %v3623, %v2958
            %v3625 = vadd.f32 %v3624, %v2959
            %v3626 = vadd.f32 %v3625, %v2960
            %v3627 = vadd.f32 %v3626, %v2961
            %v3628 = vadd.f32 %v3627, %v2962
            %v3629 = vadd.f32 %v3628, %v2963
            %v3630 = vadd.f32 %v3629, %v2964
            %v3631 = vadd.f32 %v3630, %v2965
            %v3632 = vadd.f32 %v3631, %v2966
            %v3633 = vadd.f32 %v3632, %v2967
            %v3634 = vadd.f32 %v3633, %v2968
            %v3635 = vadd.f32 %v3634, %v2969
            %v3636 = vadd.f32 %v3635, %v2970
            %v3637 = vadd.f32 %v3636, %v2971
            %v3638 = vadd.f32 %v3637, %v2972
            %v3639 = vadd.f32 %v3638, %v2973
            %v3640 = vadd.f32 %v3639, %v2974
            %v3641 = vadd.f32 %v3640, %v2975
            %v3642 = vadd.f32 %v3641, %v2976
            %v3643 = vadd.f32 %v3642, %v2977
            %v3644 = vadd.f32 %v3643, %v2978
            %v3645 = vadd.f32 %v3644, %v2979
            %v3646 = vadd.f32 %v3645, %v2980
            %v3647 = vadd.f32 %v3646, %v2981
            %v3648 = vadd.f32 %v3647, %v2982
            %v3649 = vadd.f32 %v3648, %v2983
            %v3650 = vadd.f32 %v3649, %v2984
            %v3651 = vadd.f32 %v3650, %v2985
            %v3652 = vadd.f32 %v3651, %v2986
            %v3653 = vadd.f32 %v3652, %v2987
            %v3654 = vadd.f32 %v3653, %v2988
            %v3655 = vadd.f32 %v3654, %v2989
            %v3656 = vadd.f32 %v3655, %v2990
            %v3657 = vadd.f32 %v3656, %v2991
            %v3658 = vrot.slane %v3657, 4
            %v3659 = vadd.f32 %v3657, %v3658
            %v3660 = vrot.slane %v3659, 2
            %v3661 = vadd.f32 %v3659, %v3660
            %v3662 = vrot.slane %v3661, 1
            %v3663 = vadd.f32 %v3661, %v3662
            %v3664 = vadd.f32 %v3594, %v3663
            %3665 = vst [vmem:[#allocation4] sm:$0x1] %v3664
            %v3666 = vld [vmem:[#allocation5] sm:$0x1]
            %v3667 = vmul.f32 %v2928, %v2928
            %v3668 = vmul.f32 %v2929, %v2929
            %v3669 = vmul.f32 %v2930, %v2930
            %v3670 = vmul.f32 %v2931, %v2931
            %v3671 = vmul.f32 %v2932, %v2932
            %v3672 = vmul.f32 %v2933, %v2933
            %v3673 = vmul.f32 %v2934, %v2934
            %v3674 = vmul.f32 %v2935, %v2935
            %v3675 = vmul.f32 %v2936, %v2936
            %v3676 = vmul.f32 %v2937, %v2937
            %v3677 = vmul.f32 %v2938, %v2938
            %v3678 = vmul.f32 %v2939, %v2939
            %v3679 = vmul.f32 %v2940, %v2940
            %v3680 = vmul.f32 %v2941, %v2941
            %v3681 = vmul.f32 %v2942, %v2942
            %v3682 = vmul.f32 %v2943, %v2943
            %v3683 = vmul.f32 %v2944, %v2944
            %v3684 = vmul.f32 %v2945, %v2945
            %v3685 = vmul.f32 %v2946, %v2946
            %v3686 = vmul.f32 %v2947, %v2947
            %v3687 = vmul.f32 %v2948, %v2948
            %v3688 = vmul.f32 %v2949, %v2949
            %v3689 = vmul.f32 %v2950, %v2950
            %v3690 = vmul.f32 %v2951, %v2951
            %v3691 = vmul.f32 %v2952, %v2952
            %v3692 = vmul.f32 %v2953, %v2953
            %v3693 = vmul.f32 %v2954, %v2954
            %v3694 = vmul.f32 %v2955, %v2955
            %v3695 = vmul.f32 %v2956, %v2956
            %v3696 = vmul.f32 %v2957, %v2957
            %v3697 = vmul.f32 %v2958, %v2958
            %v3698 = vmul.f32 %v2959, %v2959
            %v3699 = vmul.f32 %v2960, %v2960
            %v3700 = vmul.f32 %v2961, %v2961
            %v3701 = vmul.f32 %v2962, %v2962
            %v3702 = vmul.f32 %v2963, %v2963
            %v3703 = vmul.f32 %v2964, %v2964
            %v3704 = vmul.f32 %v2965, %v2965
            %v3705 = vmul.f32 %v2966, %v2966
            %v3706 = vmul.f32 %v2967, %v2967
            %v3707 = vmul.f32 %v2968, %v2968
            %v3708 = vmul.f32 %v2969, %v2969
            %v3709 = vmul.f32 %v2970, %v2970
            %v3710 = vmul.f32 %v2971, %v2971
            %v3711 = vmul.f32 %v2972, %v2972
            %v3712 = vmul.f32 %v2973, %v2973
            %v3713 = vmul.f32 %v2974, %v2974
            %v3714 = vmul.f32 %v2975, %v2975
            %v3715 = vmul.f32 %v2976, %v2976
            %v3716 = vmul.f32 %v2977, %v2977
            %v3717 = vmul.f32 %v2978, %v2978
            %v3718 = vmul.f32 %v2979, %v2979
            %v3719 = vmul.f32 %v2980, %v2980
            %v3720 = vmul.f32 %v2981, %v2981
            %v3721 = vmul.f32 %v2982, %v2982
            %v3722 = vmul.f32 %v2983, %v2983
            %v3723 = vmul.f32 %v2984, %v2984
            %v3724 = vmul.f32 %v2985, %v2985
            %v3725 = vmul.f32 %v2986, %v2986
            %v3726 = vmul.f32 %v2987, %v2987
            %v3727 = vmul.f32 %v2988, %v2988
            %v3728 = vmul.f32 %v2989, %v2989
            %v3729 = vmul.f32 %v2990, %v2990
            %v3730 = vmul.f32 %v2991, %v2991
            %v3731 = vadd.f32 %v3667, %v3668
            %v3732 = vadd.f32 %v3731, %v3669
            %v3733 = vadd.f32 %v3732, %v3670
            %v3734 = vadd.f32 %v3733, %v3671
            %v3735 = vadd.f32 %v3734, %v3672
            %v3736 = vadd.f32 %v3735, %v3673
            %v3737 = vadd.f32 %v3736, %v3674
            %v3738 = vadd.f32 %v3737, %v3675
            %v3739 = vadd.f32 %v3738, %v3676
            %v3740 = vadd.f32 %v3739, %v3677
            %v3741 = vadd.f32 %v3740, %v3678
            %v3742 = vadd.f32 %v3741, %v3679
            %v3743 = vadd.f32 %v3742, %v3680
            %v3744 = vadd.f32 %v3743, %v3681
            %v3745 = vadd.f32 %v3744, %v3682
            %v3746 = vadd.f32 %v3745, %v3683
            %v3747 = vadd.f32 %v3746, %v3684
            %v3748 = vadd.f32 %v3747, %v3685
            %v3749 = vadd.f32 %v3748, %v3686
            %v3750 = vadd.f32 %v3749, %v3687
            %v3751 = vadd.f32 %v3750, %v3688
            %v3752 = vadd.f32 %v3751, %v3689
            %v3753 = vadd.f32 %v3752, %v3690
            %v3754 = vadd.f32 %v3753, %v3691
            %v3755 = vadd.f32 %v3754, %v3692
            %v3756 = vadd.f32 %v3755, %v3693
            %v3757 = vadd.f32 %v3756, %v3694
            %v3758 = vadd.f32 %v3757, %v3695
            %v3759 = vadd.f32 %v3758, %v3696
            %v3760 = vadd.f32 %v3759, %v3697
            %v3761 = vadd.f32 %v3760, %v3698
            %v3762 = vadd.f32 %v3761, %v3699
            %v3763 = vadd.f32 %v3762, %v3700
            %v3764 = vadd.f32 %v3763, %v3701
            %v3765 = vadd.f32 %v3764, %v3702
            %v3766 = vadd.f32 %v3765, %v3703
            %v3767 = vadd.f32 %v3766, %v3704
            %v3768 = vadd.f32 %v3767, %v3705
            %v3769 = vadd.f32 %v3768, %v3706
            %v3770 = vadd.f32 %v3769, %v3707
            %v3771 = vadd.f32 %v3770, %v3708
            %v3772 = vadd.f32 %v3771, %v3709
            %v3773 = vadd.f32 %v3772, %v3710
            %v3774 = vadd.f32 %v3773, %v3711
            %v3775 = vadd.f32 %v3774, %v3712
            %v3776 = vadd.f32 %v3775, %v3713
            %v3777 = vadd.f32 %v3776, %v3714
            %v3778 = vadd.f32 %v3777, %v3715
            %v3779 = vadd.f32 %v3778, %v3716
            %v3780 = vadd.f32 %v3779, %v3717
            %v3781 = vadd.f32 %v3780, %v3718
            %v3782 = vadd.f32 %v3781, %v3719
            %v3783 = vadd.f32 %v3782, %v3720
            %v3784 = vadd.f32 %v3783, %v3721
            %v3785 = vadd.f32 %v3784, %v3722
            %v3786 = vadd.f32 %v3785, %v3723
            %v3787 = vadd.f32 %v3786, %v3724
            %v3788 = vadd.f32 %v3787, %v3725
            %v3789 = vadd.f32 %v3788, %v3726
            %v3790 = vadd.f32 %v3789, %v3727
            %v3791 = vadd.f32 %v3790, %v3728
            %v3792 = vadd.f32 %v3791, %v3729
            %v3793 = vadd.f32 %v3792, %v3730
            %v3794 = vrot.slane %v3793, 4
            %v3795 = vadd.f32 %v3793, %v3794
            %v3796 = vrot.slane %v3795, 2
            %v3797 = vadd.f32 %v3795, %v3796
            %v3798 = vrot.slane %v3797, 1
            %v3799 = vadd.f32 %v3797, %v3798
            %v3800 = vadd.f32 %v3666, %v3799
            %3801 = vst [vmem:[#allocation5] sm:$0x1] %v3800
          $region108: #{tpu_custom_call.1} parent=91 // pred_fallthru
            _
          %v3802 = vpack.c.bf16 %v2929, %v2928
          %v3803 = vpack.c.bf16 %v2931, %v2930
          %v3804 = vpack.c.bf16 %v2933, %v2932
          %v3805 = vpack.c.bf16 %v2935, %v2934
          %v3806 = vpack.c.bf16 %v2937, %v2936
          %v3807 = vpack.c.bf16 %v2939, %v2938
          %v3808 = vpack.c.bf16 %v2941, %v2940
          %v3809 = vpack.c.bf16 %v2943, %v2942
          %v3810 = vpack.c.bf16 %v2945, %v2944
          %v3811 = vpack.c.bf16 %v2947, %v2946
          %v3812 = vpack.c.bf16 %v2949, %v2948
          %v3813 = vpack.c.bf16 %v2951, %v2950
          %v3814 = vpack.c.bf16 %v2953, %v2952
          %v3815 = vpack.c.bf16 %v2955, %v2954
          %v3816 = vpack.c.bf16 %v2957, %v2956
          %v3817 = vpack.c.bf16 %v2959, %v2958
          %v3818 = vpack.c.bf16 %v2961, %v2960
          %v3819 = vpack.c.bf16 %v2963, %v2962
          %v3820 = vpack.c.bf16 %v2965, %v2964
          %v3821 = vpack.c.bf16 %v2967, %v2966
          %v3822 = vpack.c.bf16 %v2969, %v2968
          %v3823 = vpack.c.bf16 %v2971, %v2970
          %v3824 = vpack.c.bf16 %v2973, %v2972
          %v3825 = vpack.c.bf16 %v2975, %v2974
          %v3826 = vpack.c.bf16 %v2977, %v2976
          %v3827 = vpack.c.bf16 %v2979, %v2978
          %v3828 = vpack.c.bf16 %v2981, %v2980
          %v3829 = vpack.c.bf16 %v2983, %v2982
          %v3830 = vpack.c.bf16 %v2985, %v2984
          %v3831 = vpack.c.bf16 %v2987, %v2986
          %v3832 = vpack.c.bf16 %v2989, %v2988
          %v3833 = vpack.c.bf16 %v2991, %v2990
          %v3866 = vunpack.c.l.b16 %v3802
          %v3867 = vunpack.c.h.b16 %v3802
          %v3868 = vunpack.c.l.b16 %v3803
          %v3869 = vunpack.c.h.b16 %v3803
          %v3870 = vunpack.c.l.b16 %v3804
          %v3871 = vunpack.c.h.b16 %v3804
          %v3872 = vunpack.c.l.b16 %v3805
          %v3873 = vunpack.c.h.b16 %v3805
          %v3874 = vunpack.c.l.b16 %v3806
          %v3875 = vunpack.c.h.b16 %v3806
          %v3876 = vunpack.c.l.b16 %v3807
          %v3877 = vunpack.c.h.b16 %v3807
          %v3878 = vunpack.c.l.b16 %v3808
          %v3879 = vunpack.c.h.b16 %v3808
          %v3880 = vunpack.c.l.b16 %v3809
          %v3881 = vunpack.c.h.b16 %v3809
          %v3882 = vunpack.c.l.b16 %v3810
          %v3883 = vunpack.c.h.b16 %v3810
          %v3884 = vunpack.c.l.b16 %v3811
          %v3885 = vunpack.c.h.b16 %v3811
          %v3886 = vunpack.c.l.b16 %v3812
          %v3887 = vunpack.c.h.b16 %v3812
          %v3888 = vunpack.c.l.b16 %v3813
          %v3889 = vunpack.c.h.b16 %v3813
          %v3890 = vunpack.c.l.b16 %v3814
          %v3891 = vunpack.c.h.b16 %v3814
          %v3892 = vunpack.c.l.b16 %v3815
          %v3893 = vunpack.c.h.b16 %v3815
          %v3894 = vunpack.c.l.b16 %v3816
          %v3895 = vunpack.c.h.b16 %v3816
          %v3896 = vunpack.c.l.b16 %v3817
          %v3897 = vunpack.c.h.b16 %v3817
          %v3898 = vunpack.c.l.b16 %v3818
          %v3899 = vunpack.c.h.b16 %v3818
          %v3900 = vunpack.c.l.b16 %v3819
          %v3901 = vunpack.c.h.b16 %v3819
          %v3902 = vunpack.c.l.b16 %v3820
          %v3903 = vunpack.c.h.b16 %v3820
          %v3904 = vunpack.c.l.b16 %v3821
          %v3905 = vunpack.c.h.b16 %v3821
          %v3906 = vunpack.c.l.b16 %v3822
          %v3907 = vunpack.c.h.b16 %v3822
          %v3908 = vunpack.c.l.b16 %v3823
          %v3909 = vunpack.c.h.b16 %v3823
          %v3910 = vunpack.c.l.b16 %v3824
          %v3911 = vunpack.c.h.b16 %v3824
          %v3912 = vunpack.c.l.b16 %v3825
          %v3913 = vunpack.c.h.b16 %v3825
          %v3914 = vunpack.c.l.b16 %v3826
          %v3915 = vunpack.c.h.b16 %v3826
          %v3916 = vunpack.c.l.b16 %v3827
          %v3917 = vunpack.c.h.b16 %v3827
          %v3918 = vunpack.c.l.b16 %v3828
          %v3919 = vunpack.c.h.b16 %v3828
          %v3920 = vunpack.c.l.b16 %v3829
          %v3921 = vunpack.c.h.b16 %v3829
          %v3922 = vunpack.c.l.b16 %v3830
          %v3923 = vunpack.c.h.b16 %v3830
          %v3924 = vunpack.c.l.b16 %v3831
          %v3925 = vunpack.c.h.b16 %v3831
          %v3926 = vunpack.c.l.b16 %v3832
          %v3927 = vunpack.c.h.b16 %v3832
          %v3928 = vunpack.c.l.b16 %v3833
          %v3929 = vunpack.c.h.b16 %v3833
          %v3930 = vpack.c.b16 %v3866, %v3866
          %v3931 = vpack.c.b16 %v3867, %v3867
          %v3932 = vpack.c.b16 %v3868, %v3868
          %v3933 = vpack.c.b16 %v3869, %v3869
          %v3934 = vpack.c.b16 %v3870, %v3870
          %v3935 = vpack.c.b16 %v3871, %v3871
          %v3936 = vpack.c.b16 %v3872, %v3872
          %v3937 = vpack.c.b16 %v3873, %v3873
          %v3938 = vpack.c.b16 %v3874, %v3874
          %v3939 = vpack.c.b16 %v3875, %v3875
          %v3940 = vpack.c.b16 %v3876, %v3876
          %v3941 = vpack.c.b16 %v3877, %v3877
          %v3942 = vpack.c.b16 %v3878, %v3878
          %v3943 = vpack.c.b16 %v3879, %v3879
          %v3944 = vpack.c.b16 %v3880, %v3880
          %v3945 = vpack.c.b16 %v3881, %v3881
          %v3946 = vpack.c.b16 %v3882, %v3882
          %v3947 = vpack.c.b16 %v3883, %v3883
          %v3948 = vpack.c.b16 %v3884, %v3884
          %v3949 = vpack.c.b16 %v3885, %v3885
          %v3950 = vpack.c.b16 %v3886, %v3886
          %v3951 = vpack.c.b16 %v3887, %v3887
          %v3952 = vpack.c.b16 %v3888, %v3888
          %v3953 = vpack.c.b16 %v3889, %v3889
          %v3954 = vpack.c.b16 %v3890, %v3890
          %v3955 = vpack.c.b16 %v3891, %v3891
          %v3956 = vpack.c.b16 %v3892, %v3892
          %v3957 = vpack.c.b16 %v3893, %v3893
          %v3958 = vpack.c.b16 %v3894, %v3894
          %v3959 = vpack.c.b16 %v3895, %v3895
          %v3960 = vpack.c.b16 %v3896, %v3896
          %v3961 = vpack.c.b16 %v3897, %v3897
          %v3962 = vpack.c.b16 %v3898, %v3898
          %v3963 = vpack.c.b16 %v3899, %v3899
          %v3964 = vpack.c.b16 %v3900, %v3900
          %v3965 = vpack.c.b16 %v3901, %v3901
          %v3966 = vpack.c.b16 %v3902, %v3902
          %v3967 = vpack.c.b16 %v3903, %v3903
          %v3968 = vpack.c.b16 %v3904, %v3904
          %v3969 = vpack.c.b16 %v3905, %v3905
          %v3970 = vpack.c.b16 %v3906, %v3906
          %v3971 = vpack.c.b16 %v3907, %v3907
          %v3972 = vpack.c.b16 %v3908, %v3908
          %v3973 = vpack.c.b16 %v3909, %v3909
          %v3974 = vpack.c.b16 %v3910, %v3910
          %v3975 = vpack.c.b16 %v3911, %v3911
          %v3976 = vpack.c.b16 %v3912, %v3912
          %v3977 = vpack.c.b16 %v3913, %v3913
          %v3978 = vpack.c.b16 %v3914, %v3914
          %v3979 = vpack.c.b16 %v3915, %v3915
          %v3980 = vpack.c.b16 %v3916, %v3916
          %v3981 = vpack.c.b16 %v3917, %v3917
          %v3982 = vpack.c.b16 %v3918, %v3918
          %v3983 = vpack.c.b16 %v3919, %v3919
          %v3984 = vpack.c.b16 %v3920, %v3920
          %v3985 = vpack.c.b16 %v3921, %v3921
          %v3986 = vpack.c.b16 %v3922, %v3922
          %v3987 = vpack.c.b16 %v3923, %v3923
          %v3988 = vpack.c.b16 %v3924, %v3924
          %v3989 = vpack.c.b16 %v3925, %v3925
          %v3990 = vpack.c.b16 %v3926, %v3926
          %v3991 = vpack.c.b16 %v3927, %v3927
          %v3992 = vpack.c.b16 %v3928, %v3928
          %v3993 = vpack.c.b16 %v3929, %v3929
          %4058 = vst [vmem:[#allocation2] sm:$0xf] %v3930
          %4059 = vst [vmem:[#allocation2 + $0x4] sm:$0xf] %v3931
          %4060 = vst [vmem:[#allocation2 + $0x8] sm:$0xf] %v3932
          %4061 = vst [vmem:[#allocation2 + $0xc] sm:$0xf] %v3933
          %4062 = vst [vmem:[#allocation2 + $0x10] sm:$0xf] %v3934
          %4063 = vst [vmem:[#allocation2 + $0x14] sm:$0xf] %v3935
          %4064 = vst [vmem:[#allocation2 + $0x18] sm:$0xf] %v3936
          %4065 = vst [vmem:[#allocation2 + $0x1c] sm:$0xf] %v3937
          %4066 = vst [vmem:[#allocation2 + $0x20] sm:$0xf] %v3938
          %4067 = vst [vmem:[#allocation2 + $0x24] sm:$0xf] %v3939
          %4068 = vst [vmem:[#allocation2 + $0x28] sm:$0xf] %v3940
          %4069 = vst [vmem:[#allocation2 + $0x2c] sm:$0xf] %v3941
          %4070 = vst [vmem:[#allocation2 + $0x30] sm:$0xf] %v3942
          %4071 = vst [vmem:[#allocation2 + $0x34] sm:$0xf] %v3943
          %4072 = vst [vmem:[#allocation2 + $0x38] sm:$0xf] %v3944
          %4073 = vst [vmem:[#allocation2 + $0x3c] sm:$0xf] %v3945
          %4074 = vst [vmem:[#allocation2 + $0x40] sm:$0xf] %v3946
          %4075 = vst [vmem:[#allocation2 + $0x44] sm:$0xf] %v3947
          %4076 = vst [vmem:[#allocation2 + $0x48] sm:$0xf] %v3948
          %4077 = vst [vmem:[#allocation2 + $0x4c] sm:$0xf] %v3949
          %4078 = vst [vmem:[#allocation2 + $0x50] sm:$0xf] %v3950
          %4079 = vst [vmem:[#allocation2 + $0x54] sm:$0xf] %v3951
          %4080 = vst [vmem:[#allocation2 + $0x58] sm:$0xf] %v3952
          %4081 = vst [vmem:[#allocation2 + $0x5c] sm:$0xf] %v3953
          %4082 = vst [vmem:[#allocation2 + $0x60] sm:$0xf] %v3954
          %4083 = vst [vmem:[#allocation2 + $0x64] sm:$0xf] %v3955
          %4084 = vst [vmem:[#allocation2 + $0x68] sm:$0xf] %v3956
          %4085 = vst [vmem:[#allocation2 + $0x6c] sm:$0xf] %v3957
          %4086 = vst [vmem:[#allocation2 + $0x70] sm:$0xf] %v3958
          %4087 = vst [vmem:[#allocation2 + $0x74] sm:$0xf] %v3959
          %4088 = vst [vmem:[#allocation2 + $0x78] sm:$0xf] %v3960
          %4089 = vst [vmem:[#allocation2 + $0x7c] sm:$0xf] %v3961
          %4090 = vst [vmem:[#allocation2 + $0x80] sm:$0xf] %v3962
          %4091 = vst [vmem:[#allocation2 + $0x84] sm:$0xf] %v3963
          %4092 = vst [vmem:[#allocation2 + $0x88] sm:$0xf] %v3964
          %4093 = vst [vmem:[#allocation2 + $0x8c] sm:$0xf] %v3965
          %4094 = vst [vmem:[#allocation2 + $0x90] sm:$0xf] %v3966
          %4095 = vst [vmem:[#allocation2 + $0x94] sm:$0xf] %v3967
          %4096 = vst [vmem:[#allocation2 + $0x98] sm:$0xf] %v3968
          %4097 = vst [vmem:[#allocation2 + $0x9c] sm:$0xf] %v3969
          %4098 = vst [vmem:[#allocation2 + $0xa0] sm:$0xf] %v3970
          %4099 = vst [vmem:[#allocation2 + $0xa4] sm:$0xf] %v3971
          %4100 = vst [vmem:[#allocation2 + $0xa8] sm:$0xf] %v3972
          %4101 = vst [vmem:[#allocation2 + $0xac] sm:$0xf] %v3973
          %4102 = vst [vmem:[#allocation2 + $0xb0] sm:$0xf] %v3974
          %4103 = vst [vmem:[#allocation2 + $0xb4] sm:$0xf] %v3975
          %4104 = vst [vmem:[#allocation2 + $0xb8] sm:$0xf] %v3976
          %4105 = vst [vmem:[#allocation2 + $0xbc] sm:$0xf] %v3977
          %4106 = vst [vmem:[#allocation2 + $0xc0] sm:$0xf] %v3978
          %4107 = vst [vmem:[#allocation2 + $0xc4] sm:$0xf] %v3979
          %4108 = vst [vmem:[#allocation2 + $0xc8] sm:$0xf] %v3980
          %4109 = vst [vmem:[#allocation2 + $0xcc] sm:$0xf] %v3981
          %4110 = vst [vmem:[#allocation2 + $0xd0] sm:$0xf] %v3982
          %4111 = vst [vmem:[#allocation2 + $0xd4] sm:$0xf] %v3983
          %4112 = vst [vmem:[#allocation2 + $0xd8] sm:$0xf] %v3984
          %4113 = vst [vmem:[#allocation2 + $0xdc] sm:$0xf] %v3985
          %4114 = vst [vmem:[#allocation2 + $0xe0] sm:$0xf] %v3986
          %4115 = vst [vmem:[#allocation2 + $0xe4] sm:$0xf] %v3987
          %4116 = vst [vmem:[#allocation2 + $0xe8] sm:$0xf] %v3988
          %4117 = vst [vmem:[#allocation2 + $0xec] sm:$0xf] %v3989
          %4118 = vst [vmem:[#allocation2 + $0xf0] sm:$0xf] %v3990
          %4119 = vst [vmem:[#allocation2 + $0xf4] sm:$0xf] %v3991
          %4120 = vst [vmem:[#allocation2 + $0xf8] sm:$0xf] %v3992
          %4121 = vst [vmem:[#allocation2 + $0xfc] sm:$0xf] %v3993
          %s4122 = scalar_lea.sflag [#allocation3], 1
          // Predicated region
          $region109: #{tpu_custom_call.1} parent=91 // pred_check
            _
          $region110: #{tpu_custom_call.1} parent=91 // pred_check_branch
            %4124 = sbr.rel target = $region112
          $region111: #{tpu_custom_call.1} parent=91 // pred_region
            %4125 = sst [smem:[#allocation20]] [#allocation25]
            %4126 = sst [smem:[#allocation21]] [#allocation24]
          $region112: #{tpu_custom_call.1} parent=91 // pred_fallthru
            _
          %4128 = shalt.err (0)
          %s4130 = sshll.u32 [#allocation2], 4
          %s4131 = int_to_ptr.vmem [resolvable:$true] %s4130
          %4133 = dma.vmem_to_hbm [thread:$0]  %s4131, 4096, %s2252, %s4122
          %s4134 = sshll.u32 %s2265, 4
          %4135 = dma.done %s4122, %s4134
        $region92: #{tpu_custom_call.1} parent=47 // pred_fallthru
          _
        %p4136 = scmp.eq.s32.totalorder %s32, 2
        // Predicated region
        $region113: #{tpu_custom_call.1} parent=47 // pred_check
          %p4137 = pneg %p4136
        $region114: #{tpu_custom_call.1} parent=47 // pred_check_branch
          %4139 = sbr.rel (%p4137) target = $region116
        $region115: #{tpu_custom_call.1} parent=47 // pred_region
          %p4140 = scmp.eq.s32.totalorder %s33, 0
          // Predicated region
          $region117: #{tpu_custom_call.1} parent=115 // pred_check
            %p4141 = pneg %p4140
          $region118: #{tpu_custom_call.1} parent=115 // pred_check_branch
            %4143 = sbr.rel (%p4141) target = $region120
          $region119: #{tpu_custom_call.1} parent=115 // pred_region
            %v4144 = vld [vmem:[%s4 + $0x1] sm:$0x1]
            %v4145 = vld [vmem:[%s4 + $0x2] sm:$0x1]
            %v4146 = vld [vmem:[#allocation4] sm:$0x1]
            %v4147 = vmul.f32 %v4146, 0.0016666667
            %v4148 = vld [vmem:[#allocation5] sm:$0x1]
            %v4149 = vmul.f32 %v4148, 0.0016666667
            %v4150 = vmul.f32 %v4147, %v4147
            %v4151 = vsub.f32 %v4149, %v4150
            %v4152 = vmax.f32 %v4151, 0.0
            %v4153 = vadd.f32 %v4152, 1e-05
            %v4154 = vrsqrt.pop %v4153
            %v4155 = vmul.f32 %v4144, %v4154
            %4156 = vst [vmem:[#allocation6] sm:$0x1] %v4155
            %v4157 = vmul.f32 %v4147, %v4155
            %v4158 = vsub.f32 %v4145, %v4157
            %4159 = vst [vmem:[#allocation7] sm:$0x1] %v4158
          $region120: #{tpu_custom_call.1} parent=115 // pred_fallthru
            _
          %s4160 = sshra.s32 %s384, 3
          %s4161 = sand.u32 %s384, 7
          %s4162 = smul.addr %s4160, 64
          %s4163 = scalar_lea.hbm %s8, %s4162
          // Predicated region
          $region121: #{tpu_custom_call.1} parent=115 // pred_check
            _
          $region122: #{tpu_custom_call.1} parent=115 // pred_check_branch
            %4165 = sbr.rel target = $region124
          $region123: #{tpu_custom_call.1} parent=115 // pred_region
            %4166 = sst [smem:[#allocation20]] [#allocation27]
            %4167 = sst [smem:[#allocation21]] [#allocation26]
          $region124: #{tpu_custom_call.1} parent=115 // pred_fallthru
            _
          %4169 = shalt.err (0)
          %s4171 = sshll.u32 [#allocation2], 4
          %s4172 = int_to_ptr.vmem [resolvable:$true] %s4171
          %4174 = dma.hbm_to_vmem [thread:$0]  %s4163, 4096, %s4172, [#allocation3]
          %s4175 = smul.u32 4, 64
          %s4176 = smul.u32 %s4175, 1
          %s4177 = sshll.u32 %s4176, 4
          %4178 = dma.done [#allocation3], %s4177
          %v4179 = vld [vmem:[#allocation2] sm:$0xf]
          %v4180 = vld [vmem:[#allocation2 + $0x4] sm:$0xf]
          %v4181 = vld [vmem:[#allocation2 + $0x8] sm:$0xf]
          %v4182 = vld [vmem:[#allocation2 + $0xc] sm:$0xf]
          %v4183 = vld [vmem:[#allocation2 + $0x10] sm:$0xf]
          %v4184 = vld [vmem:[#allocation2 + $0x14] sm:$0xf]
          %v4185 = vld [vmem:[#allocation2 + $0x18] sm:$0xf]
          %v4186 = vld [vmem:[#allocation2 + $0x1c] sm:$0xf]
          %v4187 = vld [vmem:[#allocation2 + $0x20] sm:$0xf]
          %v4188 = vld [vmem:[#allocation2 + $0x24] sm:$0xf]
          %v4189 = vld [vmem:[#allocation2 + $0x28] sm:$0xf]
          %v4190 = vld [vmem:[#allocation2 + $0x2c] sm:$0xf]
          %v4191 = vld [vmem:[#allocation2 + $0x30] sm:$0xf]
          %v4192 = vld [vmem:[#allocation2 + $0x34] sm:$0xf]
          %v4193 = vld [vmem:[#allocation2 + $0x38] sm:$0xf]
          %v4194 = vld [vmem:[#allocation2 + $0x3c] sm:$0xf]
          %v4195 = vld [vmem:[#allocation2 + $0x40] sm:$0xf]
          %v4196 = vld [vmem:[#allocation2 + $0x44] sm:$0xf]
          %v4197 = vld [vmem:[#allocation2 + $0x48] sm:$0xf]
          %v4198 = vld [vmem:[#allocation2 + $0x4c] sm:$0xf]
          %v4199 = vld [vmem:[#allocation2 + $0x50] sm:$0xf]
          %v4200 = vld [vmem:[#allocation2 + $0x54] sm:$0xf]
          %v4201 = vld [vmem:[#allocation2 + $0x58] sm:$0xf]
          %v4202 = vld [vmem:[#allocation2 + $0x5c] sm:$0xf]
          %v4203 = vld [vmem:[#allocation2 + $0x60] sm:$0xf]
          %v4204 = vld [vmem:[#allocation2 + $0x64] sm:$0xf]
          %v4205 = vld [vmem:[#allocation2 + $0x68] sm:$0xf]
          %v4206 = vld [vmem:[#allocation2 + $0x6c] sm:$0xf]
          %v4207 = vld [vmem:[#allocation2 + $0x70] sm:$0xf]
          %v4208 = vld [vmem:[#allocation2 + $0x74] sm:$0xf]
          %v4209 = vld [vmem:[#allocation2 + $0x78] sm:$0xf]
          %v4210 = vld [vmem:[#allocation2 + $0x7c] sm:$0xf]
          %v4211 = vld [vmem:[#allocation2 + $0x80] sm:$0xf]
          %v4212 = vld [vmem:[#allocation2 + $0x84] sm:$0xf]
          %v4213 = vld [vmem:[#allocation2 + $0x88] sm:$0xf]
          %v4214 = vld [vmem:[#allocation2 + $0x8c] sm:$0xf]
          %v4215 = vld [vmem:[#allocation2 + $0x90] sm:$0xf]
          %v4216 = vld [vmem:[#allocation2 + $0x94] sm:$0xf]
          %v4217 = vld [vmem:[#allocation2 + $0x98] sm:$0xf]
          %v4218 = vld [vmem:[#allocation2 + $0x9c] sm:$0xf]
          %v4219 = vld [vmem:[#allocation2 + $0xa0] sm:$0xf]
          %v4220 = vld [vmem:[#allocation2 + $0xa4] sm:$0xf]
          %v4221 = vld [vmem:[#allocation2 + $0xa8] sm:$0xf]
          %v4222 = vld [vmem:[#allocation2 + $0xac] sm:$0xf]
          %v4223 = vld [vmem:[#allocation2 + $0xb0] sm:$0xf]
          %v4224 = vld [vmem:[#allocation2 + $0xb4] sm:$0xf]
          %v4225 = vld [vmem:[#allocation2 + $0xb8] sm:$0xf]
          %v4226 = vld [vmem:[#allocation2 + $0xbc] sm:$0xf]
          %v4227 = vld [vmem:[#allocation2 + $0xc0] sm:$0xf]
          %v4228 = vld [vmem:[#allocation2 + $0xc4] sm:$0xf]
          %v4229 = vld [vmem:[#allocation2 + $0xc8] sm:$0xf]
          %v4230 = vld [vmem:[#allocation2 + $0xcc] sm:$0xf]
          %v4231 = vld [vmem:[#allocation2 + $0xd0] sm:$0xf]
          %v4232 = vld [vmem:[#allocation2 + $0xd4] sm:$0xf]
          %v4233 = vld [vmem:[#allocation2 + $0xd8] sm:$0xf]
          %v4234 = vld [vmem:[#allocation2 + $0xdc] sm:$0xf]
          %v4235 = vld [vmem:[#allocation2 + $0xe0] sm:$0xf]
          %v4236 = vld [vmem:[#allocation2 + $0xe4] sm:$0xf]
          %v4237 = vld [vmem:[#allocation2 + $0xe8] sm:$0xf]
          %v4238 = vld [vmem:[#allocation2 + $0xec] sm:$0xf]
          %v4239 = vld [vmem:[#allocation2 + $0xf0] sm:$0xf]
          %v4240 = vld [vmem:[#allocation2 + $0xf4] sm:$0xf]
          %v4241 = vld [vmem:[#allocation2 + $0xf8] sm:$0xf]
          %v4242 = vld [vmem:[#allocation2 + $0xfc] sm:$0xf]
          %v4243 = vunpack.c.l.bf16 %v4179
          %v4244 = vunpack.c.l.bf16 %v4180
          %v4245 = vunpack.c.l.bf16 %v4181
          %v4246 = vunpack.c.l.bf16 %v4182
          %v4247 = vunpack.c.l.bf16 %v4183
          %v4248 = vunpack.c.l.bf16 %v4184
          %v4249 = vunpack.c.l.bf16 %v4185
          %v4250 = vunpack.c.l.bf16 %v4186
          %v4251 = vunpack.c.l.bf16 %v4187
          %v4252 = vunpack.c.l.bf16 %v4188
          %v4253 = vunpack.c.l.bf16 %v4189
          %v4254 = vunpack.c.l.bf16 %v4190
          %v4255 = vunpack.c.l.bf16 %v4191
          %v4256 = vunpack.c.l.bf16 %v4192
          %v4257 = vunpack.c.l.bf16 %v4193
          %v4258 = vunpack.c.l.bf16 %v4194
          %v4259 = vunpack.c.l.bf16 %v4195
          %v4260 = vunpack.c.l.bf16 %v4196
          %v4261 = vunpack.c.l.bf16 %v4197
          %v4262 = vunpack.c.l.bf16 %v4198
          %v4263 = vunpack.c.l.bf16 %v4199
          %v4264 = vunpack.c.l.bf16 %v4200
          %v4265 = vunpack.c.l.bf16 %v4201
          %v4266 = vunpack.c.l.bf16 %v4202
          %v4267 = vunpack.c.l.bf16 %v4203
          %v4268 = vunpack.c.l.bf16 %v4204
          %v4269 = vunpack.c.l.bf16 %v4205
          %v4270 = vunpack.c.l.bf16 %v4206
          %v4271 = vunpack.c.l.bf16 %v4207
          %v4272 = vunpack.c.l.bf16 %v4208
          %v4273 = vunpack.c.l.bf16 %v4209
          %v4274 = vunpack.c.l.bf16 %v4210
          %v4275 = vunpack.c.l.bf16 %v4211
          %v4276 = vunpack.c.l.bf16 %v4212
          %v4277 = vunpack.c.l.bf16 %v4213
          %v4278 = vunpack.c.l.bf16 %v4214
          %v4279 = vunpack.c.l.bf16 %v4215
          %v4280 = vunpack.c.l.bf16 %v4216
          %v4281 = vunpack.c.l.bf16 %v4217
          %v4282 = vunpack.c.l.bf16 %v4218
          %v4283 = vunpack.c.l.bf16 %v4219
          %v4284 = vunpack.c.l.bf16 %v4220
          %v4285 = vunpack.c.l.bf16 %v4221
          %v4286 = vunpack.c.l.bf16 %v4222
          %v4287 = vunpack.c.l.bf16 %v4223
          %v4288 = vunpack.c.l.bf16 %v4224
          %v4289 = vunpack.c.l.bf16 %v4225
          %v4290 = vunpack.c.l.bf16 %v4226
          %v4291 = vunpack.c.l.bf16 %v4227
          %v4292 = vunpack.c.l.bf16 %v4228
          %v4293 = vunpack.c.l.bf16 %v4229
          %v4294 = vunpack.c.l.bf16 %v4230
          %v4295 = vunpack.c.l.bf16 %v4231
          %v4296 = vunpack.c.l.bf16 %v4232
          %v4297 = vunpack.c.l.bf16 %v4233
          %v4298 = vunpack.c.l.bf16 %v4234
          %v4299 = vunpack.c.l.bf16 %v4235
          %v4300 = vunpack.c.l.bf16 %v4236
          %v4301 = vunpack.c.l.bf16 %v4237
          %v4302 = vunpack.c.l.bf16 %v4238
          %v4303 = vunpack.c.l.bf16 %v4239
          %v4304 = vunpack.c.l.bf16 %v4240
          %v4305 = vunpack.c.l.bf16 %v4241
          %v4306 = vunpack.c.l.bf16 %v4242
          %v4307 = vld [vmem:[#allocation6] sm:$0x1]
          %v4309 = vlaneseq
          %v4310 = vshrl.u32 %v4309, 7
          %v4311 = vsub.s32 0, %v4310
          %v4312 = vrot.slane %v4307, %v4311
          %v4314 = vmul.f32 %v4243, %v4312
          %v4315 = vmul.f32 %v4244, %v4312
          %v4316 = vmul.f32 %v4245, %v4312
          %v4317 = vmul.f32 %v4246, %v4312
          %v4318 = vmul.f32 %v4247, %v4312
          %v4319 = vmul.f32 %v4248, %v4312
          %v4320 = vmul.f32 %v4249, %v4312
          %v4321 = vmul.f32 %v4250, %v4312
          %v4322 = vmul.f32 %v4251, %v4312
          %v4323 = vmul.f32 %v4252, %v4312
          %v4324 = vmul.f32 %v4253, %v4312
          %v4325 = vmul.f32 %v4254, %v4312
          %v4326 = vmul.f32 %v4255, %v4312
          %v4327 = vmul.f32 %v4256, %v4312
          %v4328 = vmul.f32 %v4257, %v4312
          %v4329 = vmul.f32 %v4258, %v4312
          %v4330 = vmul.f32 %v4259, %v4312
          %v4331 = vmul.f32 %v4260, %v4312
          %v4332 = vmul.f32 %v4261, %v4312
          %v4333 = vmul.f32 %v4262, %v4312
          %v4334 = vmul.f32 %v4263, %v4312
          %v4335 = vmul.f32 %v4264, %v4312
          %v4336 = vmul.f32 %v4265, %v4312
          %v4337 = vmul.f32 %v4266, %v4312
          %v4338 = vmul.f32 %v4267, %v4312
          %v4339 = vmul.f32 %v4268, %v4312
          %v4340 = vmul.f32 %v4269, %v4312
          %v4341 = vmul.f32 %v4270, %v4312
          %v4342 = vmul.f32 %v4271, %v4312
          %v4343 = vmul.f32 %v4272, %v4312
          %v4344 = vmul.f32 %v4273, %v4312
          %v4345 = vmul.f32 %v4274, %v4312
          %v4346 = vmul.f32 %v4275, %v4312
          %v4347 = vmul.f32 %v4276, %v4312
          %v4348 = vmul.f32 %v4277, %v4312
          %v4349 = vmul.f32 %v4278, %v4312
          %v4350 = vmul.f32 %v4279, %v4312
          %v4351 = vmul.f32 %v4280, %v4312
          %v4352 = vmul.f32 %v4281, %v4312
          %v4353 = vmul.f32 %v4282, %v4312
          %v4354 = vmul.f32 %v4283, %v4312
          %v4355 = vmul.f32 %v4284, %v4312
          %v4356 = vmul.f32 %v4285, %v4312
          %v4357 = vmul.f32 %v4286, %v4312
          %v4358 = vmul.f32 %v4287, %v4312
          %v4359 = vmul.f32 %v4288, %v4312
          %v4360 = vmul.f32 %v4289, %v4312
          %v4361 = vmul.f32 %v4290, %v4312
          %v4362 = vmul.f32 %v4291, %v4312
          %v4363 = vmul.f32 %v4292, %v4312
          %v4364 = vmul.f32 %v4293, %v4312
          %v4365 = vmul.f32 %v4294, %v4312
          %v4366 = vmul.f32 %v4295, %v4312
          %v4367 = vmul.f32 %v4296, %v4312
          %v4368 = vmul.f32 %v4297, %v4312
          %v4369 = vmul.f32 %v4298, %v4312
          %v4370 = vmul.f32 %v4299, %v4312
          %v4371 = vmul.f32 %v4300, %v4312
          %v4372 = vmul.f32 %v4301, %v4312
          %v4373 = vmul.f32 %v4302, %v4312
          %v4374 = vmul.f32 %v4303, %v4312
          %v4375 = vmul.f32 %v4304, %v4312
          %v4376 = vmul.f32 %v4305, %v4312
          %v4377 = vmul.f32 %v4306, %v4312
          %v4378 = vld [vmem:[#allocation7] sm:$0x1]
          %v4380 = vlaneseq
          %v4381 = vshrl.u32 %v4380, 7
          %v4382 = vsub.s32 0, %v4381
          %v4383 = vrot.slane %v4378, %v4382
          %v4385 = vadd.f32 %v4314, %v4383
          %v4386 = vadd.f32 %v4315, %v4383
          %v4387 = vadd.f32 %v4316, %v4383
          %v4388 = vadd.f32 %v4317, %v4383
          %v4389 = vadd.f32 %v4318, %v4383
          %v4390 = vadd.f32 %v4319, %v4383
          %v4391 = vadd.f32 %v4320, %v4383
          %v4392 = vadd.f32 %v4321, %v4383
          %v4393 = vadd.f32 %v4322, %v4383
          %v4394 = vadd.f32 %v4323, %v4383
          %v4395 = vadd.f32 %v4324, %v4383
          %v4396 = vadd.f32 %v4325, %v4383
          %v4397 = vadd.f32 %v4326, %v4383
          %v4398 = vadd.f32 %v4327, %v4383
          %v4399 = vadd.f32 %v4328, %v4383
          %v4400 = vadd.f32 %v4329, %v4383
          %v4401 = vadd.f32 %v4330, %v4383
          %v4402 = vadd.f32 %v4331, %v4383
          %v4403 = vadd.f32 %v4332, %v4383
          %v4404 = vadd.f32 %v4333, %v4383
          %v4405 = vadd.f32 %v4334, %v4383
          %v4406 = vadd.f32 %v4335, %v4383
          %v4407 = vadd.f32 %v4336, %v4383
          %v4408 = vadd.f32 %v4337, %v4383
          %v4409 = vadd.f32 %v4338, %v4383
          %v4410 = vadd.f32 %v4339, %v4383
          %v4411 = vadd.f32 %v4340, %v4383
          %v4412 = vadd.f32 %v4341, %v4383
          %v4413 = vadd.f32 %v4342, %v4383
          %v4414 = vadd.f32 %v4343, %v4383
          %v4415 = vadd.f32 %v4344, %v4383
          %v4416 = vadd.f32 %v4345, %v4383
          %v4417 = vadd.f32 %v4346, %v4383
          %v4418 = vadd.f32 %v4347, %v4383
          %v4419 = vadd.f32 %v4348, %v4383
          %v4420 = vadd.f32 %v4349, %v4383
          %v4421 = vadd.f32 %v4350, %v4383
          %v4422 = vadd.f32 %v4351, %v4383
          %v4423 = vadd.f32 %v4352, %v4383
          %v4424 = vadd.f32 %v4353, %v4383
          %v4425 = vadd.f32 %v4354, %v4383
          %v4426 = vadd.f32 %v4355, %v4383
          %v4427 = vadd.f32 %v4356, %v4383
          %v4428 = vadd.f32 %v4357, %v4383
          %v4429 = vadd.f32 %v4358, %v4383
          %v4430 = vadd.f32 %v4359, %v4383
          %v4431 = vadd.f32 %v4360, %v4383
          %v4432 = vadd.f32 %v4361, %v4383
          %v4433 = vadd.f32 %v4362, %v4383
          %v4434 = vadd.f32 %v4363, %v4383
          %v4435 = vadd.f32 %v4364, %v4383
          %v4436 = vadd.f32 %v4365, %v4383
          %v4437 = vadd.f32 %v4366, %v4383
          %v4438 = vadd.f32 %v4367, %v4383
          %v4439 = vadd.f32 %v4368, %v4383
          %v4440 = vadd.f32 %v4369, %v4383
          %v4441 = vadd.f32 %v4370, %v4383
          %v4442 = vadd.f32 %v4371, %v4383
          %v4443 = vadd.f32 %v4372, %v4383
          %v4444 = vadd.f32 %v4373, %v4383
          %v4445 = vadd.f32 %v4374, %v4383
          %v4446 = vadd.f32 %v4375, %v4383
          %v4447 = vadd.f32 %v4376, %v4383
          %v4448 = vadd.f32 %v4377, %v4383
          %v4449 = vpack.c.bf16 %v4386, %v4385
          %v4450 = vpack.c.bf16 %v4388, %v4387
          %v4451 = vpack.c.bf16 %v4390, %v4389
          %v4452 = vpack.c.bf16 %v4392, %v4391
          %v4453 = vpack.c.bf16 %v4394, %v4393
          %v4454 = vpack.c.bf16 %v4396, %v4395
          %v4455 = vpack.c.bf16 %v4398, %v4397
          %v4456 = vpack.c.bf16 %v4400, %v4399
          %v4457 = vpack.c.bf16 %v4402, %v4401
          %v4458 = vpack.c.bf16 %v4404, %v4403
          %v4459 = vpack.c.bf16 %v4406, %v4405
          %v4460 = vpack.c.bf16 %v4408, %v4407
          %v4461 = vpack.c.bf16 %v4410, %v4409
          %v4462 = vpack.c.bf16 %v4412, %v4411
          %v4463 = vpack.c.bf16 %v4414, %v4413
          %v4464 = vpack.c.bf16 %v4416, %v4415
          %v4465 = vpack.c.bf16 %v4418, %v4417
          %v4466 = vpack.c.bf16 %v4420, %v4419
          %v4467 = vpack.c.bf16 %v4422, %v4421
          %v4468 = vpack.c.bf16 %v4424, %v4423
          %v4469 = vpack.c.bf16 %v4426, %v4425
          %v4470 = vpack.c.bf16 %v4428, %v4427
          %v4471 = vpack.c.bf16 %v4430, %v4429
          %v4472 = vpack.c.bf16 %v4432, %v4431
          %v4473 = vpack.c.bf16 %v4434, %v4433
          %v4474 = vpack.c.bf16 %v4436, %v4435
          %v4475 = vpack.c.bf16 %v4438, %v4437
          %v4476 = vpack.c.bf16 %v4440, %v4439
          %v4477 = vpack.c.bf16 %v4442, %v4441
          %v4478 = vpack.c.bf16 %v4444, %v4443
          %v4479 = vpack.c.bf16 %v4446, %v4445
          %v4480 = vpack.c.bf16 %v4448, %v4447
          %v4481 = vld [vmem:[#allocation16] sm:$0xf]
          %v4482 = vld [vmem:[#allocation16 + $0x4] sm:$0xf]
          %v4483 = vld [vmem:[#allocation16 + $0x8] sm:$0xf]
          %v4484 = vld [vmem:[#allocation16 + $0xc] sm:$0xf]
          %v4485 = vld [vmem:[#allocation16 + $0x10] sm:$0xf]
          %v4486 = vld [vmem:[#allocation16 + $0x14] sm:$0xf]
          %v4487 = vld [vmem:[#allocation16 + $0x18] sm:$0xf]
          %v4488 = vld [vmem:[#allocation16 + $0x1c] sm:$0xf]
          %v4489 = vld [vmem:[#allocation16 + $0x20] sm:$0xf]
          %v4490 = vld [vmem:[#allocation16 + $0x24] sm:$0xf]
          %v4491 = vld [vmem:[#allocation16 + $0x28] sm:$0xf]
          %v4492 = vld [vmem:[#allocation16 + $0x2c] sm:$0xf]
          %v4493 = vld [vmem:[#allocation16 + $0x30] sm:$0xf]
          %v4494 = vld [vmem:[#allocation16 + $0x34] sm:$0xf]
          %v4495 = vld [vmem:[#allocation16 + $0x38] sm:$0xf]
          %v4496 = vld [vmem:[#allocation16 + $0x3c] sm:$0xf]
          %v4497 = vld [vmem:[%s6] sm:$0x1]
          %v4499 = vlaneseq
          %v4500 = vshrl.u32 %v4499, 7
          %v4501 = vsub.s32 0, %v4500
          %v4502 = vrot.slane %v4497, %v4501
          %v4520 = vunpack.c.l.b16 %v4481
          %v4521 = vunpack.c.l.b16 %v4482
          %v4522 = vunpack.c.l.b16 %v4483
          %v4523 = vunpack.c.l.b16 %v4484
          %v4524 = vunpack.c.l.b16 %v4485
          %v4525 = vunpack.c.l.b16 %v4486
          %v4526 = vunpack.c.l.b16 %v4487
          %v4527 = vunpack.c.l.b16 %v4488
          %v4528 = vunpack.c.l.b16 %v4489
          %v4529 = vunpack.c.l.b16 %v4490
          %v4530 = vunpack.c.l.b16 %v4491
          %v4531 = vunpack.c.l.b16 %v4492
          %v4532 = vunpack.c.l.b16 %v4493
          %v4533 = vunpack.c.l.b16 %v4494
          %v4534 = vunpack.c.l.b16 %v4495
          %v4535 = vunpack.c.l.b16 %v4496
          %v4536 = vpack.c.b16 %v4521, %v4520
          %v4537 = vpack.c.b16 %v4523, %v4522
          %v4538 = vpack.c.b16 %v4525, %v4524
          %v4539 = vpack.c.b16 %v4527, %v4526
          %v4540 = vpack.c.b16 %v4529, %v4528
          %v4541 = vpack.c.b16 %v4531, %v4530
          %v4542 = vpack.c.b16 %v4533, %v4532
          %v4543 = vpack.c.b16 %v4535, %v4534
          %4552 = vmatprep.subr.bf16.mxu0 0
          %4553 = vmatpush1.bf16.msra.mxu0 %v4543
          %4554 = vmatprep.subr.bf16.mxu0 0
          %4555 = vmatpush1.bf16.msra.mxu0 %v4542
          %4556 = vmatprep.subr.bf16.mxu0 0
          %4557 = vmatpush1.bf16.msra.mxu0 %v4541
          %4558 = vmatprep.subr.bf16.mxu0 0
          %4559 = vmatpush1.bf16.msra.mxu0 %v4540
          %4560 = vmatprep.subr.bf16.mxu0 0
          %4561 = vmatpush1.bf16.msra.mxu0 %v4539
          %4562 = vmatprep.subr.bf16.mxu0 0
          %4563 = vmatpush1.bf16.msra.mxu0 %v4538
          %4564 = vmatprep.subr.bf16.mxu0 0
          %4565 = vmatpush1.bf16.msra.mxu0 %v4537
          %4566 = vmatprep.subr.bf16.mxu0 0
          %4567 = vmatpush1.bf16.msra.mxu0 %v4536
          %4568 = vmatprep.subr.bf16.mxu0 0
          %4569 = vmatpush2.bf16.msra.mxu0 0
          %4570 = vmatprep.subr.bf16.mxu0 0
          %4571 = vmatpush2.bf16.msra.mxu0 0
          %4572 = vmatprep.subr.bf16.mxu0 0
          %4573 = vmatpush2.bf16.msra.mxu0 0
          %4574 = vmatprep.subr.bf16.mxu0 0
          %4575 = vmatpush2.bf16.msra.mxu0 0
          %4576 = vmatprep.subr.bf16.mxu0 0
          %4577 = vmatpush2.bf16.msra.mxu0 0
          %4578 = vmatprep.subr.bf16.mxu0 0
          %4579 = vmatpush2.bf16.msra.mxu0 0
          %4580 = vmatprep.subr.bf16.mxu0 0
          %4581 = vmatpush2.bf16.msra.mxu0 0
          %4582 = vmatprep.subr.bf16.mxu0 0
          %4583 = vmatpush2.bf16.msra.mxu0 0
          %4584 = vmatprep.mubr.bf16.mxu0 0
          %4585 = vmatmul.mubr.bf16.gmra.mxu0 %v4449
          %v4586 = vpop.f32.mrf.mxu0
          %v4587 = vadd.f32 %v4502, %v4586
          %v4588 = vpop.f32.mrf.mxu0
          %v4589 = vpop.f32.mrf.mxu0
          %v4590 = vadd.f32 %v4502, %v4589
          %v4591 = vpop.f32.mrf.mxu0
          %4592 = vmatprep.mubr.bf16.mxu0 0
          %4593 = vmatmul.mubr.bf16.gmra.mxu0 %v4450
          %v4594 = vpop.f32.mrf.mxu0
          %v4595 = vadd.f32 %v4502, %v4594
          %v4596 = vpop.f32.mrf.mxu0
          %v4597 = vpop.f32.mrf.mxu0
          %v4598 = vadd.f32 %v4502, %v4597
          %v4599 = vpop.f32.mrf.mxu0
          %4600 = vmatprep.mubr.bf16.mxu0 0
          %4601 = vmatmul.mubr.bf16.gmra.mxu0 %v4451
          %v4602 = vpop.f32.mrf.mxu0
          %v4603 = vadd.f32 %v4502, %v4602
          %v4604 = vpop.f32.mrf.mxu0
          %v4605 = vpop.f32.mrf.mxu0
          %v4606 = vadd.f32 %v4502, %v4605
          %v4607 = vpop.f32.mrf.mxu0
          %4608 = vmatprep.mubr.bf16.mxu0 0
          %4609 = vmatmul.mubr.bf16.gmra.mxu0 %v4452
          %v4610 = vpop.f32.mrf.mxu0
          %v4611 = vadd.f32 %v4502, %v4610
          %v4612 = vpop.f32.mrf.mxu0
          %v4613 = vpop.f32.mrf.mxu0
          %v4614 = vadd.f32 %v4502, %v4613
          %v4615 = vpop.f32.mrf.mxu0
          %4616 = vmatprep.mubr.bf16.mxu0 0
          %4617 = vmatmul.mubr.bf16.gmra.mxu0 %v4453
          %v4618 = vpop.f32.mrf.mxu0
          %v4619 = vadd.f32 %v4502, %v4618
          %v4620 = vpop.f32.mrf.mxu0
          %v4621 = vpop.f32.mrf.mxu0
          %v4622 = vadd.f32 %v4502, %v4621
          %v4623 = vpop.f32.mrf.mxu0
          %4624 = vmatprep.mubr.bf16.mxu0 0
          %4625 = vmatmul.mubr.bf16.gmra.mxu0 %v4454
          %v4626 = vpop.f32.mrf.mxu0
          %v4627 = vadd.f32 %v4502, %v4626
          %v4628 = vpop.f32.mrf.mxu0
          %v4629 = vpop.f32.mrf.mxu0
          %v4630 = vadd.f32 %v4502, %v4629
          %v4631 = vpop.f32.mrf.mxu0
          %4632 = vmatprep.mubr.bf16.mxu0 0
          %4633 = vmatmul.mubr.bf16.gmra.mxu0 %v4455
          %v4634 = vpop.f32.mrf.mxu0
          %v4635 = vadd.f32 %v4502, %v4634
          %v4636 = vpop.f32.mrf.mxu0
          %v4637 = vpop.f32.mrf.mxu0
          %v4638 = vadd.f32 %v4502, %v4637
          %v4639 = vpop.f32.mrf.mxu0
          %4640 = vmatprep.mubr.bf16.mxu0 0
          %4641 = vmatmul.mubr.bf16.gmra.mxu0 %v4456
          %v4642 = vpop.f32.mrf.mxu0
          %v4643 = vadd.f32 %v4502, %v4642
          %v4644 = vpop.f32.mrf.mxu0
          %v4645 = vpop.f32.mrf.mxu0
          %v4646 = vadd.f32 %v4502, %v4645
          %v4647 = vpop.f32.mrf.mxu0
          %4648 = vmatprep.mubr.bf16.mxu0 0
          %4649 = vmatmul.mubr.bf16.gmra.mxu0 %v4457
          %v4650 = vpop.f32.mrf.mxu0
          %v4651 = vadd.f32 %v4502, %v4650
          %v4652 = vpop.f32.mrf.mxu0
          %v4653 = vpop.f32.mrf.mxu0
          %v4654 = vadd.f32 %v4502, %v4653
          %v4655 = vpop.f32.mrf.mxu0
          %4656 = vmatprep.mubr.bf16.mxu0 0
          %4657 = vmatmul.mubr.bf16.gmra.mxu0 %v4458
          %v4658 = vpop.f32.mrf.mxu0
          %v4659 = vadd.f32 %v4502, %v4658
          %v4660 = vpop.f32.mrf.mxu0
          %v4661 = vpop.f32.mrf.mxu0
          %v4662 = vadd.f32 %v4502, %v4661
          %v4663 = vpop.f32.mrf.mxu0
          %4664 = vmatprep.mubr.bf16.mxu0 0
          %4665 = vmatmul.mubr.bf16.gmra.mxu0 %v4459
          %v4666 = vpop.f32.mrf.mxu0
          %v4667 = vadd.f32 %v4502, %v4666
          %v4668 = vpop.f32.mrf.mxu0
          %v4669 = vpop.f32.mrf.mxu0
          %v4670 = vadd.f32 %v4502, %v4669
          %v4671 = vpop.f32.mrf.mxu0
          %4672 = vmatprep.mubr.bf16.mxu0 0
          %4673 = vmatmul.mubr.bf16.gmra.mxu0 %v4460
          %v4674 = vpop.f32.mrf.mxu0
          %v4675 = vadd.f32 %v4502, %v4674
          %v4676 = vpop.f32.mrf.mxu0
          %v4677 = vpop.f32.mrf.mxu0
          %v4678 = vadd.f32 %v4502, %v4677
          %v4679 = vpop.f32.mrf.mxu0
          %4680 = vmatprep.mubr.bf16.mxu0 0
          %4681 = vmatmul.mubr.bf16.gmra.mxu0 %v4461
          %v4682 = vpop.f32.mrf.mxu0
          %v4683 = vadd.f32 %v4502, %v4682
          %v4684 = vpop.f32.mrf.mxu0
          %v4685 = vpop.f32.mrf.mxu0
          %v4686 = vadd.f32 %v4502, %v4685
          %v4687 = vpop.f32.mrf.mxu0
          %4688 = vmatprep.mubr.bf16.mxu0 0
          %4689 = vmatmul.mubr.bf16.gmra.mxu0 %v4462
          %v4690 = vpop.f32.mrf.mxu0
          %v4691 = vadd.f32 %v4502, %v4690
          %v4692 = vpop.f32.mrf.mxu0
          %v4693 = vpop.f32.mrf.mxu0
          %v4694 = vadd.f32 %v4502, %v4693
          %v4695 = vpop.f32.mrf.mxu0
          %4696 = vmatprep.mubr.bf16.mxu0 0
          %4697 = vmatmul.mubr.bf16.gmra.mxu0 %v4463
          %v4698 = vpop.f32.mrf.mxu0
          %v4699 = vadd.f32 %v4502, %v4698
          %v4700 = vpop.f32.mrf.mxu0
          %v4701 = vpop.f32.mrf.mxu0
          %v4702 = vadd.f32 %v4502, %v4701
          %v4703 = vpop.f32.mrf.mxu0
          %4704 = vmatprep.mubr.bf16.mxu0 0
          %4705 = vmatmul.mubr.bf16.gmra.mxu0 %v4464
          %v4706 = vpop.f32.mrf.mxu0
          %v4707 = vadd.f32 %v4502, %v4706
          %v4708 = vpop.f32.mrf.mxu0
          %v4709 = vpop.f32.mrf.mxu0
          %v4710 = vadd.f32 %v4502, %v4709
          %v4711 = vpop.f32.mrf.mxu0
          %4712 = vmatprep.mubr.bf16.mxu0 0
          %4713 = vmatmul.mubr.bf16.gmra.mxu0 %v4465
          %v4714 = vpop.f32.mrf.mxu0
          %v4715 = vadd.f32 %v4502, %v4714
          %v4716 = vpop.f32.mrf.mxu0
          %v4717 = vpop.f32.mrf.mxu0
          %v4718 = vadd.f32 %v4502, %v4717
          %v4719 = vpop.f32.mrf.mxu0
          %4720 = vmatprep.mubr.bf16.mxu0 0
          %4721 = vmatmul.mubr.bf16.gmra.mxu0 %v4466
          %v4722 = vpop.f32.mrf.mxu0
          %v4723 = vadd.f32 %v4502, %v4722
          %v4724 = vpop.f32.mrf.mxu0
          %v4725 = vpop.f32.mrf.mxu0
          %v4726 = vadd.f32 %v4502, %v4725
          %v4727 = vpop.f32.mrf.mxu0
          %4728 = vmatprep.mubr.bf16.mxu0 0
          %4729 = vmatmul.mubr.bf16.gmra.mxu0 %v4467
          %v4730 = vpop.f32.mrf.mxu0
          %v4731 = vadd.f32 %v4502, %v4730
          %v4732 = vpop.f32.mrf.mxu0
          %v4733 = vpop.f32.mrf.mxu0
          %v4734 = vadd.f32 %v4502, %v4733
          %v4735 = vpop.f32.mrf.mxu0
          %4736 = vmatprep.mubr.bf16.mxu0 0
          %4737 = vmatmul.mubr.bf16.gmra.mxu0 %v4468
          %v4738 = vpop.f32.mrf.mxu0
          %v4739 = vadd.f32 %v4502, %v4738
          %v4740 = vpop.f32.mrf.mxu0
          %v4741 = vpop.f32.mrf.mxu0
          %v4742 = vadd.f32 %v4502, %v4741
          %v4743 = vpop.f32.mrf.mxu0
          %4744 = vmatprep.mubr.bf16.mxu0 0
          %4745 = vmatmul.mubr.bf16.gmra.mxu0 %v4469
          %v4746 = vpop.f32.mrf.mxu0
          %v4747 = vadd.f32 %v4502, %v4746
          %v4748 = vpop.f32.mrf.mxu0
          %v4749 = vpop.f32.mrf.mxu0
          %v4750 = vadd.f32 %v4502, %v4749
          %v4751 = vpop.f32.mrf.mxu0
          %4752 = vmatprep.mubr.bf16.mxu0 0
          %4753 = vmatmul.mubr.bf16.gmra.mxu0 %v4470
          %v4754 = vpop.f32.mrf.mxu0
          %v4755 = vadd.f32 %v4502, %v4754
          %v4756 = vpop.f32.mrf.mxu0
          %v4757 = vpop.f32.mrf.mxu0
          %v4758 = vadd.f32 %v4502, %v4757
          %v4759 = vpop.f32.mrf.mxu0
          %4760 = vmatprep.mubr.bf16.mxu0 0
          %4761 = vmatmul.mubr.bf16.gmra.mxu0 %v4471
          %v4762 = vpop.f32.mrf.mxu0
          %v4763 = vadd.f32 %v4502, %v4762
          %v4764 = vpop.f32.mrf.mxu0
          %v4765 = vpop.f32.mrf.mxu0
          %v4766 = vadd.f32 %v4502, %v4765
          %v4767 = vpop.f32.mrf.mxu0
          %4768 = vmatprep.mubr.bf16.mxu0 0
          %4769 = vmatmul.mubr.bf16.gmra.mxu0 %v4472
          %v4770 = vpop.f32.mrf.mxu0
          %v4771 = vadd.f32 %v4502, %v4770
          %v4772 = vpop.f32.mrf.mxu0
          %v4773 = vpop.f32.mrf.mxu0
          %v4774 = vadd.f32 %v4502, %v4773
          %v4775 = vpop.f32.mrf.mxu0
          %4776 = vmatprep.mubr.bf16.mxu0 0
          %4777 = vmatmul.mubr.bf16.gmra.mxu0 %v4473
          %v4778 = vpop.f32.mrf.mxu0
          %v4779 = vadd.f32 %v4502, %v4778
          %v4780 = vpop.f32.mrf.mxu0
          %v4781 = vpop.f32.mrf.mxu0
          %v4782 = vadd.f32 %v4502, %v4781
          %v4783 = vpop.f32.mrf.mxu0
          %4784 = vmatprep.mubr.bf16.mxu0 0
          %4785 = vmatmul.mubr.bf16.gmra.mxu0 %v4474
          %v4786 = vpop.f32.mrf.mxu0
          %v4787 = vadd.f32 %v4502, %v4786
          %v4788 = vpop.f32.mrf.mxu0
          %v4789 = vpop.f32.mrf.mxu0
          %v4790 = vadd.f32 %v4502, %v4789
          %v4791 = vpop.f32.mrf.mxu0
          %4792 = vmatprep.mubr.bf16.mxu0 0
          %4793 = vmatmul.mubr.bf16.gmra.mxu0 %v4475
          %v4794 = vpop.f32.mrf.mxu0
          %v4795 = vadd.f32 %v4502, %v4794
          %v4796 = vpop.f32.mrf.mxu0
          %v4797 = vpop.f32.mrf.mxu0
          %v4798 = vadd.f32 %v4502, %v4797
          %v4799 = vpop.f32.mrf.mxu0
          %4800 = vmatprep.mubr.bf16.mxu0 0
          %4801 = vmatmul.mubr.bf16.gmra.mxu0 %v4476
          %v4802 = vpop.f32.mrf.mxu0
          %v4803 = vadd.f32 %v4502, %v4802
          %v4804 = vpop.f32.mrf.mxu0
          %v4805 = vpop.f32.mrf.mxu0
          %v4806 = vadd.f32 %v4502, %v4805
          %v4807 = vpop.f32.mrf.mxu0
          %4808 = vmatprep.mubr.bf16.mxu0 0
          %4809 = vmatmul.mubr.bf16.gmra.mxu0 %v4477
          %v4810 = vpop.f32.mrf.mxu0
          %v4811 = vadd.f32 %v4502, %v4810
          %v4812 = vpop.f32.mrf.mxu0
          %v4813 = vpop.f32.mrf.mxu0
          %v4814 = vadd.f32 %v4502, %v4813
          %v4815 = vpop.f32.mrf.mxu0
          %4816 = vmatprep.mubr.bf16.mxu0 0
          %4817 = vmatmul.mubr.bf16.gmra.mxu0 %v4478
          %v4818 = vpop.f32.mrf.mxu0
          %v4819 = vadd.f32 %v4502, %v4818
          %v4820 = vpop.f32.mrf.mxu0
          %v4821 = vpop.f32.mrf.mxu0
          %v4822 = vadd.f32 %v4502, %v4821
          %v4823 = vpop.f32.mrf.mxu0
          %4824 = vmatprep.mubr.bf16.mxu0 0
          %4825 = vmatmul.mubr.bf16.gmra.mxu0 %v4479
          %v4826 = vpop.f32.mrf.mxu0
          %v4827 = vadd.f32 %v4502, %v4826
          %v4828 = vpop.f32.mrf.mxu0
          %v4829 = vpop.f32.mrf.mxu0
          %v4830 = vadd.f32 %v4502, %v4829
          %v4831 = vpop.f32.mrf.mxu0
          %4832 = vmatprep.mubr.bf16.mxu0 0
          %4833 = vmatmul.mubr.bf16.gmra.mxu0 %v4480
          %v4834 = vpop.f32.mrf.mxu0
          %v4835 = vadd.f32 %v4502, %v4834
          %v4836 = vpop.f32.mrf.mxu0
          %v4837 = vpop.f32.mrf.mxu0
          %v4838 = vadd.f32 %v4502, %v4837
          %v4839 = vpop.f32.mrf.mxu0
          %4840 = vdwg.mxu0
          %4841 = vst [vmem:[%s376] sm:$0xff] %v4587
          %4842 = vst [vmem:[%s376 + $0x8] sm:$0xff] %v4590
          %4843 = vst [vmem:[%s376 + $0x10] sm:$0xff] %v4595
          %4844 = vst [vmem:[%s376 + $0x18] sm:$0xff] %v4598
          %4845 = vst [vmem:[%s376 + $0x20] sm:$0xff] %v4603
          %4846 = vst [vmem:[%s376 + $0x28] sm:$0xff] %v4606
          %4847 = vst [vmem:[%s376 + $0x30] sm:$0xff] %v4611
          %4848 = vst [vmem:[%s376 + $0x38] sm:$0xff] %v4614
          %4849 = vst [vmem:[%s376 + $0x40] sm:$0xff] %v4619
          %4850 = vst [vmem:[%s376 + $0x48] sm:$0xff] %v4622
          %4851 = vst [vmem:[%s376 + $0x50] sm:$0xff] %v4627
          %4852 = vst [vmem:[%s376 + $0x58] sm:$0xff] %v4630
          %4853 = vst [vmem:[%s376 + $0x60] sm:$0xff] %v4635
          %4854 = vst [vmem:[%s376 + $0x68] sm:$0xff] %v4638
          %4855 = vst [vmem:[%s376 + $0x70] sm:$0xff] %v4643
          %4856 = vst [vmem:[%s376 + $0x78] sm:$0xff] %v4646
          %4857 = vst [vmem:[%s376 + $0x80] sm:$0xff] %v4651
          %4858 = vst [vmem:[%s376 + $0x88] sm:$0xff] %v4654
          %4859 = vst [vmem:[%s376 + $0x90] sm:$0xff] %v4659
          %4860 = vst [vmem:[%s376 + $0x98] sm:$0xff] %v4662
          %4861 = vst [vmem:[%s376 + $0xa0] sm:$0xff] %v4667
          %4862 = vst [vmem:[%s376 + $0xa8] sm:$0xff] %v4670
          %4863 = vst [vmem:[%s376 + $0xb0] sm:$0xff] %v4675
          %4864 = vst [vmem:[%s376 + $0xb8] sm:$0xff] %v4678
          %4865 = vst [vmem:[%s376 + $0xc0] sm:$0xff] %v4683
          %4866 = vst [vmem:[%s376 + $0xc8] sm:$0xff] %v4686
          %4867 = vst [vmem:[%s376 + $0xd0] sm:$0xff] %v4691
          %4868 = vst [vmem:[%s376 + $0xd8] sm:$0xff] %v4694
          %4869 = vst [vmem:[%s376 + $0xe0] sm:$0xff] %v4699
          %4870 = vst [vmem:[%s376 + $0xe8] sm:$0xff] %v4702
          %4871 = vst [vmem:[%s376 + $0xf0] sm:$0xff] %v4707
          %4872 = vst [vmem:[%s376 + $0xf8] sm:$0xff] %v4710
          %4873 = vst [vmem:[%s376 + $0x100] sm:$0xff] %v4715
          %4874 = vst [vmem:[%s376 + $0x108] sm:$0xff] %v4718
          %4875 = vst [vmem:[%s376 + $0x110] sm:$0xff] %v4723
          %4876 = vst [vmem:[%s376 + $0x118] sm:$0xff] %v4726
          %4877 = vst [vmem:[%s376 + $0x120] sm:$0xff] %v4731
          %4878 = vst [vmem:[%s376 + $0x128] sm:$0xff] %v4734
          %4879 = vst [vmem:[%s376 + $0x130] sm:$0xff] %v4739
          %4880 = vst [vmem:[%s376 + $0x138] sm:$0xff] %v4742
          %4881 = vst [vmem:[%s376 + $0x140] sm:$0xff] %v4747
          %4882 = vst [vmem:[%s376 + $0x148] sm:$0xff] %v4750
          %4883 = vst [vmem:[%s376 + $0x150] sm:$0xff] %v4755
          %4884 = vst [vmem:[%s376 + $0x158] sm:$0xff] %v4758
          %4885 = vst [vmem:[%s376 + $0x160] sm:$0xff] %v4763
          %4886 = vst [vmem:[%s376 + $0x168] sm:$0xff] %v4766
          %4887 = vst [vmem:[%s376 + $0x170] sm:$0xff] %v4771
          %4888 = vst [vmem:[%s376 + $0x178] sm:$0xff] %v4774
          %4889 = vst [vmem:[%s376 + $0x180] sm:$0xff] %v4779
          %4890 = vst [vmem:[%s376 + $0x188] sm:$0xff] %v4782
          %4891 = vst [vmem:[%s376 + $0x190] sm:$0xff] %v4787
          %4892 = vst [vmem:[%s376 + $0x198] sm:$0xff] %v4790
          %4893 = vst [vmem:[%s376 + $0x1a0] sm:$0xff] %v4795
          %4894 = vst [vmem:[%s376 + $0x1a8] sm:$0xff] %v4798
          %4895 = vst [vmem:[%s376 + $0x1b0] sm:$0xff] %v4803
          %4896 = vst [vmem:[%s376 + $0x1b8] sm:$0xff] %v4806
          %4897 = vst [vmem:[%s376 + $0x1c0] sm:$0xff] %v4811
          %4898 = vst [vmem:[%s376 + $0x1c8] sm:$0xff] %v4814
          %4899 = vst [vmem:[%s376 + $0x1d0] sm:$0xff] %v4819
          %4900 = vst [vmem:[%s376 + $0x1d8] sm:$0xff] %v4822
          %4901 = vst [vmem:[%s376 + $0x1e0] sm:$0xff] %v4827
          %4902 = vst [vmem:[%s376 + $0x1e8] sm:$0xff] %v4830
          %4903 = vst [vmem:[%s376 + $0x1f0] sm:$0xff] %v4835
          %4904 = vst [vmem:[%s376 + $0x1f8] sm:$0xff] %v4838
        $region116: #{tpu_custom_call.1} parent=47 // pred_fallthru
          _
        %s4905 = sand.u32 %s208, 1
        %s4906 = scalar_lea.sflag [#allocation10], %s4905
        %s4907 = sand.u32 %s208, 1
        %s4908 = smul.addr %s4907, 512
        %s4909 = scalar_lea.vmem [#allocation17], %s4908
        // Predicated region
        $region125: #{tpu_custom_call.1} parent=47 // pred_check
          %p4910 = pneg %p218
        $region126: #{tpu_custom_call.1} parent=47 // pred_check_branch
          %4912 = sbr.rel (%p4910) target = $region128
        $region127: #{tpu_custom_call.1} parent=47 // pred_region
          %p4913 = scmp.eq.s32.totalorder %s32, 2
          %s4914 = scalar_select %p4913, %s33, 0
          %s4915 = smul.u32 64, %s4914
          %s4917 = ssub.s32 8192, 8192
          %4918 = vsyncadd %s4906, %s4917
          %s4919 = smul.addr %s4915, 128
          %s4920 = scalar_lea.hbm %s7, %s4919
          %s4921 = sshll.u32 %s4909, 4
          %s4922 = int_to_ptr.vmem [resolvable:$true] %s4921
          %4927 = dma.vmem_to_hbm [thread:$0]  %s4922, 8192, %s4920, %s4906, 128, 128, 8
        $region128: #{tpu_custom_call.1} parent=47 // pred_fallthru
          _
      $region48: #{tpu_custom_call.1} parent=5 // pred_fallthru
        _
      %p4928 = scmp.le.s32.totalorder 2, %s23
      // Predicated region
      $region129: #{tpu_custom_call.1} parent=5 // pred_check
        %p4929 = pneg %p4928
      $region130: #{tpu_custom_call.1} parent=5 // pred_check_branch
        %4931 = sbr.rel (%p4929) target = $region132
      $region131: #{tpu_custom_call.1} parent=5 // pred_region
        %s4932 = ssub.s32 %s23, 2
        // Predicated region
        $region133: #{tpu_custom_call.1} parent=131 // pred_check
          %p4933 = pneg %p224
        $region134: #{tpu_custom_call.1} parent=131 // pred_check_branch
          %4935 = sbr.rel (%p4933) target = $region136
        $region135: #{tpu_custom_call.1} parent=131 // pred_region
          %s4936 = sand.u32 %s209, 1
          %s4937 = scalar_lea.sflag [#allocation10], %s4936
          %s4938 = sand.u32 %s209, 1
          %s4939 = smul.addr %s4938, 512
          %s4940 = scalar_lea.vmem [#allocation17], %s4939
          %4941 = dma.done %s4937, 8192
        $region136: #{tpu_custom_call.1} parent=131 // pred_fallthru
          _
      $region132: #{tpu_custom_call.1} parent=5 // pred_fallthru
        _
    $region6: #{tpu_custom_call.1} parent=1 // loop_footer
      %s27 = sadd.s32 1, %s23
    $region7: #{tpu_custom_call.1} parent=1 // loop_footer_branch
      %22 = sbr.rel target = $region3
    $region8: #{tpu_custom_call.1} parent=1 // loop_exit
      _
    %4942 = vsyncpa [#allocation9], 1
    %s4943 = scalar_lea.sflag [#allocation9], 1
    %4944 = vsyncpa %s4943, 1
    %4945 = vsyncpa [#allocation12], 1
    %4946 = vsyncpa [#allocation15], 1
    %4947 = vsyncpa [#allocation10], 1
    %s4948 = scalar_lea.sflag [#allocation10], 1
    %4949 = vsyncpa %s4948, 1
  %4950 = vsyncmov [#allocation3]
  %s4951 = vpop.sfrf %4950
  %p4952 = scmp.eq.s32.totalorder %s4951, 0
  %p4953 = pneg %p4952
  %4955 = shalt.err (%p4953)
  %s4956 = scalar_lea.sflag [#allocation3], 1
  %4957 = vsyncmov %s4956
  %s4958 = vpop.sfrf %4957
  %p4959 = scmp.eq.s32.totalorder %s4958, 0
  %p4960 = pneg %p4959
  %4962 = shalt.err (%p4960)

</llo_original>
